<compile_context>
chip_gen: v7x
topology: tpu7x:2x2x1
jax: 0.10.0
libtpu: 0.0.40
codegen_flags: <defaults>
</compile_context>

<pallas_src>
import functools

import jax
import jax.numpy as jnp
from jax.experimental import pallas as pl
from jax.experimental.pallas import tpu as pltpu

EMB_DIM = 300      # GloVe dim (faithful to module)
MLP_HID = 2048     # syb_mlp hidden dim (faithful to module)
LN_EPS = 1e-8
VMEM_LIMIT = 48 * 1024 * 1024   # explicit scoped-VMEM budget (< v7x 64 MiB physical)


# ----------------------------------------------------------------------------
# Kernel 1: syb_mlp + positional add
#   Linear(300,2048) + ReLU + Linear(2048,H) + pos,  tiled over rows of B*T
# ----------------------------------------------------------------------------
def _mlp_pos_kernel(x_ref, w1_ref, b1_ref, w2_ref, b2_ref, pos_ref, o_ref):
    x = x_ref[...].astype(jnp.bfloat16)
    h = jnp.dot(x, w1_ref[...], preferred_element_type=jnp.float32) + b1_ref[...]
    h = jnp.maximum(h, 0.0).astype(jnp.bfloat16)
    y = jnp.dot(h, w2_ref[...], preferred_element_type=jnp.float32) + b2_ref[...]
    o_ref[...] = (y + pos_ref[...]).astype(o_ref.dtype)     # fused positional add


def syb_mlp_pos(emb_flat, w1, b1, w2, b2, pos_flat, *, row_tile=128):
    n, d_in = emb_flat.shape
    d_hid = w1.shape[1]
    d_out = w2.shape[1]
    rt = n if n <= row_tile else row_tile      # single block when B*T is tiny
    assert n % rt == 0, "pad B*T to a multiple of the row tile"
    return pl.pallas_call(
        _mlp_pos_kernel,
        out_shape=jax.ShapeDtypeStruct((n, d_out), jnp.float32),
        grid=(n // rt,),
        in_specs=[
            pl.BlockSpec((rt, d_in), lambda i: (i, 0)),
            pl.BlockSpec((d_in, d_hid), lambda i: (0, 0)),
            pl.BlockSpec((1, d_hid), lambda i: (0, 0)),
            pl.BlockSpec((d_hid, d_out), lambda i: (0, 0)),
            pl.BlockSpec((1, d_out), lambda i: (0, 0)),
            pl.BlockSpec((rt, d_out), lambda i: (i, 0)),
        ],
        out_specs=pl.BlockSpec((rt, d_out), lambda i: (i, 0)),
        compiler_params=pltpu.CompilerParams(
            dimension_semantics=("parallel",),
            vmem_limit_bytes=VMEM_LIMIT),
    )(emb_flat, w1, b1, w2, b2, pos_flat)


# ----------------------------------------------------------------------------
# Kernel 2: one encoder block, grid over batch (one batch element per grid step)
# ----------------------------------------------------------------------------
def _layer_norm(y, gamma, beta):
    # Matches torch `layer_normalization`: unbiased std, eps added to std.
    h = y.shape[-1]
    mean = jnp.mean(y, axis=-1, keepdims=True)
    d = y - mean
    var = jnp.sum(d * d, axis=-1, keepdims=True) * (1.0 / (h - 1))
    inv = pl.reciprocal(jnp.sqrt(var) + LN_EPS, approx=True)   # EUP, off the VALU
    return gamma * d * inv + beta


def _encoder_block_kernel(num_heads,
                          x_ref, kmask_ref, qmask_ref, graph_ref,
                          wqkv_ref, bqkv_ref,
                          g1_ref, be1_ref,
                          wf1_ref, bf1_ref, wf2_ref, bf2_ref,
                          g2_ref, be2_ref,
                          o_ref):
    T, H = x_ref.shape
    nh = num_heads
    dh = H // nh
    neg = jnp.float32(-2.0 ** 32 + 1.0)
    scale = jnp.float32(1.0 / (dh ** 0.5))

    x = x_ref[...]                                            # (T, H) f32

    # --- fused ReLU'd Q/K/V projection: ONE (T,H) @ (H,3H) bf16 MXU matmul ---
    qkv = jnp.dot(x.astype(jnp.bfloat16), wqkv_ref[...],
                  preferred_element_type=jnp.float32) + bqkv_ref[...]
    qkv = jnp.maximum(qkv, 0.0)                               # (T, 3H)

    def split_heads(y2d):                                     # (T, H) -> (nh, T, dh)
        return jnp.stack([y2d[:, h * dh:(h + 1) * dh] for h in range(nh)], axis=0)

    q = split_heads(qkv[:, 0 * H:1 * H]).astype(jnp.bfloat16)
    k = split_heads(qkv[:, 1 * H:2 * H]).astype(jnp.bfloat16)
    v = split_heads(qkv[:, 2 * H:3 * H]).astype(jnp.bfloat16)

    # --- single fused mask condition (key padding OR missing graph edge) ---
    masked = (kmask_ref[...] == 0.0) | (graph_ref[...] == 0.0)   # (T, T)

    # head-batched attention scores: one dot_general for all heads
    logits = jnp.einsum('htd,hsd->hts', q, k,
                        preferred_element_type=jnp.float32) * scale
    logits = jnp.where(masked[None], neg, logits)             # exact masked_fill parity

    m = jnp.max(logits, axis=-1, keepdims=True)
    e = jnp.exp(logits - m)
    p = e * pl.reciprocal(jnp.sum(e, axis=-1, keepdims=True), approx=True)

    # head-batched context: one dot_general for all heads
    ctx = jnp.einsum('hts,hsd->htd', p.astype(jnp.bfloat16), v,
                     preferred_element_type=jnp.float32)      # (nh, T, dh)
    att = jnp.concatenate([ctx[h] for h in range(nh)], axis=-1)   # (T, H)
    att = att * qmask_ref[...]                                # zero padded query rows
                                                              # (== p*qmask in torch)

    y = _layer_norm(att + x, g1_ref[...], be1_ref[...])       # residual + LN

    # --- position-wise FFN: H -> 4H -> H (Conv1d k=1 == Linear), residual + LN ---
    # TODO(synk): at production H (>=1024) K-tile the 4H hidden dim over a grid
    #             axis with a VMEM accumulator so wf1/wf2 fit v7x's 64 MiB VMEM.
    f = jnp.dot(y.astype(jnp.bfloat16), wf1_ref[...],
                preferred_element_type=jnp.float32) + bf1_ref[...]
    f = jnp.maximum(f, 0.0)
    f = jnp.dot(f.astype(jnp.bfloat16), wf2_ref[...],
                preferred_element_type=jnp.float32) + bf2_ref[...]
    o_ref[...] = _layer_norm(f + y, g2_ref[...], be2_ref[...]).astype(o_ref.dtype)


def encoder_block(x, key_mask, q_mask, graph, p, num_heads):
    B, T, H = x.shape
    kernel = functools.partial(_encoder_block_kernel, num_heads)
    return pl.pallas_call(
        kernel,
        out_shape=jax.ShapeDtypeStruct((B, T, H), jnp.float32),
        grid=(B,),
        in_specs=[
            pl.BlockSpec((None, T, H), lambda b: (b, 0, 0)),     # x        (per batch)
            pl.BlockSpec((None, 1, T), lambda b: (b, 0, 0)),     # key mask (per batch)
            pl.BlockSpec((None, T, 1), lambda b: (b, 0, 0)),     # query mask
            pl.BlockSpec((None, T, T), lambda b: (b, 0, 0)),     # graph mask
            pl.BlockSpec((H, 3 * H), lambda b: (0, 0)),          # fused QKV weight
            pl.BlockSpec((1, 3 * H), lambda b: (0, 0)),          # fused QKV bias
            pl.BlockSpec((1, H), lambda b: (0, 0)),              # LN1 gamma
            pl.BlockSpec((1, H), lambda b: (0, 0)),              # LN1 beta
            pl.BlockSpec((H, 4 * H), lambda b: (0, 0)),          # FFN W1
            pl.BlockSpec((1, 4 * H), lambda b: (0, 0)),          # FFN b1
            pl.BlockSpec((4 * H, H), lambda b: (0, 0)),          # FFN W2
            pl.BlockSpec((1, H), lambda b: (0, 0)),              # FFN b2
            pl.BlockSpec((1, H), lambda b: (0, 0)),              # LN2 gamma
            pl.BlockSpec((1, H), lambda b: (0, 0)),              # LN2 beta
        ],
        out_specs=pl.BlockSpec((None, T, H), lambda b: (b, 0, 0)),
        compiler_params=pltpu.CompilerParams(
            dimension_semantics=("parallel",),      # megacore: shard batch over TCs
            vmem_limit_bytes=VMEM_LIMIT),
    )(x, key_mask, q_mask, graph,
      p['wqkv'], p['bqkv'],
      p['g1'], p['be1'],
      p['wf1'], p['bf1'], p['wf2'], p['bf2'],
      p['g2'], p['be2'])


# ----------------------------------------------------------------------------
# Full forward (glue in plain JAX: embedding gather, reshapes, block loop)
# ----------------------------------------------------------------------------
def att_model_forward(syb_ipt, syb_mask, syb_graph, params, num_blocks, num_heads):
    B, T = syb_ipt.shape
    H = params['pos_table'].shape[1]
    # embedding gather stays in JAX glue (tiny synthetic table).
    # TODO(synk): at the full 401000-word vocab fuse the gather via
    #             PrefetchScalarGridSpec + pl.Element row-gather on token ids.
    emb = params['emb_table'][syb_ipt].reshape(B * T, EMB_DIM)
    # positional embedding broadcast to (B*T, H); the add itself is fused into
    # the MLP kernel epilogue (no extra HBM round trip of the feature tensor).
    pos = jnp.broadcast_to(params['pos_table'][:T][None], (B, T, H)).reshape(B * T, H)
    x = syb_mlp_pos(emb, params['mlp_w1'], params['mlp_b1'],
                    params['mlp_w2'], params['mlp_b2'], pos).reshape(B, T, H)
    key_mask = syb_mask[:, None, :]   # (B, 1, T): 1 = valid key, 0 = pad
    q_mask = syb_mask[:, :, None]     # (B, T, 1): zero padded query rows
    for i in range(num_blocks):
        x = encoder_block(x, key_mask, q_mask, syb_graph,
                          params['blocks'][i], num_heads)
    return x


# ----------------------------------------------------------------------------
# Deterministic parameter init (matmul weights stored bf16, fused QKV)
# ----------------------------------------------------------------------------
def init_params(key, vocab, hidden, maxlen, num_blocks):
    keys = jax.random.split(key, 4 + num_blocks)

    def dense(kk, fi, fo):
        w = jax.random.normal(kk, (fi, fo), jnp.float32) * jnp.sqrt(2.0 / (fi + fo))
        b = jnp.zeros((1, fo), jnp.float32)
        return w, b

    params = {
        'emb_table': jax.random.normal(keys[0], (vocab, EMB_DIM), jnp.float32) * 0.1,
        'pos_table': jax.random.normal(keys[3], (maxlen, hidden), jnp.float32) * 0.02,
    }
    w1, b1 = dense(keys[1], EMB_DIM, MLP_HID)
    w2, b2 = dense(keys[2], MLP_HID, hidden)
    params['mlp_w1'], params['mlp_b1'] = w1.astype(jnp.bfloat16), b1
    params['mlp_w2'], params['mlp_b2'] = w2.astype(jnp.bfloat16), b2

    blocks = []
    for i in range(num_blocks):
        bk = jax.random.split(keys[4 + i], 5)
        wq, bq = dense(bk[0], hidden, hidden)
        wk, bkb = dense(bk[1], hidden, hidden)
        wv, bv = dense(bk[2], hidden, hidden)
        wf1, bf1 = dense(bk[3], hidden, 4 * hidden)
        wf2, bf2 = dense(bk[4], 4 * hidden, hidden)
        blocks.append(dict(
            # fused Q/K/V weight -> one [H,3H] matmul (identical math to 3 Linears)
            wqkv=jnp.concatenate([wq, wk, wv], axis=1).astype(jnp.bfloat16),
            bqkv=jnp.concatenate([bq, bkb, bv], axis=1),
            g1=jnp.ones((1, hidden), jnp.float32),
            be1=jnp.zeros((1, hidden), jnp.float32),
            wf1=wf1.astype(jnp.bfloat16), bf1=bf1,
            wf2=wf2.astype(jnp.bfloat16), bf2=bf2,
            g2=jnp.ones((1, hidden), jnp.float32),
            be2=jnp.zeros((1, hidden), jnp.float32)))
    params['blocks'] = blocks
    return params


if __name__ == "__main__":
    B, T, H = 2, 8, 32          # batch, maxlen, hidden_size
    NUM_BLOCKS, NUM_HEADS = 2, 4
    VOCAB = 1000

    key = jax.random.PRNGKey(0)
    pkey, ikey, gkey = jax.random.split(key, 3)

    params = init_params(pkey, VOCAB, H, T, NUM_BLOCKS)

    syb_ipt = jax.random.randint(ikey, (B, T), 0, VOCAB)                      # token ids
    lens = jnp.array([8, 5])
    syb_mask = (jnp.arange(T)[None, :] < lens[:, None]).astype(jnp.float32)   # (B, T)
    syb_graph = (jax.random.uniform(gkey, (B, T, T)) > 0.3).astype(jnp.float32)
    # make the graph reflexive so no query row is fully disconnected
    syb_graph = jnp.maximum(syb_graph, jnp.eye(T, dtype=jnp.float32)[None])

    out = att_model_forward(syb_ipt, syb_mask, syb_graph, params,
                            NUM_BLOCKS, NUM_HEADS)
    jax.block_until_ready(out)
    assert out.shape == (B, T, H)
    print("KERNEL_OK")
</pallas_src>

<mosaic_0001>
module attributes {stable_mosaic.version = 11 : i64} {
  func.func @_mlp_pos_kernel(%arg0: i32, %arg1: memref<16x300xf32, #tpu.memory_space<vmem>>, %arg2: memref<300x2048xbf16, #tpu.memory_space<vmem>>, %arg3: memref<1x2048xf32, #tpu.memory_space<vmem>>, %arg4: memref<2048x32xbf16, #tpu.memory_space<vmem>>, %arg5: memref<1x32xf32, #tpu.memory_space<vmem>>, %arg6: memref<16x32xf32, #tpu.memory_space<vmem>>, %arg7: memref<16x32xf32, #tpu.memory_space<vmem>>) attributes {dimension_semantics = [#tpu.dimension_semantics<parallel>], iteration_bounds = array<i64: 1>, scalar_prefetch = 0 : i64, scratch_operands = 0 : i64, tpu.core_type = #tpu.core_type<tc>, window_params = [{transform_indices = @transform_0, window_bounds = array<i64: 16, 300>}, {pipeline_mode = #tpu.pipeline_mode<synchronous>, transform_indices = @transform_1, window_bounds = array<i64: 300, 2048>}, {pipeline_mode = #tpu.pipeline_mode<synchronous>, transform_indices = @transform_2, window_bounds = array<i64: 1, 2048>}, {pipeline_mode = #tpu.pipeline_mode<synchronous>, transform_indices = @transform_3, window_bounds = array<i64: 2048, 32>}, {pipeline_mode = #tpu.pipeline_mode<synchronous>, transform_indices = @transform_4, window_bounds = array<i64: 1, 32>}, {transform_indices = @transform_5, window_bounds = array<i64: 16, 32>}, {transform_indices = @transform_6, window_bounds = array<i64: 16, 32>}]} {
    %c0 = arith.constant 0 : index
    %c0_0 = arith.constant 0 : index
    %0 = vector.load %arg1[%c0, %c0_0] : memref<16x300xf32, #tpu.memory_space<vmem>>, vector<16x300xf32>
    %1 = arith.truncf %0 : vector<16x300xf32> to vector<16x300xbf16>
    %c0_1 = arith.constant 0 : index
    %c0_2 = arith.constant 0 : index
    %2 = vector.load %arg2[%c0_1, %c0_2] : memref<300x2048xbf16, #tpu.memory_space<vmem>>, vector<300x2048xbf16>
    %cst = arith.constant dense<0.000000e+00> : vector<16x2048xf32>
    %3 = tpu.matmul %1, %2, %cst {dimension_numbers = #tpu.dot_dimension_numbers<[1], [0], [0], [1], [0, 0, 1, 1], [], []>} : vector<16x300xbf16>, vector<300x2048xbf16>, vector<16x2048xf32> -> vector<16x2048xf32>
    %c0_3 = arith.constant 0 : index
    %c0_4 = arith.constant 0 : index
    %4 = vector.load %arg3[%c0_3, %c0_4] : memref<1x2048xf32, #tpu.memory_space<vmem>>, vector<1x2048xf32>
    %5 = vector.broadcast %4 : vector<1x2048xf32> to vector<16x2048xf32>
    %6 = arith.addf %3, %5 : vector<16x2048xf32>
    %cst_5 = arith.constant 0.000000e+00 : f32
    %7 = vector.broadcast %cst_5 : f32 to vector<16x2048xf32>
    %8 = arith.maximumf %6, %7 : vector<16x2048xf32>
    %9 = arith.truncf %8 : vector<16x2048xf32> to vector<16x2048xbf16>
    %c0_6 = arith.constant 0 : index
    %c0_7 = arith.constant 0 : index
    %10 = vector.load %arg4[%c0_6, %c0_7] : memref<2048x32xbf16, #tpu.memory_space<vmem>>, vector<2048x32xbf16>
    %cst_8 = arith.constant dense<0.000000e+00> : vector<16x32xf32>
    %11 = tpu.matmul %9, %10, %cst_8 {dimension_numbers = #tpu.dot_dimension_numbers<[1], [0], [0], [1], [0, 0, 1, 1], [], []>} : vector<16x2048xbf16>, vector<2048x32xbf16>, vector<16x32xf32> -> vector<16x32xf32>
    %c0_9 = arith.constant 0 : index
    %c0_10 = arith.constant 0 : index
    %12 = vector.load %arg5[%c0_9, %c0_10] : memref<1x32xf32, #tpu.memory_space<vmem>>, vector<1x32xf32>
    %13 = vector.broadcast %12 : vector<1x32xf32> to vector<16x32xf32>
    %14 = arith.addf %11, %13 : vector<16x32xf32>
    %c0_11 = arith.constant 0 : index
    %c0_12 = arith.constant 0 : index
    %15 = vector.load %arg6[%c0_11, %c0_12] : memref<16x32xf32, #tpu.memory_space<vmem>>, vector<16x32xf32>
    %16 = arith.addf %14, %15 : vector<16x32xf32>
    %c0_13 = arith.constant 0 : index
    %c0_14 = arith.constant 0 : index
    %17 = vector.load %arg7[%c0_13, %c0_14] : memref<16x32xf32, #tpu.memory_space<vmem>>, vector<16x32xf32>
    tpu.vector_store %arg7[%c0_13, %c0_14], %16 {strides = array<i32>} : memref<16x32xf32, #tpu.memory_space<vmem>>, vector<16x32xf32>,
    return
  }
  func.func @transform_0(%arg0: i32) -> (i32, i32) {
    %c0_i32 = arith.constant 0 : i32
    %c0_i32_0 = arith.constant 0 : i32
    return %arg0, %c0_i32 : i32, i32
  }
  func.func @transform_1(%arg0: i32) -> (i32, i32) {
    %c0_i32 = arith.constant 0 : i32
    %c0_i32_0 = arith.constant 0 : i32
    %c0_i32_1 = arith.constant 0 : i32
    return %c0_i32, %c0_i32_0 : i32, i32
  }
  func.func @transform_2(%arg0: i32) -> (i32, i32) {
    %c0_i32 = arith.constant 0 : i32
    %c0_i32_0 = arith.constant 0 : i32
    %c0_i32_1 = arith.constant 0 : i32
    return %c0_i32, %c0_i32_0 : i32, i32
  }
  func.func @transform_3(%arg0: i32) -> (i32, i32) {
    %c0_i32 = arith.constant 0 : i32
    %c0_i32_0 = arith.constant 0 : i32
    %c0_i32_1 = arith.constant 0 : i32
    return %c0_i32, %c0_i32_0 : i32, i32
  }
  func.func @transform_4(%arg0: i32) -> (i32, i32) {
    %c0_i32 = arith.constant 0 : i32
    %c0_i32_0 = arith.constant 0 : i32
    %c0_i32_1 = arith.constant 0 : i32
    return %c0_i32, %c0_i32_0 : i32, i32
  }
  func.func @transform_5(%arg0: i32) -> (i32, i32) {
    %c0_i32 = arith.constant 0 : i32
    %c0_i32_0 = arith.constant 0 : i32
    return %arg0, %c0_i32 : i32, i32
  }
  func.func @transform_6(%arg0: i32) -> (i32, i32) {
    %c0_i32 = arith.constant 0 : i32
    %c0_i32_0 = arith.constant 0 : i32
    return %arg0, %c0_i32 : i32, i32
  }
}

</mosaic_0001>

<llo_original>
// kernel: tpu_custom_call.1
$region0: #{tpu_custom_call.1}
  #allocation0 [shape = 'u32[]', space=smem, size = 0x4, offset = 0x4, fixed_abs, tag = 'smem constant byte address 0x4 - core index']
  #allocation1 [shape = 'u32[144,128]{1,0:T(1,128)}', space=vmem, size = 0x12000, scoped, tag = 'internal scratch']
  %s0 = inlined_call_operand.hbm [shape: f32[16,300], index: 0, kind: input, shape index: {}]
  %s1 = inlined_call_operand.hbm [shape: bf16[300,2048], index: 1, kind: input, shape index: {}]
  %s2 = inlined_call_operand.hbm [shape: f32[1,2048], index: 2, kind: input, shape index: {}]
  %s3 = inlined_call_operand.vmem [shape: bf16[2048,32], index: 3, kind: input, shape index: {}]
  %s4 = inlined_call_operand.hbm [shape: f32[1,32], index: 4, kind: input, shape index: {}]
  %s5 = inlined_call_operand.hbm [shape: f32[16,32], index: 5, kind: input, shape index: {}]
  %s6 = inlined_call_operand.hbm [shape: f32[16,32], index: 6, kind: output, shape index: {}]
  %s7 = sld [smem:[#allocation0]]
  $region54: #{tpu_custom_call.1} parent=0
    _
  %s9 = ssub.s32 1, %s7
  %s10 = scalar_select 0, %s9, %s7
  $region1: #{tpu_custom_call.1} parent=0
    #allocation2 [shape = 'u8[24576]{0}', space=vmem, size = 0x6000, scoped, tag = 'input window, operand 0, single buffered']
    #allocation3 [shape = 's32[1]{0}', space=sflag, size = 0x4, scoped, tag = 'scoped memory for tpu_custom_call.1']
    #allocation4 [shape = 's32[1]{0}', space=sflag, size = 0x4, scoped, tag = 'scoped memory for tpu_custom_call.1']
    #allocation5 [shape = 'u8[1245184]{0}', space=vmem, size = 0x130000, scoped, tag = 'input window, operand 1, single buffered']
    #allocation6 [shape = 's32[1]{0}', space=sflag, size = 0x4, scoped, tag = 'scoped memory for tpu_custom_call.1']
    #allocation7 [shape = 'u8[8192]{0}', space=vmem, size = 0x2000, scoped, tag = 'input window, operand 2, single buffered']
    #allocation8 [shape = 'u8[512]{0}', space=vmem, size = 0x400, scoped, tag = 'input window, operand 4, single buffered']
    #allocation9 [shape = 's32[1]{0}', space=sflag, size = 0x4, scoped, tag = 'scoped memory for tpu_custom_call.1']
    #allocation10 [shape = 'u8[8192]{0}', space=vmem, size = 0x2000, scoped, tag = 'input window, operand 5, single buffered']
    #allocation11 [shape = 'u8[8192]{0}', space=vmem, size = 0x2000, scoped, tag = 'output window, operand 0, single buffered']
    %11 = vsyncpa [#allocation3], 0
    %12 = vsyncpa [#allocation6], 0
    %13 = vsyncpa [#allocation9], 0
    %14 = vsyncpa [#allocation4], 0
    // Predicated region
    $region2: #{tpu_custom_call.1} parent=1 // pred_check
      _
    $region3: #{tpu_custom_call.1} parent=1 // pred_check_branch
      %16 = sbr.rel (0) target = $region5
    $region4: #{tpu_custom_call.1} parent=1 // pred_region
      %s18 = ssub.s32 768, 768
      %19 = vsyncadd [#allocation3], %s18
      %s20 = sshll.u32 [#allocation2], 4
      %s21 = int_to_ptr.vmem [resolvable:$true] %s20
      %26 = dma.hbm_to_vmem [thread:$0]  %s0, 768, %s21, [#allocation3], 384, 384, 24
    $region5: #{tpu_custom_call.1} parent=1 // pred_fallthru
      _
    // Predicated region
    $region6: #{tpu_custom_call.1} parent=1 // pred_check
      _
    $region7: #{tpu_custom_call.1} parent=1 // pred_check_branch
      %28 = sbr.rel (0) target = $region9
    $region8: #{tpu_custom_call.1} parent=1 // pred_region
      %s30 = ssub.s32 38912, 38912
      %31 = vsyncadd [#allocation6], %s30
      %s32 = sshll.u32 [#allocation5], 4
      %s33 = int_to_ptr.vmem [resolvable:$true] %s32
      %38 = dma.hbm_to_vmem [thread:$0]  %s1, 38912, %s33, [#allocation6], 1024, 1024, 64
    $region9: #{tpu_custom_call.1} parent=1 // pred_fallthru
      _
    // Predicated region
    $region10: #{tpu_custom_call.1} parent=1 // pred_check
      _
    $region11: #{tpu_custom_call.1} parent=1 // pred_check_branch
      %40 = sbr.rel (0) target = $region13
    $region12: #{tpu_custom_call.1} parent=1 // pred_region
      %s42 = ssub.s32 256, 256
      %43 = vsyncadd [#allocation6], %s42
      %s45 = sshll.u32 [#allocation7], 4
      %s46 = int_to_ptr.vmem [resolvable:$true] %s45
      %48 = dma.hbm_to_vmem [thread:$0]  %s2, 256, %s46, [#allocation6]
    $region13: #{tpu_custom_call.1} parent=1 // pred_fallthru
      _
    // Predicated region
    $region14: #{tpu_custom_call.1} parent=1 // pred_check
      _
    $region15: #{tpu_custom_call.1} parent=1 // pred_check_branch
      %50 = sbr.rel (0) target = $region17
    $region16: #{tpu_custom_call.1} parent=1 // pred_region
      _
    $region17: #{tpu_custom_call.1} parent=1 // pred_fallthru
      _
    // Predicated region
    $region18: #{tpu_custom_call.1} parent=1 // pred_check
      _
    $region19: #{tpu_custom_call.1} parent=1 // pred_check_branch
      %52 = sbr.rel (0) target = $region21
    $region20: #{tpu_custom_call.1} parent=1 // pred_region
      %s54 = ssub.s32 16, 16
      %55 = vsyncadd [#allocation9], %s54
      %s57 = sshll.u32 [#allocation8], 4
      %s58 = int_to_ptr.vmem [resolvable:$true] %s57
      %60 = dma.hbm_to_vmem [thread:$0]  %s4, 16, %s58, [#allocation9]
    $region21: #{tpu_custom_call.1} parent=1 // pred_fallthru
      _
    // Predicated region
    $region22: #{tpu_custom_call.1} parent=1 // pred_check
      _
    $region23: #{tpu_custom_call.1} parent=1 // pred_check_branch
      %62 = sbr.rel (0) target = $region25
    $region24: #{tpu_custom_call.1} parent=1 // pred_region
      %s64 = ssub.s32 256, 256
      %65 = vsyncadd [#allocation9], %s64
      %s66 = sshll.u32 [#allocation10], 4
      %s67 = int_to_ptr.vmem [resolvable:$true] %s66
      %72 = dma.hbm_to_vmem [thread:$0]  %s5, 256, %s67, [#allocation9], 128, 128, 8
    $region25: #{tpu_custom_call.1} parent=1 // pred_fallthru
      _
    // Predicated region
    $region26: #{tpu_custom_call.1} parent=1 // pred_check
      _
    $region27: #{tpu_custom_call.1} parent=1 // pred_check_branch
      %74 = sbr.rel (0) target = $region29
    $region28: #{tpu_custom_call.1} parent=1 // pred_region
      %75 = dma.done [#allocation3], 768
    $region29: #{tpu_custom_call.1} parent=1 // pred_fallthru
      _
    // Predicated region
    $region30: #{tpu_custom_call.1} parent=1 // pred_check
      _
    $region31: #{tpu_custom_call.1} parent=1 // pred_check_branch
      %77 = sbr.rel (0) target = $region33
    $region32: #{tpu_custom_call.1} parent=1 // pred_region
      %78 = dma.done [#allocation6], 38912
    $region33: #{tpu_custom_call.1} parent=1 // pred_fallthru
      _
    // Predicated region
    $region34: #{tpu_custom_call.1} parent=1 // pred_check
      _
    $region35: #{tpu_custom_call.1} parent=1 // pred_check_branch
      %80 = sbr.rel (0) target = $region37
    $region36: #{tpu_custom_call.1} parent=1 // pred_region
      %81 = dma.done [#allocation6], 256
    $region37: #{tpu_custom_call.1} parent=1 // pred_fallthru
      _
    // Predicated region
    $region38: #{tpu_custom_call.1} parent=1 // pred_check
      _
    $region39: #{tpu_custom_call.1} parent=1 // pred_check_branch
      %83 = sbr.rel (0) target = $region41
    $region40: #{tpu_custom_call.1} parent=1 // pred_region
      %84 = dma.done [#allocation9], 16
    $region41: #{tpu_custom_call.1} parent=1 // pred_fallthru
      _
    // Predicated region
    $region42: #{tpu_custom_call.1} parent=1 // pred_check
      _
    $region43: #{tpu_custom_call.1} parent=1 // pred_check_branch
      %86 = sbr.rel (0) target = $region45
    $region44: #{tpu_custom_call.1} parent=1 // pred_region
      %87 = dma.done [#allocation9], 256
    $region45: #{tpu_custom_call.1} parent=1 // pred_fallthru
      _
    %v89 = vld [vmem:[#allocation2] sm:$0xff]
    %v90 = vld [vmem:[#allocation2 + $0x8] sm:$0xff]
    %v91 = vld [vmem:[#allocation2 + $0x10] sm:$0xff]
    %v92 = vld [vmem:[#allocation2 + $0x18] sm:$0xff]
    %v93 = vld [vmem:[#allocation2 + $0x20] sm:$0xff]
    %v94 = vld [vmem:[#allocation2 + $0x28] sm:$0xff]
    %v95 = vpack.c.bf16 %v92, %v89
    %v96 = vpack.c.bf16 %v93, %v90
    %v97 = vpack.c.bf16 %v94, %v91
    %v98 = vld [vmem:[#allocation5] sm:$0xff]
    %v99 = vld [vmem:[#allocation5 + $0x8] sm:$0xff]
    %v100 = vld [vmem:[#allocation5 + $0x10] sm:$0xff]
    %v101 = vld [vmem:[#allocation5 + $0x18] sm:$0xff]
    %v102 = vld [vmem:[#allocation5 + $0x20] sm:$0xff]
    %v103 = vld [vmem:[#allocation5 + $0x28] sm:$0xff]
    %v104 = vld [vmem:[#allocation5 + $0x30] sm:$0xff]
    %v105 = vld [vmem:[#allocation5 + $0x38] sm:$0xff]
    %v106 = vld [vmem:[#allocation5 + $0x40] sm:$0xff]
    %v107 = vld [vmem:[#allocation5 + $0x48] sm:$0xff]
    %v108 = vld [vmem:[#allocation5 + $0x50] sm:$0xff]
    %v109 = vld [vmem:[#allocation5 + $0x58] sm:$0xff]
    %v110 = vld [vmem:[#allocation5 + $0x60] sm:$0xff]
    %v111 = vld [vmem:[#allocation5 + $0x68] sm:$0xff]
    %v112 = vld [vmem:[#allocation5 + $0x70] sm:$0xff]
    %v113 = vld [vmem:[#allocation5 + $0x78] sm:$0xff]
    %v114 = vld [vmem:[#allocation5 + $0x80] sm:$0xff]
    %v115 = vld [vmem:[#allocation5 + $0x88] sm:$0xff]
    %v116 = vld [vmem:[#allocation5 + $0x90] sm:$0xff]
    %v117 = vld [vmem:[#allocation5 + $0x98] sm:$0xff]
    %v118 = vld [vmem:[#allocation5 + $0xa0] sm:$0xff]
    %v119 = vld [vmem:[#allocation5 + $0xa8] sm:$0xff]
    %v120 = vld [vmem:[#allocation5 + $0xb0] sm:$0xff]
    %v121 = vld [vmem:[#allocation5 + $0xb8] sm:$0xff]
    %v122 = vld [vmem:[#allocation5 + $0xc0] sm:$0xff]
    %v123 = vld [vmem:[#allocation5 + $0xc8] sm:$0xff]
    %v124 = vld [vmem:[#allocation5 + $0xd0] sm:$0xff]
    %v125 = vld [vmem:[#allocation5 + $0xd8] sm:$0xff]
    %v126 = vld [vmem:[#allocation5 + $0xe0] sm:$0xff]
    %v127 = vld [vmem:[#allocation5 + $0xe8] sm:$0xff]
    %v128 = vld [vmem:[#allocation5 + $0xf0] sm:$0xff]
    %v129 = vld [vmem:[#allocation5 + $0xf8] sm:$0xff]
    %v130 = vld [vmem:[#allocation5 + $0x100] sm:$0xff]
    %v131 = vld [vmem:[#allocation5 + $0x108] sm:$0xff]
    %v132 = vld [vmem:[#allocation5 + $0x110] sm:$0xff]
    %v133 = vld [vmem:[#allocation5 + $0x118] sm:$0xff]
    %v134 = vld [vmem:[#allocation5 + $0x120] sm:$0xff]
    %v135 = vld [vmem:[#allocation5 + $0x128] sm:$0xff]
    %v136 = vld [vmem:[#allocation5 + $0x130] sm:$0xff]
    %v137 = vld [vmem:[#allocation5 + $0x138] sm:$0xff]
    %v138 = vld [vmem:[#allocation5 + $0x140] sm:$0xff]
    %v139 = vld [vmem:[#allocation5 + $0x148] sm:$0xff]
    %v140 = vld [vmem:[#allocation5 + $0x150] sm:$0xff]
    %v141 = vld [vmem:[#allocation5 + $0x158] sm:$0xff]
    %v142 = vld [vmem:[#allocation5 + $0x160] sm:$0xff]
    %v143 = vld [vmem:[#allocation5 + $0x168] sm:$0xff]
    %v144 = vld [vmem:[#allocation5 + $0x170] sm:$0xff]
    %v145 = vld [vmem:[#allocation5 + $0x178] sm:$0xff]
    %v146 = vld [vmem:[#allocation5 + $0x180] sm:$0xff]
    %v147 = vld [vmem:[#allocation5 + $0x188] sm:$0xff]
    %v148 = vld [vmem:[#allocation5 + $0x190] sm:$0xff]
    %v149 = vld [vmem:[#allocation5 + $0x198] sm:$0xff]
    %v150 = vld [vmem:[#allocation5 + $0x1a0] sm:$0xff]
    %v151 = vld [vmem:[#allocation5 + $0x1a8] sm:$0xff]
    %v152 = vld [vmem:[#allocation5 + $0x1b0] sm:$0xff]
    %v153 = vld [vmem:[#allocation5 + $0x1b8] sm:$0xff]
    %v154 = vld [vmem:[#allocation5 + $0x1c0] sm:$0xff]
    %v155 = vld [vmem:[#allocation5 + $0x1c8] sm:$0xff]
    %v156 = vld [vmem:[#allocation5 + $0x1d0] sm:$0xff]
    %v157 = vld [vmem:[#allocation5 + $0x1d8] sm:$0xff]
    %v158 = vld [vmem:[#allocation5 + $0x1e0] sm:$0xff]
    %v159 = vld [vmem:[#allocation5 + $0x1e8] sm:$0xff]
    %v160 = vld [vmem:[#allocation5 + $0x1f0] sm:$0xff]
    %v161 = vld [vmem:[#allocation5 + $0x1f8] sm:$0xff]
    %v162 = vld [vmem:[#allocation5 + $0x200] sm:$0xff]
    %v163 = vld [vmem:[#allocation5 + $0x208] sm:$0xff]
    %v164 = vld [vmem:[#allocation5 + $0x210] sm:$0xff]
    %v165 = vld [vmem:[#allocation5 + $0x218] sm:$0xff]
    %v166 = vld [vmem:[#allocation5 + $0x220] sm:$0xff]
    %v167 = vld [vmem:[#allocation5 + $0x228] sm:$0xff]
    %v168 = vld [vmem:[#allocation5 + $0x230] sm:$0xff]
    %v169 = vld [vmem:[#allocation5 + $0x238] sm:$0xff]
    %v170 = vld [vmem:[#allocation5 + $0x240] sm:$0xff]
    %v171 = vld [vmem:[#allocation5 + $0x248] sm:$0xff]
    %v172 = vld [vmem:[#allocation5 + $0x250] sm:$0xff]
    %v173 = vld [vmem:[#allocation5 + $0x258] sm:$0xff]
    %v174 = vld [vmem:[#allocation5 + $0x260] sm:$0xff]
    %v175 = vld [vmem:[#allocation5 + $0x268] sm:$0xff]
    %v176 = vld [vmem:[#allocation5 + $0x270] sm:$0xff]
    %v177 = vld [vmem:[#allocation5 + $0x278] sm:$0xff]
    %v178 = vld [vmem:[#allocation5 + $0x280] sm:$0xff]
    %v179 = vld [vmem:[#allocation5 + $0x288] sm:$0xff]
    %v180 = vld [vmem:[#allocation5 + $0x290] sm:$0xff]
    %v181 = vld [vmem:[#allocation5 + $0x298] sm:$0xff]
    %v182 = vld [vmem:[#allocation5 + $0x2a0] sm:$0xff]
    %v183 = vld [vmem:[#allocation5 + $0x2a8] sm:$0xff]
    %v184 = vld [vmem:[#allocation5 + $0x2b0] sm:$0xff]
    %v185 = vld [vmem:[#allocation5 + $0x2b8] sm:$0xff]
    %v186 = vld [vmem:[#allocation5 + $0x2c0] sm:$0xff]
    %v187 = vld [vmem:[#allocation5 + $0x2c8] sm:$0xff]
    %v188 = vld [vmem:[#allocation5 + $0x2d0] sm:$0xff]
    %v189 = vld [vmem:[#allocation5 + $0x2d8] sm:$0xff]
    %v190 = vld [vmem:[#allocation5 + $0x2e0] sm:$0xff]
    %v191 = vld [vmem:[#allocation5 + $0x2e8] sm:$0xff]
    %v192 = vld [vmem:[#allocation5 + $0x2f0] sm:$0xff]
    %v193 = vld [vmem:[#allocation5 + $0x2f8] sm:$0xff]
    %v194 = vld [vmem:[#allocation5 + $0x300] sm:$0xff]
    %v195 = vld [vmem:[#allocation5 + $0x308] sm:$0xff]
    %v196 = vld [vmem:[#allocation5 + $0x310] sm:$0xff]
    %v197 = vld [vmem:[#allocation5 + $0x318] sm:$0xff]
    %v198 = vld [vmem:[#allocation5 + $0x320] sm:$0xff]
    %v199 = vld [vmem:[#allocation5 + $0x328] sm:$0xff]
    %v200 = vld [vmem:[#allocation5 + $0x330] sm:$0xff]
    %v201 = vld [vmem:[#allocation5 + $0x338] sm:$0xff]
    %v202 = vld [vmem:[#allocation5 + $0x340] sm:$0xff]
    %v203 = vld [vmem:[#allocation5 + $0x348] sm:$0xff]
    %v204 = vld [vmem:[#allocation5 + $0x350] sm:$0xff]
    %v205 = vld [vmem:[#allocation5 + $0x358] sm:$0xff]
    %v206 = vld [vmem:[#allocation5 + $0x360] sm:$0xff]
    %v207 = vld [vmem:[#allocation5 + $0x368] sm:$0xff]
    %v208 = vld [vmem:[#allocation5 + $0x370] sm:$0xff]
    %v209 = vld [vmem:[#allocation5 + $0x378] sm:$0xff]
    %v210 = vld [vmem:[#allocation5 + $0x380] sm:$0xff]
    %v211 = vld [vmem:[#allocation5 + $0x388] sm:$0xff]
    %v212 = vld [vmem:[#allocation5 + $0x390] sm:$0xff]
    %v213 = vld [vmem:[#allocation5 + $0x398] sm:$0xff]
    %v214 = vld [vmem:[#allocation5 + $0x3a0] sm:$0xff]
    %v215 = vld [vmem:[#allocation5 + $0x3a8] sm:$0xff]
    %v216 = vld [vmem:[#allocation5 + $0x3b0] sm:$0xff]
    %v217 = vld [vmem:[#allocation5 + $0x3b8] sm:$0xff]
    %v218 = vld [vmem:[#allocation5 + $0x3c0] sm:$0xff]
    %v219 = vld [vmem:[#allocation5 + $0x3c8] sm:$0xff]
    %v220 = vld [vmem:[#allocation5 + $0x3d0] sm:$0xff]
    %v221 = vld [vmem:[#allocation5 + $0x3d8] sm:$0xff]
    %v222 = vld [vmem:[#allocation5 + $0x3e0] sm:$0xff]
    %v223 = vld [vmem:[#allocation5 + $0x3e8] sm:$0xff]
    %v224 = vld [vmem:[#allocation5 + $0x3f0] sm:$0xff]
    %v225 = vld [vmem:[#allocation5 + $0x3f8] sm:$0xff]
    %v226 = vld [vmem:[#allocation5 + $0x400] sm:$0xff]
    %v227 = vld [vmem:[#allocation5 + $0x408] sm:$0xff]
    %v228 = vld [vmem:[#allocation5 + $0x410] sm:$0xff]
    %v229 = vld [vmem:[#allocation5 + $0x418] sm:$0xff]
    %v230 = vld [vmem:[#allocation5 + $0x420] sm:$0xff]
    %v231 = vld [vmem:[#allocation5 + $0x428] sm:$0xff]
    %v232 = vld [vmem:[#allocation5 + $0x430] sm:$0xff]
    %v233 = vld [vmem:[#allocation5 + $0x438] sm:$0xff]
    %v234 = vld [vmem:[#allocation5 + $0x440] sm:$0xff]
    %v235 = vld [vmem:[#allocation5 + $0x448] sm:$0xff]
    %v236 = vld [vmem:[#allocation5 + $0x450] sm:$0xff]
    %v237 = vld [vmem:[#allocation5 + $0x458] sm:$0xff]
    %v238 = vld [vmem:[#allocation5 + $0x460] sm:$0xff]
    %v239 = vld [vmem:[#allocation5 + $0x468] sm:$0xff]
    %v240 = vld [vmem:[#allocation5 + $0x470] sm:$0xff]
    %v241 = vld [vmem:[#allocation5 + $0x478] sm:$0xff]
    %v242 = vld [vmem:[#allocation5 + $0x480] sm:$0xff]
    %v243 = vld [vmem:[#allocation5 + $0x488] sm:$0xff]
    %v244 = vld [vmem:[#allocation5 + $0x490] sm:$0xff]
    %v245 = vld [vmem:[#allocation5 + $0x498] sm:$0xff]
    %v246 = vld [vmem:[#allocation5 + $0x4a0] sm:$0xff]
    %v247 = vld [vmem:[#allocation5 + $0x4a8] sm:$0xff]
    %v248 = vld [vmem:[#allocation5 + $0x4b0] sm:$0xff]
    %v249 = vld [vmem:[#allocation5 + $0x4b8] sm:$0xff]
    %v250 = vld [vmem:[#allocation5 + $0x4c0] sm:$0xff]
    %v251 = vld [vmem:[#allocation5 + $0x4c8] sm:$0xff]
    %v252 = vld [vmem:[#allocation5 + $0x4d0] sm:$0xff]
    %v253 = vld [vmem:[#allocation5 + $0x4d8] sm:$0xff]
    %v254 = vld [vmem:[#allocation5 + $0x4e0] sm:$0xff]
    %v255 = vld [vmem:[#allocation5 + $0x4e8] sm:$0xff]
    %v256 = vld [vmem:[#allocation5 + $0x4f0] sm:$0xff]
    %v257 = vld [vmem:[#allocation5 + $0x4f8] sm:$0xff]
    %v258 = vld [vmem:[#allocation5 + $0x500] sm:$0xff]
    %v259 = vld [vmem:[#allocation5 + $0x508] sm:$0xff]
    %v260 = vld [vmem:[#allocation5 + $0x510] sm:$0xff]
    %v261 = vld [vmem:[#allocation5 + $0x518] sm:$0xff]
    %v262 = vld [vmem:[#allocation5 + $0x520] sm:$0xff]
    %v263 = vld [vmem:[#allocation5 + $0x528] sm:$0xff]
    %v264 = vld [vmem:[#allocation5 + $0x530] sm:$0xff]
    %v265 = vld [vmem:[#allocation5 + $0x538] sm:$0xff]
    %v266 = vld [vmem:[#allocation5 + $0x540] sm:$0xff]
    %v267 = vld [vmem:[#allocation5 + $0x548] sm:$0xff]
    %v268 = vld [vmem:[#allocation5 + $0x550] sm:$0xff]
    %v269 = vld [vmem:[#allocation5 + $0x558] sm:$0xff]
    %v270 = vld [vmem:[#allocation5 + $0x560] sm:$0xff]
    %v271 = vld [vmem:[#allocation5 + $0x568] sm:$0xff]
    %v272 = vld [vmem:[#allocation5 + $0x570] sm:$0xff]
    %v273 = vld [vmem:[#allocation5 + $0x578] sm:$0xff]
    %v274 = vld [vmem:[#allocation5 + $0x580] sm:$0xff]
    %v275 = vld [vmem:[#allocation5 + $0x588] sm:$0xff]
    %v276 = vld [vmem:[#allocation5 + $0x590] sm:$0xff]
    %v277 = vld [vmem:[#allocation5 + $0x598] sm:$0xff]
    %v278 = vld [vmem:[#allocation5 + $0x5a0] sm:$0xff]
    %v279 = vld [vmem:[#allocation5 + $0x5a8] sm:$0xff]
    %v280 = vld [vmem:[#allocation5 + $0x5b0] sm:$0xff]
    %v281 = vld [vmem:[#allocation5 + $0x5b8] sm:$0xff]
    %v282 = vld [vmem:[#allocation5 + $0x5c0] sm:$0xff]
    %v283 = vld [vmem:[#allocation5 + $0x5c8] sm:$0xff]
    %v284 = vld [vmem:[#allocation5 + $0x5d0] sm:$0xff]
    %v285 = vld [vmem:[#allocation5 + $0x5d8] sm:$0xff]
    %v286 = vld [vmem:[#allocation5 + $0x5e0] sm:$0xff]
    %v287 = vld [vmem:[#allocation5 + $0x5e8] sm:$0xff]
    %v288 = vld [vmem:[#allocation5 + $0x5f0] sm:$0xff]
    %v289 = vld [vmem:[#allocation5 + $0x5f8] sm:$0xff]
    %v290 = vld [vmem:[#allocation5 + $0x600] sm:$0xff]
    %v291 = vld [vmem:[#allocation5 + $0x608] sm:$0xff]
    %v292 = vld [vmem:[#allocation5 + $0x610] sm:$0xff]
    %v293 = vld [vmem:[#allocation5 + $0x618] sm:$0xff]
    %v294 = vld [vmem:[#allocation5 + $0x620] sm:$0xff]
    %v295 = vld [vmem:[#allocation5 + $0x628] sm:$0xff]
    %v296 = vld [vmem:[#allocation5 + $0x630] sm:$0xff]
    %v297 = vld [vmem:[#allocation5 + $0x638] sm:$0xff]
    %v298 = vld [vmem:[#allocation5 + $0x640] sm:$0xff]
    %v299 = vld [vmem:[#allocation5 + $0x648] sm:$0xff]
    %v300 = vld [vmem:[#allocation5 + $0x650] sm:$0xff]
    %v301 = vld [vmem:[#allocation5 + $0x658] sm:$0xff]
    %v302 = vld [vmem:[#allocation5 + $0x660] sm:$0xff]
    %v303 = vld [vmem:[#allocation5 + $0x668] sm:$0xff]
    %v304 = vld [vmem:[#allocation5 + $0x670] sm:$0xff]
    %v305 = vld [vmem:[#allocation5 + $0x678] sm:$0xff]
    %v306 = vld [vmem:[#allocation5 + $0x680] sm:$0xff]
    %v307 = vld [vmem:[#allocation5 + $0x688] sm:$0xff]
    %v308 = vld [vmem:[#allocation5 + $0x690] sm:$0xff]
    %v309 = vld [vmem:[#allocation5 + $0x698] sm:$0xff]
    %v310 = vld [vmem:[#allocation5 + $0x6a0] sm:$0xff]
    %v311 = vld [vmem:[#allocation5 + $0x6a8] sm:$0xff]
    %v312 = vld [vmem:[#allocation5 + $0x6b0] sm:$0xff]
    %v313 = vld [vmem:[#allocation5 + $0x6b8] sm:$0xff]
    %v314 = vld [vmem:[#allocation5 + $0x6c0] sm:$0xff]
    %v315 = vld [vmem:[#allocation5 + $0x6c8] sm:$0xff]
    %v316 = vld [vmem:[#allocation5 + $0x6d0] sm:$0xff]
    %v317 = vld [vmem:[#allocation5 + $0x6d8] sm:$0xff]
    %v318 = vld [vmem:[#allocation5 + $0x6e0] sm:$0xff]
    %v319 = vld [vmem:[#allocation5 + $0x6e8] sm:$0xff]
    %v320 = vld [vmem:[#allocation5 + $0x6f0] sm:$0xff]
    %v321 = vld [vmem:[#allocation5 + $0x6f8] sm:$0xff]
    %v322 = vld [vmem:[#allocation5 + $0x700] sm:$0xff]
    %v323 = vld [vmem:[#allocation5 + $0x708] sm:$0xff]
    %v324 = vld [vmem:[#allocation5 + $0x710] sm:$0xff]
    %v325 = vld [vmem:[#allocation5 + $0x718] sm:$0xff]
    %v326 = vld [vmem:[#allocation5 + $0x720] sm:$0xff]
    %v327 = vld [vmem:[#allocation5 + $0x728] sm:$0xff]
    %v328 = vld [vmem:[#allocation5 + $0x730] sm:$0xff]
    %v329 = vld [vmem:[#allocation5 + $0x738] sm:$0xff]
    %v330 = vld [vmem:[#allocation5 + $0x740] sm:$0xff]
    %v331 = vld [vmem:[#allocation5 + $0x748] sm:$0xff]
    %v332 = vld [vmem:[#allocation5 + $0x750] sm:$0xff]
    %v333 = vld [vmem:[#allocation5 + $0x758] sm:$0xff]
    %v334 = vld [vmem:[#allocation5 + $0x760] sm:$0xff]
    %v335 = vld [vmem:[#allocation5 + $0x768] sm:$0xff]
    %v336 = vld [vmem:[#allocation5 + $0x770] sm:$0xff]
    %v337 = vld [vmem:[#allocation5 + $0x778] sm:$0xff]
    %v338 = vld [vmem:[#allocation5 + $0x780] sm:$0xff]
    %v339 = vld [vmem:[#allocation5 + $0x788] sm:$0xff]
    %v340 = vld [vmem:[#allocation5 + $0x790] sm:$0xff]
    %v341 = vld [vmem:[#allocation5 + $0x798] sm:$0xff]
    %v342 = vld [vmem:[#allocation5 + $0x7a0] sm:$0xff]
    %v343 = vld [vmem:[#allocation5 + $0x7a8] sm:$0xff]
    %v344 = vld [vmem:[#allocation5 + $0x7b0] sm:$0xff]
    %v345 = vld [vmem:[#allocation5 + $0x7b8] sm:$0xff]
    %v346 = vld [vmem:[#allocation5 + $0x7c0] sm:$0xff]
    %v347 = vld [vmem:[#allocation5 + $0x7c8] sm:$0xff]
    %v348 = vld [vmem:[#allocation5 + $0x7d0] sm:$0xff]
    %v349 = vld [vmem:[#allocation5 + $0x7d8] sm:$0xff]
    %v350 = vld [vmem:[#allocation5 + $0x7e0] sm:$0xff]
    %v351 = vld [vmem:[#allocation5 + $0x7e8] sm:$0xff]
    %v352 = vld [vmem:[#allocation5 + $0x7f0] sm:$0xff]
    %v353 = vld [vmem:[#allocation5 + $0x7f8] sm:$0xff]
    %v354 = vld [vmem:[#allocation5 + $0x800] sm:$0xff]
    %v355 = vld [vmem:[#allocation5 + $0x808] sm:$0xff]
    %v356 = vld [vmem:[#allocation5 + $0x810] sm:$0xff]
    %v357 = vld [vmem:[#allocation5 + $0x818] sm:$0xff]
    %v358 = vld [vmem:[#allocation5 + $0x820] sm:$0xff]
    %v359 = vld [vmem:[#allocation5 + $0x828] sm:$0xff]
    %v360 = vld [vmem:[#allocation5 + $0x830] sm:$0xff]
    %v361 = vld [vmem:[#allocation5 + $0x838] sm:$0xff]
    %v362 = vld [vmem:[#allocation5 + $0x840] sm:$0xff]
    %v363 = vld [vmem:[#allocation5 + $0x848] sm:$0xff]
    %v364 = vld [vmem:[#allocation5 + $0x850] sm:$0xff]
    %v365 = vld [vmem:[#allocation5 + $0x858] sm:$0xff]
    %v366 = vld [vmem:[#allocation5 + $0x860] sm:$0xff]
    %v367 = vld [vmem:[#allocation5 + $0x868] sm:$0xff]
    %v368 = vld [vmem:[#allocation5 + $0x870] sm:$0xff]
    %v369 = vld [vmem:[#allocation5 + $0x878] sm:$0xff]
    %v370 = vld [vmem:[#allocation5 + $0x880] sm:$0xff]
    %v371 = vld [vmem:[#allocation5 + $0x888] sm:$0xff]
    %v372 = vld [vmem:[#allocation5 + $0x890] sm:$0xff]
    %v373 = vld [vmem:[#allocation5 + $0x898] sm:$0xff]
    %v374 = vld [vmem:[#allocation5 + $0x8a0] sm:$0xff]
    %v375 = vld [vmem:[#allocation5 + $0x8a8] sm:$0xff]
    %v376 = vld [vmem:[#allocation5 + $0x8b0] sm:$0xff]
    %v377 = vld [vmem:[#allocation5 + $0x8b8] sm:$0xff]
    %v378 = vld [vmem:[#allocation5 + $0x8c0] sm:$0xff]
    %v379 = vld [vmem:[#allocation5 + $0x8c8] sm:$0xff]
    %v380 = vld [vmem:[#allocation5 + $0x8d0] sm:$0xff]
    %v381 = vld [vmem:[#allocation5 + $0x8d8] sm:$0xff]
    %v382 = vld [vmem:[#allocation5 + $0x8e0] sm:$0xff]
    %v383 = vld [vmem:[#allocation5 + $0x8e8] sm:$0xff]
    %v384 = vld [vmem:[#allocation5 + $0x8f0] sm:$0xff]
    %v385 = vld [vmem:[#allocation5 + $0x8f8] sm:$0xff]
    %v386 = vld [vmem:[#allocation5 + $0x900] sm:$0xff]
    %v387 = vld [vmem:[#allocation5 + $0x908] sm:$0xff]
    %v388 = vld [vmem:[#allocation5 + $0x910] sm:$0xff]
    %v389 = vld [vmem:[#allocation5 + $0x918] sm:$0xff]
    %v390 = vld [vmem:[#allocation5 + $0x920] sm:$0xff]
    %v391 = vld [vmem:[#allocation5 + $0x928] sm:$0xff]
    %v392 = vld [vmem:[#allocation5 + $0x930] sm:$0xff]
    %v393 = vld [vmem:[#allocation5 + $0x938] sm:$0xff]
    %v394 = vld [vmem:[#allocation5 + $0x940] sm:$0x33]
    %v395 = vld [vmem:[#allocation5 + $0x948] sm:$0x33]
    %v396 = vld [vmem:[#allocation5 + $0x950] sm:$0x33]
    %v397 = vld [vmem:[#allocation5 + $0x958] sm:$0x33]
    %v398 = vld [vmem:[#allocation5 + $0x960] sm:$0x33]
    %v399 = vld [vmem:[#allocation5 + $0x968] sm:$0x33]
    %v400 = vld [vmem:[#allocation5 + $0x970] sm:$0x33]
    %v401 = vld [vmem:[#allocation5 + $0x978] sm:$0x33]
    %v402 = vld [vmem:[#allocation7] sm:$0xff]
    %v403 = vld [vmem:[#allocation7 + $0x8] sm:$0xff]
    %v406 = vlaneseq
    %v407 = vshrl.u32 %v406, 7
    %v408 = vsub.s32 0, %v407
    %v409 = vrot.slane %v402, %v408
    %v410 = vlaneseq
    %v411 = vshrl.u32 %v410, 7
    %v412 = vsub.s32 1, %v411
    %v413 = vrot.slane %v402, %v412
    %v414 = vlaneseq
    %v415 = vshrl.u32 %v414, 7
    %v416 = vsub.s32 2, %v415
    %v417 = vrot.slane %v402, %v416
    %v418 = vlaneseq
    %v419 = vshrl.u32 %v418, 7
    %v420 = vsub.s32 3, %v419
    %v421 = vrot.slane %v402, %v420
    %v422 = vlaneseq
    %v423 = vshrl.u32 %v422, 7
    %v424 = vsub.s32 4, %v423
    %v425 = vrot.slane %v402, %v424
    %v426 = vlaneseq
    %v427 = vshrl.u32 %v426, 7
    %v428 = vsub.s32 5, %v427
    %v429 = vrot.slane %v402, %v428
    %v430 = vlaneseq
    %v431 = vshrl.u32 %v430, 7
    %v432 = vsub.s32 6, %v431
    %v433 = vrot.slane %v402, %v432
    %v434 = vlaneseq
    %v435 = vshrl.u32 %v434, 7
    %v436 = vsub.s32 7, %v435
    %v437 = vrot.slane %v402, %v436
    %v438 = vlaneseq
    %v439 = vshrl.u32 %v438, 7
    %v440 = vsub.s32 0, %v439
    %v441 = vrot.slane %v403, %v440
    %v442 = vlaneseq
    %v443 = vshrl.u32 %v442, 7
    %v444 = vsub.s32 1, %v443
    %v445 = vrot.slane %v403, %v444
    %v446 = vlaneseq
    %v447 = vshrl.u32 %v446, 7
    %v448 = vsub.s32 2, %v447
    %v449 = vrot.slane %v403, %v448
    %v450 = vlaneseq
    %v451 = vshrl.u32 %v450, 7
    %v452 = vsub.s32 3, %v451
    %v453 = vrot.slane %v403, %v452
    %v454 = vlaneseq
    %v455 = vshrl.u32 %v454, 7
    %v456 = vsub.s32 4, %v455
    %v457 = vrot.slane %v403, %v456
    %v458 = vlaneseq
    %v459 = vshrl.u32 %v458, 7
    %v460 = vsub.s32 5, %v459
    %v461 = vrot.slane %v403, %v460
    %v462 = vlaneseq
    %v463 = vshrl.u32 %v462, 7
    %v464 = vsub.s32 6, %v463
    %v465 = vrot.slane %v403, %v464
    %v466 = vlaneseq
    %v467 = vshrl.u32 %v466, 7
    %v468 = vsub.s32 7, %v467
    %v469 = vrot.slane %v403, %v468
    %v790 = vunpack.c.l.b16 %v98
    %v791 = vunpack.c.h.b16 %v98
    %v792 = vunpack.c.l.b16 %v99
    %v793 = vunpack.c.h.b16 %v99
    %v794 = vunpack.c.l.b16 %v100
    %v795 = vunpack.c.h.b16 %v100
    %v796 = vunpack.c.l.b16 %v101
    %v797 = vunpack.c.h.b16 %v101
    %v798 = vunpack.c.l.b16 %v102
    %v799 = vunpack.c.h.b16 %v102
    %v800 = vunpack.c.l.b16 %v103
    %v801 = vunpack.c.h.b16 %v103
    %v802 = vunpack.c.l.b16 %v104
    %v803 = vunpack.c.h.b16 %v104
    %v804 = vunpack.c.l.b16 %v105
    %v805 = vunpack.c.h.b16 %v105
    %v806 = vunpack.c.l.b16 %v106
    %v807 = vunpack.c.h.b16 %v106
    %v808 = vunpack.c.l.b16 %v107
    %v809 = vunpack.c.h.b16 %v107
    %v810 = vunpack.c.l.b16 %v108
    %v811 = vunpack.c.h.b16 %v108
    %v812 = vunpack.c.l.b16 %v109
    %v813 = vunpack.c.h.b16 %v109
    %v814 = vunpack.c.l.b16 %v110
    %v815 = vunpack.c.h.b16 %v110
    %v816 = vunpack.c.l.b16 %v111
    %v817 = vunpack.c.h.b16 %v111
    %v818 = vunpack.c.l.b16 %v112
    %v819 = vunpack.c.h.b16 %v112
    %v820 = vunpack.c.l.b16 %v113
    %v821 = vunpack.c.h.b16 %v113
    %v822 = vunpack.c.l.b16 %v114
    %v823 = vunpack.c.h.b16 %v114
    %v824 = vunpack.c.l.b16 %v115
    %v825 = vunpack.c.h.b16 %v115
    %v826 = vunpack.c.l.b16 %v116
    %v827 = vunpack.c.h.b16 %v116
    %v828 = vunpack.c.l.b16 %v117
    %v829 = vunpack.c.h.b16 %v117
    %v830 = vunpack.c.l.b16 %v118
    %v831 = vunpack.c.h.b16 %v118
    %v832 = vunpack.c.l.b16 %v119
    %v833 = vunpack.c.h.b16 %v119
    %v834 = vunpack.c.l.b16 %v120
    %v835 = vunpack.c.h.b16 %v120
    %v836 = vunpack.c.l.b16 %v121
    %v837 = vunpack.c.h.b16 %v121
    %v838 = vunpack.c.l.b16 %v122
    %v839 = vunpack.c.h.b16 %v122
    %v840 = vunpack.c.l.b16 %v123
    %v841 = vunpack.c.h.b16 %v123
    %v842 = vunpack.c.l.b16 %v124
    %v843 = vunpack.c.h.b16 %v124
    %v844 = vunpack.c.l.b16 %v125
    %v845 = vunpack.c.h.b16 %v125
    %v846 = vunpack.c.l.b16 %v126
    %v847 = vunpack.c.h.b16 %v126
    %v848 = vunpack.c.l.b16 %v127
    %v849 = vunpack.c.h.b16 %v127
    %v850 = vunpack.c.l.b16 %v128
    %v851 = vunpack.c.h.b16 %v128
    %v852 = vunpack.c.l.b16 %v129
    %v853 = vunpack.c.h.b16 %v129
    %v854 = vunpack.c.l.b16 %v130
    %v855 = vunpack.c.h.b16 %v130
    %v856 = vunpack.c.l.b16 %v131
    %v857 = vunpack.c.h.b16 %v131
    %v858 = vunpack.c.l.b16 %v132
    %v859 = vunpack.c.h.b16 %v132
    %v860 = vunpack.c.l.b16 %v133
    %v861 = vunpack.c.h.b16 %v133
    %v862 = vunpack.c.l.b16 %v134
    %v863 = vunpack.c.h.b16 %v134
    %v864 = vunpack.c.l.b16 %v135
    %v865 = vunpack.c.h.b16 %v135
    %v866 = vunpack.c.l.b16 %v136
    %v867 = vunpack.c.h.b16 %v136
    %v868 = vunpack.c.l.b16 %v137
    %v869 = vunpack.c.h.b16 %v137
    %v870 = vunpack.c.l.b16 %v138
    %v871 = vunpack.c.h.b16 %v138
    %v872 = vunpack.c.l.b16 %v139
    %v873 = vunpack.c.h.b16 %v139
    %v874 = vunpack.c.l.b16 %v140
    %v875 = vunpack.c.h.b16 %v140
    %v876 = vunpack.c.l.b16 %v141
    %v877 = vunpack.c.h.b16 %v141
    %v878 = vunpack.c.l.b16 %v142
    %v879 = vunpack.c.h.b16 %v142
    %v880 = vunpack.c.l.b16 %v143
    %v881 = vunpack.c.h.b16 %v143
    %v882 = vunpack.c.l.b16 %v144
    %v883 = vunpack.c.h.b16 %v144
    %v884 = vunpack.c.l.b16 %v145
    %v885 = vunpack.c.h.b16 %v145
    %v886 = vunpack.c.l.b16 %v146
    %v887 = vunpack.c.h.b16 %v146
    %v888 = vunpack.c.l.b16 %v147
    %v889 = vunpack.c.h.b16 %v147
    %v890 = vunpack.c.l.b16 %v148
    %v891 = vunpack.c.h.b16 %v148
    %v892 = vunpack.c.l.b16 %v149
    %v893 = vunpack.c.h.b16 %v149
    %v894 = vunpack.c.l.b16 %v150
    %v895 = vunpack.c.h.b16 %v150
    %v896 = vunpack.c.l.b16 %v151
    %v897 = vunpack.c.h.b16 %v151
    %v898 = vunpack.c.l.b16 %v152
    %v899 = vunpack.c.h.b16 %v152
    %v900 = vunpack.c.l.b16 %v153
    %v901 = vunpack.c.h.b16 %v153
    %v902 = vunpack.c.l.b16 %v154
    %v903 = vunpack.c.h.b16 %v154
    %v904 = vunpack.c.l.b16 %v155
    %v905 = vunpack.c.h.b16 %v155
    %v906 = vunpack.c.l.b16 %v156
    %v907 = vunpack.c.h.b16 %v156
    %v908 = vunpack.c.l.b16 %v157
    %v909 = vunpack.c.h.b16 %v157
    %v910 = vunpack.c.l.b16 %v158
    %v911 = vunpack.c.h.b16 %v158
    %v912 = vunpack.c.l.b16 %v159
    %v913 = vunpack.c.h.b16 %v159
    %v914 = vunpack.c.l.b16 %v160
    %v915 = vunpack.c.h.b16 %v160
    %v916 = vunpack.c.l.b16 %v161
    %v917 = vunpack.c.h.b16 %v161
    %v918 = vunpack.c.l.b16 %v162
    %v919 = vunpack.c.h.b16 %v162
    %v920 = vunpack.c.l.b16 %v163
    %v921 = vunpack.c.h.b16 %v163
    %v922 = vunpack.c.l.b16 %v164
    %v923 = vunpack.c.h.b16 %v164
    %v924 = vunpack.c.l.b16 %v165
    %v925 = vunpack.c.h.b16 %v165
    %v926 = vunpack.c.l.b16 %v166
    %v927 = vunpack.c.h.b16 %v166
    %v928 = vunpack.c.l.b16 %v167
    %v929 = vunpack.c.h.b16 %v167
    %v930 = vunpack.c.l.b16 %v168
    %v931 = vunpack.c.h.b16 %v168
    %v932 = vunpack.c.l.b16 %v169
    %v933 = vunpack.c.h.b16 %v169
    %v934 = vunpack.c.l.b16 %v170
    %v935 = vunpack.c.h.b16 %v170
    %v936 = vunpack.c.l.b16 %v171
    %v937 = vunpack.c.h.b16 %v171
    %v938 = vunpack.c.l.b16 %v172
    %v939 = vunpack.c.h.b16 %v172
    %v940 = vunpack.c.l.b16 %v173
    %v941 = vunpack.c.h.b16 %v173
    %v942 = vunpack.c.l.b16 %v174
    %v943 = vunpack.c.h.b16 %v174
    %v944 = vunpack.c.l.b16 %v175
    %v945 = vunpack.c.h.b16 %v175
    %v946 = vunpack.c.l.b16 %v176
    %v947 = vunpack.c.h.b16 %v176
    %v948 = vunpack.c.l.b16 %v177
    %v949 = vunpack.c.h.b16 %v177
    %v950 = vunpack.c.l.b16 %v178
    %v951 = vunpack.c.h.b16 %v178
    %v952 = vunpack.c.l.b16 %v179
    %v953 = vunpack.c.h.b16 %v179
    %v954 = vunpack.c.l.b16 %v180
    %v955 = vunpack.c.h.b16 %v180
    %v956 = vunpack.c.l.b16 %v181
    %v957 = vunpack.c.h.b16 %v181
    %v958 = vunpack.c.l.b16 %v182
    %v959 = vunpack.c.h.b16 %v182
    %v960 = vunpack.c.l.b16 %v183
    %v961 = vunpack.c.h.b16 %v183
    %v962 = vunpack.c.l.b16 %v184
    %v963 = vunpack.c.h.b16 %v184
    %v964 = vunpack.c.l.b16 %v185
    %v965 = vunpack.c.h.b16 %v185
    %v966 = vunpack.c.l.b16 %v186
    %v967 = vunpack.c.h.b16 %v186
    %v968 = vunpack.c.l.b16 %v187
    %v969 = vunpack.c.h.b16 %v187
    %v970 = vunpack.c.l.b16 %v188
    %v971 = vunpack.c.h.b16 %v188
    %v972 = vunpack.c.l.b16 %v189
    %v973 = vunpack.c.h.b16 %v189
    %v974 = vunpack.c.l.b16 %v190
    %v975 = vunpack.c.h.b16 %v190
    %v976 = vunpack.c.l.b16 %v191
    %v977 = vunpack.c.h.b16 %v191
    %v978 = vunpack.c.l.b16 %v192
    %v979 = vunpack.c.h.b16 %v192
    %v980 = vunpack.c.l.b16 %v193
    %v981 = vunpack.c.h.b16 %v193
    %v982 = vunpack.c.l.b16 %v194
    %v983 = vunpack.c.h.b16 %v194
    %v984 = vunpack.c.l.b16 %v195
    %v985 = vunpack.c.h.b16 %v195
    %v986 = vunpack.c.l.b16 %v196
    %v987 = vunpack.c.h.b16 %v196
    %v988 = vunpack.c.l.b16 %v197
    %v989 = vunpack.c.h.b16 %v197
    %v990 = vunpack.c.l.b16 %v198
    %v991 = vunpack.c.h.b16 %v198
    %v992 = vunpack.c.l.b16 %v199
    %v993 = vunpack.c.h.b16 %v199
    %v994 = vunpack.c.l.b16 %v200
    %v995 = vunpack.c.h.b16 %v200
    %v996 = vunpack.c.l.b16 %v201
    %v997 = vunpack.c.h.b16 %v201
    %v998 = vunpack.c.l.b16 %v202
    %v999 = vunpack.c.h.b16 %v202
    %v1000 = vunpack.c.l.b16 %v203
    %v1001 = vunpack.c.h.b16 %v203
    %v1002 = vunpack.c.l.b16 %v204
    %v1003 = vunpack.c.h.b16 %v204
    %v1004 = vunpack.c.l.b16 %v205
    %v1005 = vunpack.c.h.b16 %v205
    %v1006 = vunpack.c.l.b16 %v206
    %v1007 = vunpack.c.h.b16 %v206
    %v1008 = vunpack.c.l.b16 %v207
    %v1009 = vunpack.c.h.b16 %v207
    %v1010 = vunpack.c.l.b16 %v208
    %v1011 = vunpack.c.h.b16 %v208
    %v1012 = vunpack.c.l.b16 %v209
    %v1013 = vunpack.c.h.b16 %v209
    %v1014 = vunpack.c.l.b16 %v210
    %v1015 = vunpack.c.h.b16 %v210
    %v1016 = vunpack.c.l.b16 %v211
    %v1017 = vunpack.c.h.b16 %v211
    %v1018 = vunpack.c.l.b16 %v212
    %v1019 = vunpack.c.h.b16 %v212
    %v1020 = vunpack.c.l.b16 %v213
    %v1021 = vunpack.c.h.b16 %v213
    %v1022 = vunpack.c.l.b16 %v214
    %v1023 = vunpack.c.h.b16 %v214
    %v1024 = vunpack.c.l.b16 %v215
    %v1025 = vunpack.c.h.b16 %v215
    %v1026 = vunpack.c.l.b16 %v216
    %v1027 = vunpack.c.h.b16 %v216
    %v1028 = vunpack.c.l.b16 %v217
    %v1029 = vunpack.c.h.b16 %v217
    %v1030 = vunpack.c.l.b16 %v218
    %v1031 = vunpack.c.h.b16 %v218
    %v1032 = vunpack.c.l.b16 %v219
    %v1033 = vunpack.c.h.b16 %v219
    %v1034 = vunpack.c.l.b16 %v220
    %v1035 = vunpack.c.h.b16 %v220
    %v1036 = vunpack.c.l.b16 %v221
    %v1037 = vunpack.c.h.b16 %v221
    %v1038 = vunpack.c.l.b16 %v222
    %v1039 = vunpack.c.h.b16 %v222
    %v1040 = vunpack.c.l.b16 %v223
    %v1041 = vunpack.c.h.b16 %v223
    %v1042 = vunpack.c.l.b16 %v224
    %v1043 = vunpack.c.h.b16 %v224
    %v1044 = vunpack.c.l.b16 %v225
    %v1045 = vunpack.c.h.b16 %v225
    %v1046 = vunpack.c.l.b16 %v226
    %v1047 = vunpack.c.h.b16 %v226
    %v1048 = vunpack.c.l.b16 %v227
    %v1049 = vunpack.c.h.b16 %v227
    %v1050 = vunpack.c.l.b16 %v228
    %v1051 = vunpack.c.h.b16 %v228
    %v1052 = vunpack.c.l.b16 %v229
    %v1053 = vunpack.c.h.b16 %v229
    %v1054 = vunpack.c.l.b16 %v230
    %v1055 = vunpack.c.h.b16 %v230
    %v1056 = vunpack.c.l.b16 %v231
    %v1057 = vunpack.c.h.b16 %v231
    %v1058 = vunpack.c.l.b16 %v232
    %v1059 = vunpack.c.h.b16 %v232
    %v1060 = vunpack.c.l.b16 %v233
    %v1061 = vunpack.c.h.b16 %v233
    %v1062 = vunpack.c.l.b16 %v234
    %v1063 = vunpack.c.h.b16 %v234
    %v1064 = vunpack.c.l.b16 %v235
    %v1065 = vunpack.c.h.b16 %v235
    %v1066 = vunpack.c.l.b16 %v236
    %v1067 = vunpack.c.h.b16 %v236
    %v1068 = vunpack.c.l.b16 %v237
    %v1069 = vunpack.c.h.b16 %v237
    %v1070 = vunpack.c.l.b16 %v238
    %v1071 = vunpack.c.h.b16 %v238
    %v1072 = vunpack.c.l.b16 %v239
    %v1073 = vunpack.c.h.b16 %v239
    %v1074 = vunpack.c.l.b16 %v240
    %v1075 = vunpack.c.h.b16 %v240
    %v1076 = vunpack.c.l.b16 %v241
    %v1077 = vunpack.c.h.b16 %v241
    %v1078 = vunpack.c.l.b16 %v242
    %v1079 = vunpack.c.h.b16 %v242
    %v1080 = vunpack.c.l.b16 %v243
    %v1081 = vunpack.c.h.b16 %v243
    %v1082 = vunpack.c.l.b16 %v244
    %v1083 = vunpack.c.h.b16 %v244
    %v1084 = vunpack.c.l.b16 %v245
    %v1085 = vunpack.c.h.b16 %v245
    %v1086 = vunpack.c.l.b16 %v246
    %v1087 = vunpack.c.h.b16 %v246
    %v1088 = vunpack.c.l.b16 %v247
    %v1089 = vunpack.c.h.b16 %v247
    %v1090 = vunpack.c.l.b16 %v248
    %v1091 = vunpack.c.h.b16 %v248
    %v1092 = vunpack.c.l.b16 %v249
    %v1093 = vunpack.c.h.b16 %v249
    %v1094 = vunpack.c.l.b16 %v250
    %v1095 = vunpack.c.h.b16 %v250
    %v1096 = vunpack.c.l.b16 %v251
    %v1097 = vunpack.c.h.b16 %v251
    %v1098 = vunpack.c.l.b16 %v252
    %v1099 = vunpack.c.h.b16 %v252
    %v1100 = vunpack.c.l.b16 %v253
    %v1101 = vunpack.c.h.b16 %v253
    %v1102 = vunpack.c.l.b16 %v254
    %v1103 = vunpack.c.h.b16 %v254
    %v1104 = vunpack.c.l.b16 %v255
    %v1105 = vunpack.c.h.b16 %v255
    %v1106 = vunpack.c.l.b16 %v256
    %v1107 = vunpack.c.h.b16 %v256
    %v1108 = vunpack.c.l.b16 %v257
    %v1109 = vunpack.c.h.b16 %v257
    %v1110 = vunpack.c.l.b16 %v258
    %v1111 = vunpack.c.h.b16 %v258
    %v1112 = vunpack.c.l.b16 %v259
    %v1113 = vunpack.c.h.b16 %v259
    %v1114 = vunpack.c.l.b16 %v260
    %v1115 = vunpack.c.h.b16 %v260
    %v1116 = vunpack.c.l.b16 %v261
    %v1117 = vunpack.c.h.b16 %v261
    %v1118 = vunpack.c.l.b16 %v262
    %v1119 = vunpack.c.h.b16 %v262
    %v1120 = vunpack.c.l.b16 %v263
    %v1121 = vunpack.c.h.b16 %v263
    %v1122 = vunpack.c.l.b16 %v264
    %v1123 = vunpack.c.h.b16 %v264
    %v1124 = vunpack.c.l.b16 %v265
    %v1125 = vunpack.c.h.b16 %v265
    %v1126 = vunpack.c.l.b16 %v266
    %v1127 = vunpack.c.h.b16 %v266
    %v1128 = vunpack.c.l.b16 %v267
    %v1129 = vunpack.c.h.b16 %v267
    %v1130 = vunpack.c.l.b16 %v268
    %v1131 = vunpack.c.h.b16 %v268
    %v1132 = vunpack.c.l.b16 %v269
    %v1133 = vunpack.c.h.b16 %v269
    %v1134 = vunpack.c.l.b16 %v270
    %v1135 = vunpack.c.h.b16 %v270
    %v1136 = vunpack.c.l.b16 %v271
    %v1137 = vunpack.c.h.b16 %v271
    %v1138 = vunpack.c.l.b16 %v272
    %v1139 = vunpack.c.h.b16 %v272
    %v1140 = vunpack.c.l.b16 %v273
    %v1141 = vunpack.c.h.b16 %v273
    %v1142 = vunpack.c.l.b16 %v274
    %v1143 = vunpack.c.h.b16 %v274
    %v1144 = vunpack.c.l.b16 %v275
    %v1145 = vunpack.c.h.b16 %v275
    %v1146 = vunpack.c.l.b16 %v276
    %v1147 = vunpack.c.h.b16 %v276
    %v1148 = vunpack.c.l.b16 %v277
    %v1149 = vunpack.c.h.b16 %v277
    %v1150 = vunpack.c.l.b16 %v278
    %v1151 = vunpack.c.h.b16 %v278
    %v1152 = vunpack.c.l.b16 %v279
    %v1153 = vunpack.c.h.b16 %v279
    %v1154 = vunpack.c.l.b16 %v280
    %v1155 = vunpack.c.h.b16 %v280
    %v1156 = vunpack.c.l.b16 %v281
    %v1157 = vunpack.c.h.b16 %v281
    %v1158 = vunpack.c.l.b16 %v282
    %v1159 = vunpack.c.h.b16 %v282
    %v1160 = vunpack.c.l.b16 %v283
    %v1161 = vunpack.c.h.b16 %v283
    %v1162 = vunpack.c.l.b16 %v284
    %v1163 = vunpack.c.h.b16 %v284
    %v1164 = vunpack.c.l.b16 %v285
    %v1165 = vunpack.c.h.b16 %v285
    %v1166 = vunpack.c.l.b16 %v286
    %v1167 = vunpack.c.h.b16 %v286
    %v1168 = vunpack.c.l.b16 %v287
    %v1169 = vunpack.c.h.b16 %v287
    %v1170 = vunpack.c.l.b16 %v288
    %v1171 = vunpack.c.h.b16 %v288
    %v1172 = vunpack.c.l.b16 %v289
    %v1173 = vunpack.c.h.b16 %v289
    %v1174 = vunpack.c.l.b16 %v290
    %v1175 = vunpack.c.h.b16 %v290
    %v1176 = vunpack.c.l.b16 %v291
    %v1177 = vunpack.c.h.b16 %v291
    %v1178 = vunpack.c.l.b16 %v292
    %v1179 = vunpack.c.h.b16 %v292
    %v1180 = vunpack.c.l.b16 %v293
    %v1181 = vunpack.c.h.b16 %v293
    %v1182 = vunpack.c.l.b16 %v294
    %v1183 = vunpack.c.h.b16 %v294
    %v1184 = vunpack.c.l.b16 %v295
    %v1185 = vunpack.c.h.b16 %v295
    %v1186 = vunpack.c.l.b16 %v296
    %v1187 = vunpack.c.h.b16 %v296
    %v1188 = vunpack.c.l.b16 %v297
    %v1189 = vunpack.c.h.b16 %v297
    %v1190 = vunpack.c.l.b16 %v298
    %v1191 = vunpack.c.h.b16 %v298
    %v1192 = vunpack.c.l.b16 %v299
    %v1193 = vunpack.c.h.b16 %v299
    %v1194 = vunpack.c.l.b16 %v300
    %v1195 = vunpack.c.h.b16 %v300
    %v1196 = vunpack.c.l.b16 %v301
    %v1197 = vunpack.c.h.b16 %v301
    %v1198 = vunpack.c.l.b16 %v302
    %v1199 = vunpack.c.h.b16 %v302
    %v1200 = vunpack.c.l.b16 %v303
    %v1201 = vunpack.c.h.b16 %v303
    %v1202 = vunpack.c.l.b16 %v304
    %v1203 = vunpack.c.h.b16 %v304
    %v1204 = vunpack.c.l.b16 %v305
    %v1205 = vunpack.c.h.b16 %v305
    %v1206 = vunpack.c.l.b16 %v306
    %v1207 = vunpack.c.h.b16 %v306
    %v1208 = vunpack.c.l.b16 %v307
    %v1209 = vunpack.c.h.b16 %v307
    %v1210 = vunpack.c.l.b16 %v308
    %v1211 = vunpack.c.h.b16 %v308
    %v1212 = vunpack.c.l.b16 %v309
    %v1213 = vunpack.c.h.b16 %v309
    %v1214 = vunpack.c.l.b16 %v310
    %v1215 = vunpack.c.h.b16 %v310
    %v1216 = vunpack.c.l.b16 %v311
    %v1217 = vunpack.c.h.b16 %v311
    %v1218 = vunpack.c.l.b16 %v312
    %v1219 = vunpack.c.h.b16 %v312
    %v1220 = vunpack.c.l.b16 %v313
    %v1221 = vunpack.c.h.b16 %v313
    %v1222 = vunpack.c.l.b16 %v314
    %v1223 = vunpack.c.h.b16 %v314
    %v1224 = vunpack.c.l.b16 %v315
    %v1225 = vunpack.c.h.b16 %v315
    %v1226 = vunpack.c.l.b16 %v316
    %v1227 = vunpack.c.h.b16 %v316
    %v1228 = vunpack.c.l.b16 %v317
    %v1229 = vunpack.c.h.b16 %v317
    %v1230 = vunpack.c.l.b16 %v318
    %v1231 = vunpack.c.h.b16 %v318
    %v1232 = vunpack.c.l.b16 %v319
    %v1233 = vunpack.c.h.b16 %v319
    %v1234 = vunpack.c.l.b16 %v320
    %v1235 = vunpack.c.h.b16 %v320
    %v1236 = vunpack.c.l.b16 %v321
    %v1237 = vunpack.c.h.b16 %v321
    %v1238 = vunpack.c.l.b16 %v322
    %v1239 = vunpack.c.h.b16 %v322
    %v1240 = vunpack.c.l.b16 %v323
    %v1241 = vunpack.c.h.b16 %v323
    %v1242 = vunpack.c.l.b16 %v324
    %v1243 = vunpack.c.h.b16 %v324
    %v1244 = vunpack.c.l.b16 %v325
    %v1245 = vunpack.c.h.b16 %v325
    %v1246 = vunpack.c.l.b16 %v326
    %v1247 = vunpack.c.h.b16 %v326
    %v1248 = vunpack.c.l.b16 %v327
    %v1249 = vunpack.c.h.b16 %v327
    %v1250 = vunpack.c.l.b16 %v328
    %v1251 = vunpack.c.h.b16 %v328
    %v1252 = vunpack.c.l.b16 %v329
    %v1253 = vunpack.c.h.b16 %v329
    %v1254 = vunpack.c.l.b16 %v330
    %v1255 = vunpack.c.h.b16 %v330
    %v1256 = vunpack.c.l.b16 %v331
    %v1257 = vunpack.c.h.b16 %v331
    %v1258 = vunpack.c.l.b16 %v332
    %v1259 = vunpack.c.h.b16 %v332
    %v1260 = vunpack.c.l.b16 %v333
    %v1261 = vunpack.c.h.b16 %v333
    %v1262 = vunpack.c.l.b16 %v334
    %v1263 = vunpack.c.h.b16 %v334
    %v1264 = vunpack.c.l.b16 %v335
    %v1265 = vunpack.c.h.b16 %v335
    %v1266 = vunpack.c.l.b16 %v336
    %v1267 = vunpack.c.h.b16 %v336
    %v1268 = vunpack.c.l.b16 %v337
    %v1269 = vunpack.c.h.b16 %v337
    %v1270 = vunpack.c.l.b16 %v338
    %v1271 = vunpack.c.h.b16 %v338
    %v1272 = vunpack.c.l.b16 %v339
    %v1273 = vunpack.c.h.b16 %v339
    %v1274 = vunpack.c.l.b16 %v340
    %v1275 = vunpack.c.h.b16 %v340
    %v1276 = vunpack.c.l.b16 %v341
    %v1277 = vunpack.c.h.b16 %v341
    %v1278 = vunpack.c.l.b16 %v342
    %v1279 = vunpack.c.h.b16 %v342
    %v1280 = vunpack.c.l.b16 %v343
    %v1281 = vunpack.c.h.b16 %v343
    %v1282 = vunpack.c.l.b16 %v344
    %v1283 = vunpack.c.h.b16 %v344
    %v1284 = vunpack.c.l.b16 %v345
    %v1285 = vunpack.c.h.b16 %v345
    %v1286 = vunpack.c.l.b16 %v346
    %v1287 = vunpack.c.h.b16 %v346
    %v1288 = vunpack.c.l.b16 %v347
    %v1289 = vunpack.c.h.b16 %v347
    %v1290 = vunpack.c.l.b16 %v348
    %v1291 = vunpack.c.h.b16 %v348
    %v1292 = vunpack.c.l.b16 %v349
    %v1293 = vunpack.c.h.b16 %v349
    %v1294 = vunpack.c.l.b16 %v350
    %v1295 = vunpack.c.h.b16 %v350
    %v1296 = vunpack.c.l.b16 %v351
    %v1297 = vunpack.c.h.b16 %v351
    %v1298 = vunpack.c.l.b16 %v352
    %v1299 = vunpack.c.h.b16 %v352
    %v1300 = vunpack.c.l.b16 %v353
    %v1301 = vunpack.c.h.b16 %v353
    %v1302 = vunpack.c.l.b16 %v354
    %v1303 = vunpack.c.h.b16 %v354
    %v1304 = vunpack.c.l.b16 %v355
    %v1305 = vunpack.c.h.b16 %v355
    %v1306 = vunpack.c.l.b16 %v356
    %v1307 = vunpack.c.h.b16 %v356
    %v1308 = vunpack.c.l.b16 %v357
    %v1309 = vunpack.c.h.b16 %v357
    %v1310 = vunpack.c.l.b16 %v358
    %v1311 = vunpack.c.h.b16 %v358
    %v1312 = vunpack.c.l.b16 %v359
    %v1313 = vunpack.c.h.b16 %v359
    %v1314 = vunpack.c.l.b16 %v360
    %v1315 = vunpack.c.h.b16 %v360
    %v1316 = vunpack.c.l.b16 %v361
    %v1317 = vunpack.c.h.b16 %v361
    %v1318 = vunpack.c.l.b16 %v362
    %v1319 = vunpack.c.h.b16 %v362
    %v1320 = vunpack.c.l.b16 %v363
    %v1321 = vunpack.c.h.b16 %v363
    %v1322 = vunpack.c.l.b16 %v364
    %v1323 = vunpack.c.h.b16 %v364
    %v1324 = vunpack.c.l.b16 %v365
    %v1325 = vunpack.c.h.b16 %v365
    %v1326 = vunpack.c.l.b16 %v366
    %v1327 = vunpack.c.h.b16 %v366
    %v1328 = vunpack.c.l.b16 %v367
    %v1329 = vunpack.c.h.b16 %v367
    %v1330 = vunpack.c.l.b16 %v368
    %v1331 = vunpack.c.h.b16 %v368
    %v1332 = vunpack.c.l.b16 %v369
    %v1333 = vunpack.c.h.b16 %v369
    %v1334 = vunpack.c.l.b16 %v370
    %v1335 = vunpack.c.h.b16 %v370
    %v1336 = vunpack.c.l.b16 %v371
    %v1337 = vunpack.c.h.b16 %v371
    %v1338 = vunpack.c.l.b16 %v372
    %v1339 = vunpack.c.h.b16 %v372
    %v1340 = vunpack.c.l.b16 %v373
    %v1341 = vunpack.c.h.b16 %v373
    %v1342 = vunpack.c.l.b16 %v374
    %v1343 = vunpack.c.h.b16 %v374
    %v1344 = vunpack.c.l.b16 %v375
    %v1345 = vunpack.c.h.b16 %v375
    %v1346 = vunpack.c.l.b16 %v376
    %v1347 = vunpack.c.h.b16 %v376
    %v1348 = vunpack.c.l.b16 %v377
    %v1349 = vunpack.c.h.b16 %v377
    %v1350 = vunpack.c.l.b16 %v378
    %v1351 = vunpack.c.h.b16 %v378
    %v1352 = vunpack.c.l.b16 %v379
    %v1353 = vunpack.c.h.b16 %v379
    %v1354 = vunpack.c.l.b16 %v380
    %v1355 = vunpack.c.h.b16 %v380
    %v1356 = vunpack.c.l.b16 %v381
    %v1357 = vunpack.c.h.b16 %v381
    %v1358 = vunpack.c.l.b16 %v382
    %v1359 = vunpack.c.h.b16 %v382
    %v1360 = vunpack.c.l.b16 %v383
    %v1361 = vunpack.c.h.b16 %v383
    %v1362 = vunpack.c.l.b16 %v384
    %v1363 = vunpack.c.h.b16 %v384
    %v1364 = vunpack.c.l.b16 %v385
    %v1365 = vunpack.c.h.b16 %v385
    %v1366 = vunpack.c.l.b16 %v386
    %v1367 = vunpack.c.h.b16 %v386
    %v1368 = vunpack.c.l.b16 %v387
    %v1369 = vunpack.c.h.b16 %v387
    %v1370 = vunpack.c.l.b16 %v388
    %v1371 = vunpack.c.h.b16 %v388
    %v1372 = vunpack.c.l.b16 %v389
    %v1373 = vunpack.c.h.b16 %v389
    %v1374 = vunpack.c.l.b16 %v390
    %v1375 = vunpack.c.h.b16 %v390
    %v1376 = vunpack.c.l.b16 %v391
    %v1377 = vunpack.c.h.b16 %v391
    %v1378 = vunpack.c.l.b16 %v392
    %v1379 = vunpack.c.h.b16 %v392
    %v1380 = vunpack.c.l.b16 %v393
    %v1381 = vunpack.c.h.b16 %v393
    %v1382 = vunpack.c.l.b16 %v394
    %v1383 = vunpack.c.h.b16 %v394
    %v1384 = vunpack.c.l.b16 %v395
    %v1385 = vunpack.c.h.b16 %v395
    %v1386 = vunpack.c.l.b16 %v396
    %v1387 = vunpack.c.h.b16 %v396
    %v1388 = vunpack.c.l.b16 %v397
    %v1389 = vunpack.c.h.b16 %v397
    %v1390 = vunpack.c.l.b16 %v398
    %v1391 = vunpack.c.h.b16 %v398
    %v1392 = vunpack.c.l.b16 %v399
    %v1393 = vunpack.c.h.b16 %v399
    %v1394 = vunpack.c.l.b16 %v400
    %v1395 = vunpack.c.h.b16 %v400
    %v1396 = vunpack.c.l.b16 %v401
    %v1397 = vunpack.c.h.b16 %v401
    %v1398 = vpack.c.b16 %v806, %v790
    %v1399 = vpack.c.b16 %v807, %v791
    %v1400 = vpack.c.b16 %v808, %v792
    %v1401 = vpack.c.b16 %v809, %v793
    %v1402 = vpack.c.b16 %v810, %v794
    %v1403 = vpack.c.b16 %v811, %v795
    %v1404 = vpack.c.b16 %v812, %v796
    %v1405 = vpack.c.b16 %v813, %v797
    %v1406 = vpack.c.b16 %v814, %v798
    %v1407 = vpack.c.b16 %v815, %v799
    %v1408 = vpack.c.b16 %v816, %v800
    %v1409 = vpack.c.b16 %v817, %v801
    %v1410 = vpack.c.b16 %v818, %v802
    %v1411 = vpack.c.b16 %v819, %v803
    %v1412 = vpack.c.b16 %v820, %v804
    %v1413 = vpack.c.b16 %v821, %v805
    %v1414 = vpack.c.b16 %v838, %v822
    %v1415 = vpack.c.b16 %v839, %v823
    %v1416 = vpack.c.b16 %v840, %v824
    %v1417 = vpack.c.b16 %v841, %v825
    %v1418 = vpack.c.b16 %v842, %v826
    %v1419 = vpack.c.b16 %v843, %v827
    %v1420 = vpack.c.b16 %v844, %v828
    %v1421 = vpack.c.b16 %v845, %v829
    %v1422 = vpack.c.b16 %v846, %v830
    %v1423 = vpack.c.b16 %v847, %v831
    %v1424 = vpack.c.b16 %v848, %v832
    %v1425 = vpack.c.b16 %v849, %v833
    %v1426 = vpack.c.b16 %v850, %v834
    %v1427 = vpack.c.b16 %v851, %v835
    %v1428 = vpack.c.b16 %v852, %v836
    %v1429 = vpack.c.b16 %v853, %v837
    %v1430 = vpack.c.b16 %v870, %v854
    %v1431 = vpack.c.b16 %v871, %v855
    %v1432 = vpack.c.b16 %v872, %v856
    %v1433 = vpack.c.b16 %v873, %v857
    %v1434 = vpack.c.b16 %v874, %v858
    %v1435 = vpack.c.b16 %v875, %v859
    %v1436 = vpack.c.b16 %v876, %v860
    %v1437 = vpack.c.b16 %v877, %v861
    %v1438 = vpack.c.b16 %v878, %v862
    %v1439 = vpack.c.b16 %v879, %v863
    %v1440 = vpack.c.b16 %v880, %v864
    %v1441 = vpack.c.b16 %v881, %v865
    %v1442 = vpack.c.b16 %v882, %v866
    %v1443 = vpack.c.b16 %v883, %v867
    %v1444 = vpack.c.b16 %v884, %v868
    %v1445 = vpack.c.b16 %v885, %v869
    %v1446 = vpack.c.b16 %v902, %v886
    %v1447 = vpack.c.b16 %v903, %v887
    %v1448 = vpack.c.b16 %v904, %v888
    %v1449 = vpack.c.b16 %v905, %v889
    %v1450 = vpack.c.b16 %v906, %v890
    %v1451 = vpack.c.b16 %v907, %v891
    %v1452 = vpack.c.b16 %v908, %v892
    %v1453 = vpack.c.b16 %v909, %v893
    %v1454 = vpack.c.b16 %v910, %v894
    %v1455 = vpack.c.b16 %v911, %v895
    %v1456 = vpack.c.b16 %v912, %v896
    %v1457 = vpack.c.b16 %v913, %v897
    %v1458 = vpack.c.b16 %v914, %v898
    %v1459 = vpack.c.b16 %v915, %v899
    %v1460 = vpack.c.b16 %v916, %v900
    %v1461 = vpack.c.b16 %v917, %v901
    %v1462 = vpack.c.b16 %v934, %v918
    %v1463 = vpack.c.b16 %v935, %v919
    %v1464 = vpack.c.b16 %v936, %v920
    %v1465 = vpack.c.b16 %v937, %v921
    %v1466 = vpack.c.b16 %v938, %v922
    %v1467 = vpack.c.b16 %v939, %v923
    %v1468 = vpack.c.b16 %v940, %v924
    %v1469 = vpack.c.b16 %v941, %v925
    %v1470 = vpack.c.b16 %v942, %v926
    %v1471 = vpack.c.b16 %v943, %v927
    %v1472 = vpack.c.b16 %v944, %v928
    %v1473 = vpack.c.b16 %v945, %v929
    %v1474 = vpack.c.b16 %v946, %v930
    %v1475 = vpack.c.b16 %v947, %v931
    %v1476 = vpack.c.b16 %v948, %v932
    %v1477 = vpack.c.b16 %v949, %v933
    %v1478 = vpack.c.b16 %v966, %v950
    %v1479 = vpack.c.b16 %v967, %v951
    %v1480 = vpack.c.b16 %v968, %v952
    %v1481 = vpack.c.b16 %v969, %v953
    %v1482 = vpack.c.b16 %v970, %v954
    %v1483 = vpack.c.b16 %v971, %v955
    %v1484 = vpack.c.b16 %v972, %v956
    %v1485 = vpack.c.b16 %v973, %v957
    %v1486 = vpack.c.b16 %v974, %v958
    %v1487 = vpack.c.b16 %v975, %v959
    %v1488 = vpack.c.b16 %v976, %v960
    %v1489 = vpack.c.b16 %v977, %v961
    %v1490 = vpack.c.b16 %v978, %v962
    %v1491 = vpack.c.b16 %v979, %v963
    %v1492 = vpack.c.b16 %v980, %v964
    %v1493 = vpack.c.b16 %v981, %v965
    %v1494 = vpack.c.b16 %v998, %v982
    %v1495 = vpack.c.b16 %v999, %v983
    %v1496 = vpack.c.b16 %v1000, %v984
    %v1497 = vpack.c.b16 %v1001, %v985
    %v1498 = vpack.c.b16 %v1002, %v986
    %v1499 = vpack.c.b16 %v1003, %v987
    %v1500 = vpack.c.b16 %v1004, %v988
    %v1501 = vpack.c.b16 %v1005, %v989
    %v1502 = vpack.c.b16 %v1006, %v990
    %v1503 = vpack.c.b16 %v1007, %v991
    %v1504 = vpack.c.b16 %v1008, %v992
    %v1505 = vpack.c.b16 %v1009, %v993
    %v1506 = vpack.c.b16 %v1010, %v994
    %v1507 = vpack.c.b16 %v1011, %v995
    %v1508 = vpack.c.b16 %v1012, %v996
    %v1509 = vpack.c.b16 %v1013, %v997
    %v1510 = vpack.c.b16 %v1030, %v1014
    %v1511 = vpack.c.b16 %v1031, %v1015
    %v1512 = vpack.c.b16 %v1032, %v1016
    %v1513 = vpack.c.b16 %v1033, %v1017
    %v1514 = vpack.c.b16 %v1034, %v1018
    %v1515 = vpack.c.b16 %v1035, %v1019
    %v1516 = vpack.c.b16 %v1036, %v1020
    %v1517 = vpack.c.b16 %v1037, %v1021
    %v1518 = vpack.c.b16 %v1038, %v1022
    %v1519 = vpack.c.b16 %v1039, %v1023
    %v1520 = vpack.c.b16 %v1040, %v1024
    %v1521 = vpack.c.b16 %v1041, %v1025
    %v1522 = vpack.c.b16 %v1042, %v1026
    %v1523 = vpack.c.b16 %v1043, %v1027
    %v1524 = vpack.c.b16 %v1044, %v1028
    %v1525 = vpack.c.b16 %v1045, %v1029
    %v1526 = vpack.c.b16 %v1062, %v1046
    %v1527 = vpack.c.b16 %v1063, %v1047
    %v1528 = vpack.c.b16 %v1064, %v1048
    %v1529 = vpack.c.b16 %v1065, %v1049
    %v1530 = vpack.c.b16 %v1066, %v1050
    %v1531 = vpack.c.b16 %v1067, %v1051
    %v1532 = vpack.c.b16 %v1068, %v1052
    %v1533 = vpack.c.b16 %v1069, %v1053
    %v1534 = vpack.c.b16 %v1070, %v1054
    %v1535 = vpack.c.b16 %v1071, %v1055
    %v1536 = vpack.c.b16 %v1072, %v1056
    %v1537 = vpack.c.b16 %v1073, %v1057
    %v1538 = vpack.c.b16 %v1074, %v1058
    %v1539 = vpack.c.b16 %v1075, %v1059
    %v1540 = vpack.c.b16 %v1076, %v1060
    %v1541 = vpack.c.b16 %v1077, %v1061
    %v1542 = vpack.c.b16 %v1094, %v1078
    %v1543 = vpack.c.b16 %v1095, %v1079
    %v1544 = vpack.c.b16 %v1096, %v1080
    %v1545 = vpack.c.b16 %v1097, %v1081
    %v1546 = vpack.c.b16 %v1098, %v1082
    %v1547 = vpack.c.b16 %v1099, %v1083
    %v1548 = vpack.c.b16 %v1100, %v1084
    %v1549 = vpack.c.b16 %v1101, %v1085
    %v1550 = vpack.c.b16 %v1102, %v1086
    %v1551 = vpack.c.b16 %v1103, %v1087
    %v1552 = vpack.c.b16 %v1104, %v1088
    %v1553 = vpack.c.b16 %v1105, %v1089
    %v1554 = vpack.c.b16 %v1106, %v1090
    %v1555 = vpack.c.b16 %v1107, %v1091
    %v1556 = vpack.c.b16 %v1108, %v1092
    %v1557 = vpack.c.b16 %v1109, %v1093
    %v1558 = vpack.c.b16 %v1126, %v1110
    %v1559 = vpack.c.b16 %v1127, %v1111
    %v1560 = vpack.c.b16 %v1128, %v1112
    %v1561 = vpack.c.b16 %v1129, %v1113
    %v1562 = vpack.c.b16 %v1130, %v1114
    %v1563 = vpack.c.b16 %v1131, %v1115
    %v1564 = vpack.c.b16 %v1132, %v1116
    %v1565 = vpack.c.b16 %v1133, %v1117
    %v1566 = vpack.c.b16 %v1134, %v1118
    %v1567 = vpack.c.b16 %v1135, %v1119
    %v1568 = vpack.c.b16 %v1136, %v1120
    %v1569 = vpack.c.b16 %v1137, %v1121
    %v1570 = vpack.c.b16 %v1138, %v1122
    %v1571 = vpack.c.b16 %v1139, %v1123
    %v1572 = vpack.c.b16 %v1140, %v1124
    %v1573 = vpack.c.b16 %v1141, %v1125
    %v1574 = vpack.c.b16 %v1158, %v1142
    %v1575 = vpack.c.b16 %v1159, %v1143
    %v1576 = vpack.c.b16 %v1160, %v1144
    %v1577 = vpack.c.b16 %v1161, %v1145
    %v1578 = vpack.c.b16 %v1162, %v1146
    %v1579 = vpack.c.b16 %v1163, %v1147
    %v1580 = vpack.c.b16 %v1164, %v1148
    %v1581 = vpack.c.b16 %v1165, %v1149
    %v1582 = vpack.c.b16 %v1166, %v1150
    %v1583 = vpack.c.b16 %v1167, %v1151
    %v1584 = vpack.c.b16 %v1168, %v1152
    %v1585 = vpack.c.b16 %v1169, %v1153
    %v1586 = vpack.c.b16 %v1170, %v1154
    %v1587 = vpack.c.b16 %v1171, %v1155
    %v1588 = vpack.c.b16 %v1172, %v1156
    %v1589 = vpack.c.b16 %v1173, %v1157
    %v1590 = vpack.c.b16 %v1190, %v1174
    %v1591 = vpack.c.b16 %v1191, %v1175
    %v1592 = vpack.c.b16 %v1192, %v1176
    %v1593 = vpack.c.b16 %v1193, %v1177
    %v1594 = vpack.c.b16 %v1194, %v1178
    %v1595 = vpack.c.b16 %v1195, %v1179
    %v1596 = vpack.c.b16 %v1196, %v1180
    %v1597 = vpack.c.b16 %v1197, %v1181
    %v1598 = vpack.c.b16 %v1198, %v1182
    %v1599 = vpack.c.b16 %v1199, %v1183
    %v1600 = vpack.c.b16 %v1200, %v1184
    %v1601 = vpack.c.b16 %v1201, %v1185
    %v1602 = vpack.c.b16 %v1202, %v1186
    %v1603 = vpack.c.b16 %v1203, %v1187
    %v1604 = vpack.c.b16 %v1204, %v1188
    %v1605 = vpack.c.b16 %v1205, %v1189
    %v1606 = vpack.c.b16 %v1222, %v1206
    %v1607 = vpack.c.b16 %v1223, %v1207
    %v1608 = vpack.c.b16 %v1224, %v1208
    %v1609 = vpack.c.b16 %v1225, %v1209
    %v1610 = vpack.c.b16 %v1226, %v1210
    %v1611 = vpack.c.b16 %v1227, %v1211
    %v1612 = vpack.c.b16 %v1228, %v1212
    %v1613 = vpack.c.b16 %v1229, %v1213
    %v1614 = vpack.c.b16 %v1230, %v1214
    %v1615 = vpack.c.b16 %v1231, %v1215
    %v1616 = vpack.c.b16 %v1232, %v1216
    %v1617 = vpack.c.b16 %v1233, %v1217
    %v1618 = vpack.c.b16 %v1234, %v1218
    %v1619 = vpack.c.b16 %v1235, %v1219
    %v1620 = vpack.c.b16 %v1236, %v1220
    %v1621 = vpack.c.b16 %v1237, %v1221
    %v1622 = vpack.c.b16 %v1254, %v1238
    %v1623 = vpack.c.b16 %v1255, %v1239
    %v1624 = vpack.c.b16 %v1256, %v1240
    %v1625 = vpack.c.b16 %v1257, %v1241
    %v1626 = vpack.c.b16 %v1258, %v1242
    %v1627 = vpack.c.b16 %v1259, %v1243
    %v1628 = vpack.c.b16 %v1260, %v1244
    %v1629 = vpack.c.b16 %v1261, %v1245
    %v1630 = vpack.c.b16 %v1262, %v1246
    %v1631 = vpack.c.b16 %v1263, %v1247
    %v1632 = vpack.c.b16 %v1264, %v1248
    %v1633 = vpack.c.b16 %v1265, %v1249
    %v1634 = vpack.c.b16 %v1266, %v1250
    %v1635 = vpack.c.b16 %v1267, %v1251
    %v1636 = vpack.c.b16 %v1268, %v1252
    %v1637 = vpack.c.b16 %v1269, %v1253
    %v1638 = vpack.c.b16 %v1286, %v1270
    %v1639 = vpack.c.b16 %v1287, %v1271
    %v1640 = vpack.c.b16 %v1288, %v1272
    %v1641 = vpack.c.b16 %v1289, %v1273
    %v1642 = vpack.c.b16 %v1290, %v1274
    %v1643 = vpack.c.b16 %v1291, %v1275
    %v1644 = vpack.c.b16 %v1292, %v1276
    %v1645 = vpack.c.b16 %v1293, %v1277
    %v1646 = vpack.c.b16 %v1294, %v1278
    %v1647 = vpack.c.b16 %v1295, %v1279
    %v1648 = vpack.c.b16 %v1296, %v1280
    %v1649 = vpack.c.b16 %v1297, %v1281
    %v1650 = vpack.c.b16 %v1298, %v1282
    %v1651 = vpack.c.b16 %v1299, %v1283
    %v1652 = vpack.c.b16 %v1300, %v1284
    %v1653 = vpack.c.b16 %v1301, %v1285
    %v1654 = vpack.c.b16 %v1318, %v1302
    %v1655 = vpack.c.b16 %v1319, %v1303
    %v1656 = vpack.c.b16 %v1320, %v1304
    %v1657 = vpack.c.b16 %v1321, %v1305
    %v1658 = vpack.c.b16 %v1322, %v1306
    %v1659 = vpack.c.b16 %v1323, %v1307
    %v1660 = vpack.c.b16 %v1324, %v1308
    %v1661 = vpack.c.b16 %v1325, %v1309
    %v1662 = vpack.c.b16 %v1326, %v1310
    %v1663 = vpack.c.b16 %v1327, %v1311
    %v1664 = vpack.c.b16 %v1328, %v1312
    %v1665 = vpack.c.b16 %v1329, %v1313
    %v1666 = vpack.c.b16 %v1330, %v1314
    %v1667 = vpack.c.b16 %v1331, %v1315
    %v1668 = vpack.c.b16 %v1332, %v1316
    %v1669 = vpack.c.b16 %v1333, %v1317
    %v1670 = vpack.c.b16 %v1350, %v1334
    %v1671 = vpack.c.b16 %v1351, %v1335
    %v1672 = vpack.c.b16 %v1352, %v1336
    %v1673 = vpack.c.b16 %v1353, %v1337
    %v1674 = vpack.c.b16 %v1354, %v1338
    %v1675 = vpack.c.b16 %v1355, %v1339
    %v1676 = vpack.c.b16 %v1356, %v1340
    %v1677 = vpack.c.b16 %v1357, %v1341
    %v1678 = vpack.c.b16 %v1358, %v1342
    %v1679 = vpack.c.b16 %v1359, %v1343
    %v1680 = vpack.c.b16 %v1360, %v1344
    %v1681 = vpack.c.b16 %v1361, %v1345
    %v1682 = vpack.c.b16 %v1362, %v1346
    %v1683 = vpack.c.b16 %v1363, %v1347
    %v1684 = vpack.c.b16 %v1364, %v1348
    %v1685 = vpack.c.b16 %v1365, %v1349
    %v1686 = vpack.c.b16 %v1382, %v1366
    %v1687 = vpack.c.b16 %v1383, %v1367
    %v1688 = vpack.c.b16 %v1384, %v1368
    %v1689 = vpack.c.b16 %v1385, %v1369
    %v1690 = vpack.c.b16 %v1386, %v1370
    %v1691 = vpack.c.b16 %v1387, %v1371
    %v1692 = vpack.c.b16 %v1388, %v1372
    %v1693 = vpack.c.b16 %v1389, %v1373
    %v1694 = vpack.c.b16 %v1390, %v1374
    %v1695 = vpack.c.b16 %v1391, %v1375
    %v1696 = vpack.c.b16 %v1392, %v1376
    %v1697 = vpack.c.b16 %v1393, %v1377
    %v1698 = vpack.c.b16 %v1394, %v1378
    %v1699 = vpack.c.b16 %v1395, %v1379
    %v1700 = vpack.c.b16 %v1396, %v1380
    %v1701 = vpack.c.b16 %v1397, %v1381
    %vm1990 = vcmask 359424
    %v1992 = vsel %vm1990, %v97, 0
    %vm1994 = vcmask 1045504
    %v1996 = vsel %vm1994, %v1686, 0
    %v1999 = vsel %vm1994, %v1687, 0
    %v2002 = vsel %vm1994, %v1688, 0
    %v2005 = vsel %vm1994, %v1689, 0
    %v2008 = vsel %vm1994, %v1690, 0
    %v2011 = vsel %vm1994, %v1691, 0
    %v2014 = vsel %vm1994, %v1692, 0
    %v2017 = vsel %vm1994, %v1693, 0
    %v2020 = vsel %vm1994, %v1694, 0
    %v2023 = vsel %vm1994, %v1695, 0
    %v2026 = vsel %vm1994, %v1696, 0
    %v2029 = vsel %vm1994, %v1697, 0
    %v2032 = vsel %vm1994, %v1698, 0
    %v2035 = vsel %vm1994, %v1699, 0
    %v2038 = vsel %vm1994, %v1700, 0
    %v2041 = vsel %vm1994, %v1701, 0
    %2043 = vmatprep.subr.bf16.mxu0 %v1399
    %2044 = vmatpush1.bf16.msra.mxu0 %v1398
    %2045 = vmatprep.subr.bf16.mxu0 %v1415
    %2046 = vmatpush1.bf16.msra.mxu0 %v1414
    %2047 = vmatprep.subr.bf16.mxu0 %v1431
    %2048 = vmatpush1.bf16.msra.mxu0 %v1430
    %2049 = vmatprep.subr.bf16.mxu0 %v1447
    %2050 = vmatpush1.bf16.msra.mxu0 %v1446
    %2051 = vmatprep.subr.bf16.mxu0 %v1463
    %2052 = vmatpush1.bf16.msra.mxu0 %v1462
    %2053 = vmatprep.subr.bf16.mxu0 %v1479
    %2054 = vmatpush1.bf16.msra.mxu0 %v1478
    %2055 = vmatprep.subr.bf16.mxu0 %v1495
    %2056 = vmatpush1.bf16.msra.mxu0 %v1494
    %2057 = vmatprep.subr.bf16.mxu0 %v1511
    %2058 = vmatpush1.bf16.msra.mxu0 %v1510
    %2059 = vmatprep.subr.bf16.mxu0 %v1527
    %2060 = vmatpush1.bf16.msra.mxu0 %v1526
    %2061 = vmatprep.subr.bf16.mxu0 %v1543
    %2062 = vmatpush1.bf16.msra.mxu0 %v1542
    %2063 = vmatprep.subr.bf16.mxu0 %v1559
    %2064 = vmatpush1.bf16.msra.mxu0 %v1558
    %2065 = vmatprep.subr.bf16.mxu0 %v1575
    %2066 = vmatpush1.bf16.msra.mxu0 %v1574
    %2067 = vmatprep.subr.bf16.mxu0 %v1591
    %2068 = vmatpush1.bf16.msra.mxu0 %v1590
    %2069 = vmatprep.subr.bf16.mxu0 %v1607
    %2070 = vmatpush1.bf16.msra.mxu0 %v1606
    %2071 = vmatprep.subr.bf16.mxu0 %v1623
    %2072 = vmatpush1.bf16.msra.mxu0 %v1622
    %2073 = vmatprep.subr.bf16.mxu0 %v1639
    %2074 = vmatpush1.bf16.msra.mxu0 %v1638
    %2075 = vmatprep.mubr.bf16.mxu0 %v96
    %2076 = vmatmul.mubr.bf16.gmra.mrb[0].mxu0 %v95
    %v2077 = vpop.f32.mrb[0].mxu0
    %v2078 = vadd.f32 %v409, %v2077
    %v2079 = vpop.f32.mrb[0].mxu0
    %v2080 = vadd.f32 %v413, %v2079
    %v2081 = vpop.f32.mrb[0].mxu0
    %v2082 = vadd.f32 %v409, %v2081
    %v2083 = vpop.f32.mrb[0].mxu0
    %v2084 = vadd.f32 %v413, %v2083
    %2085 = vdwg.mxu0
    %2086 = vmatprep.subr.bf16.mxu0 %v1655
    %2087 = vmatpush1.bf16.msra.mxu0 %v1654
    %2088 = vmatprep.subr.bf16.mxu0 %v1671
    %2089 = vmatpush1.bf16.msra.mxu0 %v1670
    %2090 = vmatprep.subr.bf16.mxu0 %v1999
    %2091 = vmatpush1.bf16.msra.mxu0 %v1996
    %2092 = vmatprep.subr.bf16.mxu0 0
    %2093 = vmatpush1.bf16.msra.mxu0 0
    %2094 = vmatprep.subr.bf16.mxu0 0
    %2095 = vmatpush1.bf16.msra.mxu0 0
    %2096 = vmatprep.subr.bf16.mxu0 0
    %2097 = vmatpush1.bf16.msra.mxu0 0
    %2098 = vmatprep.subr.bf16.mxu0 0
    %2099 = vmatpush1.bf16.msra.mxu0 0
    %2100 = vmatprep.subr.bf16.mxu0 0
    %2101 = vmatpush1.bf16.msra.mxu0 0
    %2102 = vmatprep.subr.bf16.mxu0 0
    %2103 = vmatpush1.bf16.msra.mxu0 0
    %2104 = vmatprep.subr.bf16.mxu0 0
    %2105 = vmatpush1.bf16.msra.mxu0 0
    %2106 = vmatprep.subr.bf16.mxu0 0
    %2107 = vmatpush1.bf16.msra.mxu0 0
    %2108 = vmatprep.subr.bf16.mxu0 0
    %2109 = vmatpush1.bf16.msra.mxu0 0
    %2110 = vmatprep.subr.bf16.mxu0 0
    %2111 = vmatpush1.bf16.msra.mxu0 0
    %2112 = vmatprep.subr.bf16.mxu0 0
    %2113 = vmatpush1.bf16.msra.mxu0 0
    %2114 = vmatprep.subr.bf16.mxu0 0
    %2115 = vmatpush1.bf16.msra.mxu0 0
    %2116 = vmatprep.subr.bf16.mxu0 0
    %2117 = vmatpush1.bf16.msra.mxu0 0
    %2118 = vmatprep.mubr.bf16.mxu0 0
    %2119 = vmatmul.mubr.bf16.gmra.mrb[0].mxu0 %v1992
    %v2120 = vpop.f32.mrb[0].mxu0
    %v2121 = vadd.f32 %v2078, %v2120
    %v2122 = vpop.f32.mrb[0].mxu0
    %v2123 = vadd.f32 %v2080, %v2122
    %v2124 = vpop.f32.mrb[0].mxu0
    %v2125 = vadd.f32 %v2082, %v2124
    %v2126 = vpop.f32.mrb[0].mxu0
    %v2127 = vadd.f32 %v2084, %v2126
    %2128 = vdwg.mxu0
    %2129 = vmatprep.subr.bf16.mxu0 %v1401
    %2130 = vmatpush1.bf16.msra.mxu0 %v1400
    %2131 = vmatprep.subr.bf16.mxu0 %v1417
    %2132 = vmatpush1.bf16.msra.mxu0 %v1416
    %2133 = vmatprep.subr.bf16.mxu0 %v1433
    %2134 = vmatpush1.bf16.msra.mxu0 %v1432
    %2135 = vmatprep.subr.bf16.mxu0 %v1449
    %2136 = vmatpush1.bf16.msra.mxu0 %v1448
    %2137 = vmatprep.subr.bf16.mxu0 %v1465
    %2138 = vmatpush1.bf16.msra.mxu0 %v1464
    %2139 = vmatprep.subr.bf16.mxu0 %v1481
    %2140 = vmatpush1.bf16.msra.mxu0 %v1480
    %2141 = vmatprep.subr.bf16.mxu0 %v1497
    %2142 = vmatpush1.bf16.msra.mxu0 %v1496
    %2143 = vmatprep.subr.bf16.mxu0 %v1513
    %2144 = vmatpush1.bf16.msra.mxu0 %v1512
    %2145 = vmatprep.subr.bf16.mxu0 %v1529
    %2146 = vmatpush1.bf16.msra.mxu0 %v1528
    %2147 = vmatprep.subr.bf16.mxu0 %v1545
    %2148 = vmatpush1.bf16.msra.mxu0 %v1544
    %2149 = vmatprep.subr.bf16.mxu0 %v1561
    %2150 = vmatpush1.bf16.msra.mxu0 %v1560
    %2151 = vmatprep.subr.bf16.mxu0 %v1577
    %2152 = vmatpush1.bf16.msra.mxu0 %v1576
    %2153 = vmatprep.subr.bf16.mxu0 %v1593
    %2154 = vmatpush1.bf16.msra.mxu0 %v1592
    %2155 = vmatprep.subr.bf16.mxu0 %v1609
    %2156 = vmatpush1.bf16.msra.mxu0 %v1608
    %2157 = vmatprep.subr.bf16.mxu0 %v1625
    %2158 = vmatpush1.bf16.msra.mxu0 %v1624
    %2159 = vmatprep.subr.bf16.mxu0 %v1641
    %2160 = vmatpush1.bf16.msra.mxu0 %v1640
    %2161 = vmatprep.mubr.bf16.mxu0 %v96
    %2162 = vmatmul.mubr.bf16.gmra.mrb[0].mxu0 %v95
    %v2163 = vpop.f32.mrb[0].mxu0
    %v2164 = vadd.f32 %v417, %v2163
    %v2165 = vpop.f32.mrb[0].mxu0
    %v2166 = vadd.f32 %v421, %v2165
    %v2167 = vpop.f32.mrb[0].mxu0
    %v2168 = vadd.f32 %v417, %v2167
    %v2169 = vpop.f32.mrb[0].mxu0
    %v2170 = vadd.f32 %v421, %v2169
    %2171 = vdwg.mxu0
    %2172 = vmatprep.subr.bf16.mxu0 %v1657
    %2173 = vmatpush1.bf16.msra.mxu0 %v1656
    %2174 = vmatprep.subr.bf16.mxu0 %v1673
    %2175 = vmatpush1.bf16.msra.mxu0 %v1672
    %2176 = vmatprep.subr.bf16.mxu0 %v2005
    %2177 = vmatpush1.bf16.msra.mxu0 %v2002
    %2178 = vmatprep.subr.bf16.mxu0 0
    %2179 = vmatpush1.bf16.msra.mxu0 0
    %2180 = vmatprep.subr.bf16.mxu0 0
    %2181 = vmatpush1.bf16.msra.mxu0 0
    %2182 = vmatprep.subr.bf16.mxu0 0
    %2183 = vmatpush1.bf16.msra.mxu0 0
    %2184 = vmatprep.subr.bf16.mxu0 0
    %2185 = vmatpush1.bf16.msra.mxu0 0
    %2186 = vmatprep.subr.bf16.mxu0 0
    %2187 = vmatpush1.bf16.msra.mxu0 0
    %2188 = vmatprep.subr.bf16.mxu0 0
    %2189 = vmatpush1.bf16.msra.mxu0 0
    %2190 = vmatprep.subr.bf16.mxu0 0
    %2191 = vmatpush1.bf16.msra.mxu0 0
    %2192 = vmatprep.subr.bf16.mxu0 0
    %2193 = vmatpush1.bf16.msra.mxu0 0
    %2194 = vmatprep.subr.bf16.mxu0 0
    %2195 = vmatpush1.bf16.msra.mxu0 0
    %2196 = vmatprep.subr.bf16.mxu0 0
    %2197 = vmatpush1.bf16.msra.mxu0 0
    %2198 = vmatprep.subr.bf16.mxu0 0
    %2199 = vmatpush1.bf16.msra.mxu0 0
    %2200 = vmatprep.subr.bf16.mxu0 0
    %2201 = vmatpush1.bf16.msra.mxu0 0
    %2202 = vmatprep.subr.bf16.mxu0 0
    %2203 = vmatpush1.bf16.msra.mxu0 0
    %2204 = vmatprep.mubr.bf16.mxu0 0
    %2205 = vmatmul.mubr.bf16.gmra.mrb[0].mxu0 %v1992
    %v2206 = vpop.f32.mrb[0].mxu0
    %v2207 = vadd.f32 %v2164, %v2206
    %v2208 = vpop.f32.mrb[0].mxu0
    %v2209 = vadd.f32 %v2166, %v2208
    %v2210 = vpop.f32.mrb[0].mxu0
    %v2211 = vadd.f32 %v2168, %v2210
    %v2212 = vpop.f32.mrb[0].mxu0
    %v2213 = vadd.f32 %v2170, %v2212
    %2214 = vdwg.mxu0
    %2215 = vmatprep.subr.bf16.mxu0 %v1403
    %2216 = vmatpush1.bf16.msra.mxu0 %v1402
    %2217 = vmatprep.subr.bf16.mxu0 %v1419
    %2218 = vmatpush1.bf16.msra.mxu0 %v1418
    %2219 = vmatprep.subr.bf16.mxu0 %v1435
    %2220 = vmatpush1.bf16.msra.mxu0 %v1434
    %2221 = vmatprep.subr.bf16.mxu0 %v1451
    %2222 = vmatpush1.bf16.msra.mxu0 %v1450
    %2223 = vmatprep.subr.bf16.mxu0 %v1467
    %2224 = vmatpush1.bf16.msra.mxu0 %v1466
    %2225 = vmatprep.subr.bf16.mxu0 %v1483
    %2226 = vmatpush1.bf16.msra.mxu0 %v1482
    %2227 = vmatprep.subr.bf16.mxu0 %v1499
    %2228 = vmatpush1.bf16.msra.mxu0 %v1498
    %2229 = vmatprep.subr.bf16.mxu0 %v1515
    %2230 = vmatpush1.bf16.msra.mxu0 %v1514
    %2231 = vmatprep.subr.bf16.mxu0 %v1531
    %2232 = vmatpush1.bf16.msra.mxu0 %v1530
    %2233 = vmatprep.subr.bf16.mxu0 %v1547
    %2234 = vmatpush1.bf16.msra.mxu0 %v1546
    %2235 = vmatprep.subr.bf16.mxu0 %v1563
    %2236 = vmatpush1.bf16.msra.mxu0 %v1562
    %2237 = vmatprep.subr.bf16.mxu0 %v1579
    %2238 = vmatpush1.bf16.msra.mxu0 %v1578
    %2239 = vmatprep.subr.bf16.mxu0 %v1595
    %2240 = vmatpush1.bf16.msra.mxu0 %v1594
    %2241 = vmatprep.subr.bf16.mxu0 %v1611
    %2242 = vmatpush1.bf16.msra.mxu0 %v1610
    %2243 = vmatprep.subr.bf16.mxu0 %v1627
    %2244 = vmatpush1.bf16.msra.mxu0 %v1626
    %2245 = vmatprep.subr.bf16.mxu0 %v1643
    %2246 = vmatpush1.bf16.msra.mxu0 %v1642
    %2247 = vmatprep.mubr.bf16.mxu0 %v96
    %2248 = vmatmul.mubr.bf16.gmra.mrb[0].mxu0 %v95
    %v2249 = vpop.f32.mrb[0].mxu0
    %v2250 = vadd.f32 %v425, %v2249
    %v2251 = vpop.f32.mrb[0].mxu0
    %v2252 = vadd.f32 %v429, %v2251
    %v2253 = vpop.f32.mrb[0].mxu0
    %v2254 = vadd.f32 %v425, %v2253
    %v2255 = vpop.f32.mrb[0].mxu0
    %v2256 = vadd.f32 %v429, %v2255
    %2257 = vdwg.mxu0
    %2258 = vmatprep.subr.bf16.mxu0 %v1659
    %2259 = vmatpush1.bf16.msra.mxu0 %v1658
    %2260 = vmatprep.subr.bf16.mxu0 %v1675
    %2261 = vmatpush1.bf16.msra.mxu0 %v1674
    %2262 = vmatprep.subr.bf16.mxu0 %v2011
    %2263 = vmatpush1.bf16.msra.mxu0 %v2008
    %2264 = vmatprep.subr.bf16.mxu0 0
    %2265 = vmatpush1.bf16.msra.mxu0 0
    %2266 = vmatprep.subr.bf16.mxu0 0
    %2267 = vmatpush1.bf16.msra.mxu0 0
    %2268 = vmatprep.subr.bf16.mxu0 0
    %2269 = vmatpush1.bf16.msra.mxu0 0
    %2270 = vmatprep.subr.bf16.mxu0 0
    %2271 = vmatpush1.bf16.msra.mxu0 0
    %2272 = vmatprep.subr.bf16.mxu0 0
    %2273 = vmatpush1.bf16.msra.mxu0 0
    %2274 = vmatprep.subr.bf16.mxu0 0
    %2275 = vmatpush1.bf16.msra.mxu0 0
    %2276 = vmatprep.subr.bf16.mxu0 0
    %2277 = vmatpush1.bf16.msra.mxu0 0
    %2278 = vmatprep.subr.bf16.mxu0 0
    %2279 = vmatpush1.bf16.msra.mxu0 0
    %2280 = vmatprep.subr.bf16.mxu0 0
    %2281 = vmatpush1.bf16.msra.mxu0 0
    %2282 = vmatprep.subr.bf16.mxu0 0
    %2283 = vmatpush1.bf16.msra.mxu0 0
    %2284 = vmatprep.subr.bf16.mxu0 0
    %2285 = vmatpush1.bf16.msra.mxu0 0
    %2286 = vmatprep.subr.bf16.mxu0 0
    %2287 = vmatpush1.bf16.msra.mxu0 0
    %2288 = vmatprep.subr.bf16.mxu0 0
    %2289 = vmatpush1.bf16.msra.mxu0 0
    %2290 = vmatprep.mubr.bf16.mxu0 0
    %2291 = vmatmul.mubr.bf16.gmra.mrb[0].mxu0 %v1992
    %v2292 = vpop.f32.mrb[0].mxu0
    %v2293 = vadd.f32 %v2250, %v2292
    %v2294 = vpop.f32.mrb[0].mxu0
    %v2295 = vadd.f32 %v2252, %v2294
    %v2296 = vpop.f32.mrb[0].mxu0
    %v2297 = vadd.f32 %v2254, %v2296
    %v2298 = vpop.f32.mrb[0].mxu0
    %v2299 = vadd.f32 %v2256, %v2298
    %2300 = vdwg.mxu0
    %2301 = vmatprep.subr.bf16.mxu0 %v1405
    %2302 = vmatpush1.bf16.msra.mxu0 %v1404
    %2303 = vmatprep.subr.bf16.mxu0 %v1421
    %2304 = vmatpush1.bf16.msra.mxu0 %v1420
    %2305 = vmatprep.subr.bf16.mxu0 %v1437
    %2306 = vmatpush1.bf16.msra.mxu0 %v1436
    %2307 = vmatprep.subr.bf16.mxu0 %v1453
    %2308 = vmatpush1.bf16.msra.mxu0 %v1452
    %2309 = vmatprep.subr.bf16.mxu0 %v1469
    %2310 = vmatpush1.bf16.msra.mxu0 %v1468
    %2311 = vmatprep.subr.bf16.mxu0 %v1485
    %2312 = vmatpush1.bf16.msra.mxu0 %v1484
    %2313 = vmatprep.subr.bf16.mxu0 %v1501
    %2314 = vmatpush1.bf16.msra.mxu0 %v1500
    %2315 = vmatprep.subr.bf16.mxu0 %v1517
    %2316 = vmatpush1.bf16.msra.mxu0 %v1516
    %2317 = vmatprep.subr.bf16.mxu0 %v1533
    %2318 = vmatpush1.bf16.msra.mxu0 %v1532
    %2319 = vmatprep.subr.bf16.mxu0 %v1549
    %2320 = vmatpush1.bf16.msra.mxu0 %v1548
    %2321 = vmatprep.subr.bf16.mxu0 %v1565
    %2322 = vmatpush1.bf16.msra.mxu0 %v1564
    %2323 = vmatprep.subr.bf16.mxu0 %v1581
    %2324 = vmatpush1.bf16.msra.mxu0 %v1580
    %2325 = vmatprep.subr.bf16.mxu0 %v1597
    %2326 = vmatpush1.bf16.msra.mxu0 %v1596
    %2327 = vmatprep.subr.bf16.mxu0 %v1613
    %2328 = vmatpush1.bf16.msra.mxu0 %v1612
    %2329 = vmatprep.subr.bf16.mxu0 %v1629
    %2330 = vmatpush1.bf16.msra.mxu0 %v1628
    %2331 = vmatprep.subr.bf16.mxu0 %v1645
    %2332 = vmatpush1.bf16.msra.mxu0 %v1644
    %2333 = vmatprep.mubr.bf16.mxu0 %v96
    %2334 = vmatmul.mubr.bf16.gmra.mrb[0].mxu0 %v95
    %v2335 = vpop.f32.mrb[0].mxu0
    %v2336 = vadd.f32 %v433, %v2335
    %v2337 = vpop.f32.mrb[0].mxu0
    %v2338 = vadd.f32 %v437, %v2337
    %v2339 = vpop.f32.mrb[0].mxu0
    %v2340 = vadd.f32 %v433, %v2339
    %v2341 = vpop.f32.mrb[0].mxu0
    %v2342 = vadd.f32 %v437, %v2341
    %2343 = vdwg.mxu0
    %2344 = vmatprep.subr.bf16.mxu0 %v1661
    %2345 = vmatpush1.bf16.msra.mxu0 %v1660
    %2346 = vmatprep.subr.bf16.mxu0 %v1677
    %2347 = vmatpush1.bf16.msra.mxu0 %v1676
    %2348 = vmatprep.subr.bf16.mxu0 %v2017
    %2349 = vmatpush1.bf16.msra.mxu0 %v2014
    %2350 = vmatprep.subr.bf16.mxu0 0
    %2351 = vmatpush1.bf16.msra.mxu0 0
    %2352 = vmatprep.subr.bf16.mxu0 0
    %2353 = vmatpush1.bf16.msra.mxu0 0
    %2354 = vmatprep.subr.bf16.mxu0 0
    %2355 = vmatpush1.bf16.msra.mxu0 0
    %2356 = vmatprep.subr.bf16.mxu0 0
    %2357 = vmatpush1.bf16.msra.mxu0 0
    %2358 = vmatprep.subr.bf16.mxu0 0
    %2359 = vmatpush1.bf16.msra.mxu0 0
    %2360 = vmatprep.subr.bf16.mxu0 0
    %2361 = vmatpush1.bf16.msra.mxu0 0
    %2362 = vmatprep.subr.bf16.mxu0 0
    %2363 = vmatpush1.bf16.msra.mxu0 0
    %2364 = vmatprep.subr.bf16.mxu0 0
    %2365 = vmatpush1.bf16.msra.mxu0 0
    %2366 = vmatprep.subr.bf16.mxu0 0
    %2367 = vmatpush1.bf16.msra.mxu0 0
    %2368 = vmatprep.subr.bf16.mxu0 0
    %2369 = vmatpush1.bf16.msra.mxu0 0
    %2370 = vmatprep.subr.bf16.mxu0 0
    %2371 = vmatpush1.bf16.msra.mxu0 0
    %2372 = vmatprep.subr.bf16.mxu0 0
    %2373 = vmatpush1.bf16.msra.mxu0 0
    %2374 = vmatprep.subr.bf16.mxu0 0
    %2375 = vmatpush1.bf16.msra.mxu0 0
    %2376 = vmatprep.mubr.bf16.mxu0 0
    %2377 = vmatmul.mubr.bf16.gmra.mrb[0].mxu0 %v1992
    %v2378 = vpop.f32.mrb[0].mxu0
    %v2379 = vadd.f32 %v2336, %v2378
    %v2380 = vpop.f32.mrb[0].mxu0
    %v2381 = vadd.f32 %v2338, %v2380
    %v2382 = vpop.f32.mrb[0].mxu0
    %v2383 = vadd.f32 %v2340, %v2382
    %v2384 = vpop.f32.mrb[0].mxu0
    %v2385 = vadd.f32 %v2342, %v2384
    %2386 = vdwg.mxu0
    %2387 = vmatprep.subr.bf16.mxu0 %v1407
    %2388 = vmatpush1.bf16.msra.mxu0 %v1406
    %2389 = vmatprep.subr.bf16.mxu0 %v1423
    %2390 = vmatpush1.bf16.msra.mxu0 %v1422
    %2391 = vmatprep.subr.bf16.mxu0 %v1439
    %2392 = vmatpush1.bf16.msra.mxu0 %v1438
    %2393 = vmatprep.subr.bf16.mxu0 %v1455
    %2394 = vmatpush1.bf16.msra.mxu0 %v1454
    %2395 = vmatprep.subr.bf16.mxu0 %v1471
    %2396 = vmatpush1.bf16.msra.mxu0 %v1470
    %2397 = vmatprep.subr.bf16.mxu0 %v1487
    %2398 = vmatpush1.bf16.msra.mxu0 %v1486
    %2399 = vmatprep.subr.bf16.mxu0 %v1503
    %2400 = vmatpush1.bf16.msra.mxu0 %v1502
    %2401 = vmatprep.subr.bf16.mxu0 %v1519
    %2402 = vmatpush1.bf16.msra.mxu0 %v1518
    %2403 = vmatprep.subr.bf16.mxu0 %v1535
    %2404 = vmatpush1.bf16.msra.mxu0 %v1534
    %2405 = vmatprep.subr.bf16.mxu0 %v1551
    %2406 = vmatpush1.bf16.msra.mxu0 %v1550
    %2407 = vmatprep.subr.bf16.mxu0 %v1567
    %2408 = vmatpush1.bf16.msra.mxu0 %v1566
    %2409 = vmatprep.subr.bf16.mxu0 %v1583
    %2410 = vmatpush1.bf16.msra.mxu0 %v1582
    %2411 = vmatprep.subr.bf16.mxu0 %v1599
    %2412 = vmatpush1.bf16.msra.mxu0 %v1598
    %2413 = vmatprep.subr.bf16.mxu0 %v1615
    %2414 = vmatpush1.bf16.msra.mxu0 %v1614
    %2415 = vmatprep.subr.bf16.mxu0 %v1631
    %2416 = vmatpush1.bf16.msra.mxu0 %v1630
    %2417 = vmatprep.subr.bf16.mxu0 %v1647
    %2418 = vmatpush1.bf16.msra.mxu0 %v1646
    %2419 = vmatprep.mubr.bf16.mxu0 %v96
    %2420 = vmatmul.mubr.bf16.gmra.mrb[0].mxu0 %v95
    %v2421 = vpop.f32.mrb[0].mxu0
    %v2422 = vadd.f32 %v441, %v2421
    %v2423 = vpop.f32.mrb[0].mxu0
    %v2424 = vadd.f32 %v445, %v2423
    %v2425 = vpop.f32.mrb[0].mxu0
    %v2426 = vadd.f32 %v441, %v2425
    %v2427 = vpop.f32.mrb[0].mxu0
    %v2428 = vadd.f32 %v445, %v2427
    %2429 = vdwg.mxu0
    %2430 = vmatprep.subr.bf16.mxu0 %v1663
    %2431 = vmatpush1.bf16.msra.mxu0 %v1662
    %2432 = vmatprep.subr.bf16.mxu0 %v1679
    %2433 = vmatpush1.bf16.msra.mxu0 %v1678
    %2434 = vmatprep.subr.bf16.mxu0 %v2023
    %2435 = vmatpush1.bf16.msra.mxu0 %v2020
    %2436 = vmatprep.subr.bf16.mxu0 0
    %2437 = vmatpush1.bf16.msra.mxu0 0
    %2438 = vmatprep.subr.bf16.mxu0 0
    %2439 = vmatpush1.bf16.msra.mxu0 0
    %2440 = vmatprep.subr.bf16.mxu0 0
    %2441 = vmatpush1.bf16.msra.mxu0 0
    %2442 = vmatprep.subr.bf16.mxu0 0
    %2443 = vmatpush1.bf16.msra.mxu0 0
    %2444 = vmatprep.subr.bf16.mxu0 0
    %2445 = vmatpush1.bf16.msra.mxu0 0
    %2446 = vmatprep.subr.bf16.mxu0 0
    %2447 = vmatpush1.bf16.msra.mxu0 0
    %2448 = vmatprep.subr.bf16.mxu0 0
    %2449 = vmatpush1.bf16.msra.mxu0 0
    %2450 = vmatprep.subr.bf16.mxu0 0
    %2451 = vmatpush1.bf16.msra.mxu0 0
    %2452 = vmatprep.subr.bf16.mxu0 0
    %2453 = vmatpush1.bf16.msra.mxu0 0
    %2454 = vmatprep.subr.bf16.mxu0 0
    %2455 = vmatpush1.bf16.msra.mxu0 0
    %2456 = vmatprep.subr.bf16.mxu0 0
    %2457 = vmatpush1.bf16.msra.mxu0 0
    %2458 = vmatprep.subr.bf16.mxu0 0
    %2459 = vmatpush1.bf16.msra.mxu0 0
    %2460 = vmatprep.subr.bf16.mxu0 0
    %2461 = vmatpush1.bf16.msra.mxu0 0
    %2462 = vmatprep.mubr.bf16.mxu0 0
    %2463 = vmatmul.mubr.bf16.gmra.mrb[0].mxu0 %v1992
    %v2464 = vpop.f32.mrb[0].mxu0
    %v2465 = vadd.f32 %v2422, %v2464
    %v2466 = vpop.f32.mrb[0].mxu0
    %v2467 = vadd.f32 %v2424, %v2466
    %v2468 = vpop.f32.mrb[0].mxu0
    %v2469 = vadd.f32 %v2426, %v2468
    %v2470 = vpop.f32.mrb[0].mxu0
    %v2471 = vadd.f32 %v2428, %v2470
    %2472 = vdwg.mxu0
    %2473 = vmatprep.subr.bf16.mxu0 %v1409
    %2474 = vmatpush1.bf16.msra.mxu0 %v1408
    %2475 = vmatprep.subr.bf16.mxu0 %v1425
    %2476 = vmatpush1.bf16.msra.mxu0 %v1424
    %2477 = vmatprep.subr.bf16.mxu0 %v1441
    %2478 = vmatpush1.bf16.msra.mxu0 %v1440
    %2479 = vmatprep.subr.bf16.mxu0 %v1457
    %2480 = vmatpush1.bf16.msra.mxu0 %v1456
    %2481 = vmatprep.subr.bf16.mxu0 %v1473
    %2482 = vmatpush1.bf16.msra.mxu0 %v1472
    %2483 = vmatprep.subr.bf16.mxu0 %v1489
    %2484 = vmatpush1.bf16.msra.mxu0 %v1488
    %2485 = vmatprep.subr.bf16.mxu0 %v1505
    %2486 = vmatpush1.bf16.msra.mxu0 %v1504
    %2487 = vmatprep.subr.bf16.mxu0 %v1521
    %2488 = vmatpush1.bf16.msra.mxu0 %v1520
    %2489 = vmatprep.subr.bf16.mxu0 %v1537
    %2490 = vmatpush1.bf16.msra.mxu0 %v1536
    %2491 = vmatprep.subr.bf16.mxu0 %v1553
    %2492 = vmatpush1.bf16.msra.mxu0 %v1552
    %2493 = vmatprep.subr.bf16.mxu0 %v1569
    %2494 = vmatpush1.bf16.msra.mxu0 %v1568
    %2495 = vmatprep.subr.bf16.mxu0 %v1585
    %2496 = vmatpush1.bf16.msra.mxu0 %v1584
    %2497 = vmatprep.subr.bf16.mxu0 %v1601
    %2498 = vmatpush1.bf16.msra.mxu0 %v1600
    %2499 = vmatprep.subr.bf16.mxu0 %v1617
    %2500 = vmatpush1.bf16.msra.mxu0 %v1616
    %2501 = vmatprep.subr.bf16.mxu0 %v1633
    %2502 = vmatpush1.bf16.msra.mxu0 %v1632
    %2503 = vmatprep.subr.bf16.mxu0 %v1649
    %2504 = vmatpush1.bf16.msra.mxu0 %v1648
    %2505 = vmatprep.mubr.bf16.mxu0 %v96
    %2506 = vmatmul.mubr.bf16.gmra.mrb[0].mxu0 %v95
    %v2507 = vpop.f32.mrb[0].mxu0
    %v2508 = vadd.f32 %v449, %v2507
    %v2509 = vpop.f32.mrb[0].mxu0
    %v2510 = vadd.f32 %v453, %v2509
    %v2511 = vpop.f32.mrb[0].mxu0
    %v2512 = vadd.f32 %v449, %v2511
    %v2513 = vpop.f32.mrb[0].mxu0
    %v2514 = vadd.f32 %v453, %v2513
    %2515 = vdwg.mxu0
    %2516 = vmatprep.subr.bf16.mxu0 %v1665
    %2517 = vmatpush1.bf16.msra.mxu0 %v1664
    %2518 = vmatprep.subr.bf16.mxu0 %v1681
    %2519 = vmatpush1.bf16.msra.mxu0 %v1680
    %2520 = vmatprep.subr.bf16.mxu0 %v2029
    %2521 = vmatpush1.bf16.msra.mxu0 %v2026
    %2522 = vmatprep.subr.bf16.mxu0 0
    %2523 = vmatpush1.bf16.msra.mxu0 0
    %2524 = vmatprep.subr.bf16.mxu0 0
    %2525 = vmatpush1.bf16.msra.mxu0 0
    %2526 = vmatprep.subr.bf16.mxu0 0
    %2527 = vmatpush1.bf16.msra.mxu0 0
    %2528 = vmatprep.subr.bf16.mxu0 0
    %2529 = vmatpush1.bf16.msra.mxu0 0
    %2530 = vmatprep.subr.bf16.mxu0 0
    %2531 = vmatpush1.bf16.msra.mxu0 0
    %2532 = vmatprep.subr.bf16.mxu0 0
    %2533 = vmatpush1.bf16.msra.mxu0 0
    %2534 = vmatprep.subr.bf16.mxu0 0
    %2535 = vmatpush1.bf16.msra.mxu0 0
    %2536 = vmatprep.subr.bf16.mxu0 0
    %2537 = vmatpush1.bf16.msra.mxu0 0
    %2538 = vmatprep.subr.bf16.mxu0 0
    %2539 = vmatpush1.bf16.msra.mxu0 0
    %2540 = vmatprep.subr.bf16.mxu0 0
    %2541 = vmatpush1.bf16.msra.mxu0 0
    %2542 = vmatprep.subr.bf16.mxu0 0
    %2543 = vmatpush1.bf16.msra.mxu0 0
    %2544 = vmatprep.subr.bf16.mxu0 0
    %2545 = vmatpush1.bf16.msra.mxu0 0
    %2546 = vmatprep.subr.bf16.mxu0 0
    %2547 = vmatpush1.bf16.msra.mxu0 0
    %2548 = vmatprep.mubr.bf16.mxu0 0
    %2549 = vmatmul.mubr.bf16.gmra.mrb[0].mxu0 %v1992
    %v2550 = vpop.f32.mrb[0].mxu0
    %v2551 = vadd.f32 %v2508, %v2550
    %v2552 = vpop.f32.mrb[0].mxu0
    %v2553 = vadd.f32 %v2510, %v2552
    %v2554 = vpop.f32.mrb[0].mxu0
    %v2555 = vadd.f32 %v2512, %v2554
    %v2556 = vpop.f32.mrb[0].mxu0
    %v2557 = vadd.f32 %v2514, %v2556
    %2558 = vdwg.mxu0
    %2559 = vmatprep.subr.bf16.mxu0 %v1411
    %2560 = vmatpush1.bf16.msra.mxu0 %v1410
    %2561 = vmatprep.subr.bf16.mxu0 %v1427
    %2562 = vmatpush1.bf16.msra.mxu0 %v1426
    %2563 = vmatprep.subr.bf16.mxu0 %v1443
    %2564 = vmatpush1.bf16.msra.mxu0 %v1442
    %2565 = vmatprep.subr.bf16.mxu0 %v1459
    %2566 = vmatpush1.bf16.msra.mxu0 %v1458
    %2567 = vmatprep.subr.bf16.mxu0 %v1475
    %2568 = vmatpush1.bf16.msra.mxu0 %v1474
    %2569 = vmatprep.subr.bf16.mxu0 %v1491
    %2570 = vmatpush1.bf16.msra.mxu0 %v1490
    %2571 = vmatprep.subr.bf16.mxu0 %v1507
    %2572 = vmatpush1.bf16.msra.mxu0 %v1506
    %2573 = vmatprep.subr.bf16.mxu0 %v1523
    %2574 = vmatpush1.bf16.msra.mxu0 %v1522
    %2575 = vmatprep.subr.bf16.mxu0 %v1539
    %2576 = vmatpush1.bf16.msra.mxu0 %v1538
    %2577 = vmatprep.subr.bf16.mxu0 %v1555
    %2578 = vmatpush1.bf16.msra.mxu0 %v1554
    %2579 = vmatprep.subr.bf16.mxu0 %v1571
    %2580 = vmatpush1.bf16.msra.mxu0 %v1570
    %2581 = vmatprep.subr.bf16.mxu0 %v1587
    %2582 = vmatpush1.bf16.msra.mxu0 %v1586
    %2583 = vmatprep.subr.bf16.mxu0 %v1603
    %2584 = vmatpush1.bf16.msra.mxu0 %v1602
    %2585 = vmatprep.subr.bf16.mxu0 %v1619
    %2586 = vmatpush1.bf16.msra.mxu0 %v1618
    %2587 = vmatprep.subr.bf16.mxu0 %v1635
    %2588 = vmatpush1.bf16.msra.mxu0 %v1634
    %2589 = vmatprep.subr.bf16.mxu0 %v1651
    %2590 = vmatpush1.bf16.msra.mxu0 %v1650
    %2591 = vmatprep.mubr.bf16.mxu0 %v96
    %2592 = vmatmul.mubr.bf16.gmra.mrb[0].mxu0 %v95
    %v2593 = vpop.f32.mrb[0].mxu0
    %v2594 = vadd.f32 %v457, %v2593
    %v2595 = vpop.f32.mrb[0].mxu0
    %v2596 = vadd.f32 %v461, %v2595
    %v2597 = vpop.f32.mrb[0].mxu0
    %v2598 = vadd.f32 %v457, %v2597
    %v2599 = vpop.f32.mrb[0].mxu0
    %v2600 = vadd.f32 %v461, %v2599
    %2601 = vdwg.mxu0
    %2602 = vmatprep.subr.bf16.mxu0 %v1667
    %2603 = vmatpush1.bf16.msra.mxu0 %v1666
    %2604 = vmatprep.subr.bf16.mxu0 %v1683
    %2605 = vmatpush1.bf16.msra.mxu0 %v1682
    %2606 = vmatprep.subr.bf16.mxu0 %v2035
    %2607 = vmatpush1.bf16.msra.mxu0 %v2032
    %2608 = vmatprep.subr.bf16.mxu0 0
    %2609 = vmatpush1.bf16.msra.mxu0 0
    %2610 = vmatprep.subr.bf16.mxu0 0
    %2611 = vmatpush1.bf16.msra.mxu0 0
    %2612 = vmatprep.subr.bf16.mxu0 0
    %2613 = vmatpush1.bf16.msra.mxu0 0
    %2614 = vmatprep.subr.bf16.mxu0 0
    %2615 = vmatpush1.bf16.msra.mxu0 0
    %2616 = vmatprep.subr.bf16.mxu0 0
    %2617 = vmatpush1.bf16.msra.mxu0 0
    %2618 = vmatprep.subr.bf16.mxu0 0
    %2619 = vmatpush1.bf16.msra.mxu0 0
    %2620 = vmatprep.subr.bf16.mxu0 0
    %2621 = vmatpush1.bf16.msra.mxu0 0
    %2622 = vmatprep.subr.bf16.mxu0 0
    %2623 = vmatpush1.bf16.msra.mxu0 0
    %2624 = vmatprep.subr.bf16.mxu0 0
    %2625 = vmatpush1.bf16.msra.mxu0 0
    %2626 = vmatprep.subr.bf16.mxu0 0
    %2627 = vmatpush1.bf16.msra.mxu0 0
    %2628 = vmatprep.subr.bf16.mxu0 0
    %2629 = vmatpush1.bf16.msra.mxu0 0
    %2630 = vmatprep.subr.bf16.mxu0 0
    %2631 = vmatpush1.bf16.msra.mxu0 0
    %2632 = vmatprep.subr.bf16.mxu0 0
    %2633 = vmatpush1.bf16.msra.mxu0 0
    %2634 = vmatprep.mubr.bf16.mxu0 0
    %2635 = vmatmul.mubr.bf16.gmra.mrb[0].mxu0 %v1992
    %v2636 = vpop.f32.mrb[0].mxu0
    %v2637 = vadd.f32 %v2594, %v2636
    %v2638 = vpop.f32.mrb[0].mxu0
    %v2639 = vadd.f32 %v2596, %v2638
    %v2640 = vpop.f32.mrb[0].mxu0
    %v2641 = vadd.f32 %v2598, %v2640
    %v2642 = vpop.f32.mrb[0].mxu0
    %v2643 = vadd.f32 %v2600, %v2642
    %2644 = vdwg.mxu0
    %2645 = vmatprep.subr.bf16.mxu0 %v1413
    %2646 = vmatpush1.bf16.msra.mxu0 %v1412
    %2647 = vmatprep.subr.bf16.mxu0 %v1429
    %2648 = vmatpush1.bf16.msra.mxu0 %v1428
    %2649 = vmatprep.subr.bf16.mxu0 %v1445
    %2650 = vmatpush1.bf16.msra.mxu0 %v1444
    %2651 = vmatprep.subr.bf16.mxu0 %v1461
    %2652 = vmatpush1.bf16.msra.mxu0 %v1460
    %2653 = vmatprep.subr.bf16.mxu0 %v1477
    %2654 = vmatpush1.bf16.msra.mxu0 %v1476
    %2655 = vmatprep.subr.bf16.mxu0 %v1493
    %2656 = vmatpush1.bf16.msra.mxu0 %v1492
    %2657 = vmatprep.subr.bf16.mxu0 %v1509
    %2658 = vmatpush1.bf16.msra.mxu0 %v1508
    %2659 = vmatprep.subr.bf16.mxu0 %v1525
    %2660 = vmatpush1.bf16.msra.mxu0 %v1524
    %2661 = vmatprep.subr.bf16.mxu0 %v1541
    %2662 = vmatpush1.bf16.msra.mxu0 %v1540
    %2663 = vmatprep.subr.bf16.mxu0 %v1557
    %2664 = vmatpush1.bf16.msra.mxu0 %v1556
    %2665 = vmatprep.subr.bf16.mxu0 %v1573
    %2666 = vmatpush1.bf16.msra.mxu0 %v1572
    %2667 = vmatprep.subr.bf16.mxu0 %v1589
    %2668 = vmatpush1.bf16.msra.mxu0 %v1588
    %2669 = vmatprep.subr.bf16.mxu0 %v1605
    %2670 = vmatpush1.bf16.msra.mxu0 %v1604
    %2671 = vmatprep.subr.bf16.mxu0 %v1621
    %2672 = vmatpush1.bf16.msra.mxu0 %v1620
    %2673 = vmatprep.subr.bf16.mxu0 %v1637
    %2674 = vmatpush1.bf16.msra.mxu0 %v1636
    %2675 = vmatprep.subr.bf16.mxu0 %v1653
    %2676 = vmatpush1.bf16.msra.mxu0 %v1652
    %2677 = vmatprep.mubr.bf16.mxu0 %v96
    %2678 = vmatmul.mubr.bf16.gmra.mrb[0].mxu0 %v95
    %v2679 = vpop.f32.mrb[0].mxu0
    %v2680 = vadd.f32 %v465, %v2679
    %v2681 = vpop.f32.mrb[0].mxu0
    %v2682 = vadd.f32 %v469, %v2681
    %v2683 = vpop.f32.mrb[0].mxu0
    %v2684 = vadd.f32 %v465, %v2683
    %v2685 = vpop.f32.mrb[0].mxu0
    %v2686 = vadd.f32 %v469, %v2685
    %2687 = vdwg.mxu0
    %2688 = vmatprep.subr.bf16.mxu0 %v1669
    %2689 = vmatpush1.bf16.msra.mxu0 %v1668
    %2690 = vmatprep.subr.bf16.mxu0 %v1685
    %2691 = vmatpush1.bf16.msra.mxu0 %v1684
    %2692 = vmatprep.subr.bf16.mxu0 %v2041
    %2693 = vmatpush1.bf16.msra.mxu0 %v2038
    %2694 = vmatprep.subr.bf16.mxu0 0
    %2695 = vmatpush1.bf16.msra.mxu0 0
    %2696 = vmatprep.subr.bf16.mxu0 0
    %2697 = vmatpush1.bf16.msra.mxu0 0
    %2698 = vmatprep.subr.bf16.mxu0 0
    %2699 = vmatpush1.bf16.msra.mxu0 0
    %2700 = vmatprep.subr.bf16.mxu0 0
    %2701 = vmatpush1.bf16.msra.mxu0 0
    %2702 = vmatprep.subr.bf16.mxu0 0
    %2703 = vmatpush1.bf16.msra.mxu0 0
    %2704 = vmatprep.subr.bf16.mxu0 0
    %2705 = vmatpush1.bf16.msra.mxu0 0
    %2706 = vmatprep.subr.bf16.mxu0 0
    %2707 = vmatpush1.bf16.msra.mxu0 0
    %2708 = vmatprep.subr.bf16.mxu0 0
    %2709 = vmatpush1.bf16.msra.mxu0 0
    %2710 = vmatprep.subr.bf16.mxu0 0
    %2711 = vmatpush1.bf16.msra.mxu0 0
    %2712 = vmatprep.subr.bf16.mxu0 0
    %2713 = vmatpush1.bf16.msra.mxu0 0
    %2714 = vmatprep.subr.bf16.mxu0 0
    %2715 = vmatpush1.bf16.msra.mxu0 0
    %2716 = vmatprep.subr.bf16.mxu0 0
    %2717 = vmatpush1.bf16.msra.mxu0 0
    %2718 = vmatprep.subr.bf16.mxu0 0
    %2719 = vmatpush1.bf16.msra.mxu0 0
    %2720 = vmatprep.mubr.bf16.mxu0 0
    %2721 = vmatmul.mubr.bf16.gmra.mrb[0].mxu0 %v1992
    %v2722 = vpop.f32.mrb[0].mxu0
    %v2723 = vadd.f32 %v2680, %v2722
    %v2724 = vpop.f32.mrb[0].mxu0
    %v2725 = vadd.f32 %v2682, %v2724
    %v2726 = vpop.f32.mrb[0].mxu0
    %v2727 = vadd.f32 %v2684, %v2726
    %v2728 = vpop.f32.mrb[0].mxu0
    %v2729 = vadd.f32 %v2686, %v2728
    %2730 = vdwg.mxu0
    %v2731 = vmax.f32 %v2121, 0.0
    %v2732 = vmax.f32 %v2123, 0.0
    %v2733 = vmax.f32 %v2207, 0.0
    %v2734 = vmax.f32 %v2209, 0.0
    %v2735 = vmax.f32 %v2293, 0.0
    %v2736 = vmax.f32 %v2295, 0.0
    %v2737 = vmax.f32 %v2379, 0.0
    %v2738 = vmax.f32 %v2381, 0.0
    %v2739 = vmax.f32 %v2465, 0.0
    %v2740 = vmax.f32 %v2467, 0.0
    %v2741 = vmax.f32 %v2551, 0.0
    %v2742 = vmax.f32 %v2553, 0.0
    %v2743 = vmax.f32 %v2637, 0.0
    %v2744 = vmax.f32 %v2639, 0.0
    %v2745 = vmax.f32 %v2723, 0.0
    %v2746 = vmax.f32 %v2725, 0.0
    %v2747 = vmax.f32 %v2125, 0.0
    %v2748 = vmax.f32 %v2127, 0.0
    %v2749 = vmax.f32 %v2211, 0.0
    %v2750 = vmax.f32 %v2213, 0.0
    %v2751 = vmax.f32 %v2297, 0.0
    %v2752 = vmax.f32 %v2299, 0.0
    %v2753 = vmax.f32 %v2383, 0.0
    %v2754 = vmax.f32 %v2385, 0.0
    %v2755 = vmax.f32 %v2469, 0.0
    %v2756 = vmax.f32 %v2471, 0.0
    %v2757 = vmax.f32 %v2555, 0.0
    %v2758 = vmax.f32 %v2557, 0.0
    %v2759 = vmax.f32 %v2641, 0.0
    %v2760 = vmax.f32 %v2643, 0.0
    %v2761 = vmax.f32 %v2727, 0.0
    %v2762 = vmax.f32 %v2729, 0.0
    %v2763 = vpack.c.bf16 %v2747, %v2731
    %v2764 = vpack.c.bf16 %v2748, %v2732
    %v2765 = vpack.c.bf16 %v2749, %v2733
    %v2766 = vpack.c.bf16 %v2750, %v2734
    %v2767 = vpack.c.bf16 %v2751, %v2735
    %v2768 = vpack.c.bf16 %v2752, %v2736
    %v2769 = vpack.c.bf16 %v2753, %v2737
    %v2770 = vpack.c.bf16 %v2754, %v2738
    %v2771 = vpack.c.bf16 %v2755, %v2739
    %v2772 = vpack.c.bf16 %v2756, %v2740
    %v2773 = vpack.c.bf16 %v2757, %v2741
    %v2774 = vpack.c.bf16 %v2758, %v2742
    %v2775 = vpack.c.bf16 %v2759, %v2743
    %v2776 = vpack.c.bf16 %v2760, %v2744
    %v2777 = vpack.c.bf16 %v2761, %v2745
    %v2778 = vpack.c.bf16 %v2762, %v2746
    %v2779 = vld [vmem:[%s3] sm:$0xf]
    %v2780 = vld [vmem:[%s3 + $0x4] sm:$0xf]
    %v2781 = vld [vmem:[%s3 + $0x8] sm:$0xf]
    %v2782 = vld [vmem:[%s3 + $0xc] sm:$0xf]
    %v2783 = vld [vmem:[%s3 + $0x10] sm:$0xf]
    %v2784 = vld [vmem:[%s3 + $0x14] sm:$0xf]
    %v2785 = vld [vmem:[%s3 + $0x18] sm:$0xf]
    %v2786 = vld [vmem:[%s3 + $0x1c] sm:$0xf]
    %v2787 = vld [vmem:[%s3 + $0x20] sm:$0xf]
    %v2788 = vld [vmem:[%s3 + $0x24] sm:$0xf]
    %v2789 = vld [vmem:[%s3 + $0x28] sm:$0xf]
    %v2790 = vld [vmem:[%s3 + $0x2c] sm:$0xf]
    %v2791 = vld [vmem:[%s3 + $0x30] sm:$0xf]
    %v2792 = vld [vmem:[%s3 + $0x34] sm:$0xf]
    %v2793 = vld [vmem:[%s3 + $0x38] sm:$0xf]
    %v2794 = vld [vmem:[%s3 + $0x3c] sm:$0xf]
    %v2795 = vld [vmem:[%s3 + $0x40] sm:$0xf]
    %v2796 = vld [vmem:[%s3 + $0x44] sm:$0xf]
    %v2797 = vld [vmem:[%s3 + $0x48] sm:$0xf]
    %v2798 = vld [vmem:[%s3 + $0x4c] sm:$0xf]
    %v2799 = vld [vmem:[%s3 + $0x50] sm:$0xf]
    %v2800 = vld [vmem:[%s3 + $0x54] sm:$0xf]
    %v2801 = vld [vmem:[%s3 + $0x58] sm:$0xf]
    %v2802 = vld [vmem:[%s3 + $0x5c] sm:$0xf]
    %v2803 = vld [vmem:[%s3 + $0x60] sm:$0xf]
    %v2804 = vld [vmem:[%s3 + $0x64] sm:$0xf]
    %v2805 = vld [vmem:[%s3 + $0x68] sm:$0xf]
    %v2806 = vld [vmem:[%s3 + $0x6c] sm:$0xf]
    %v2807 = vld [vmem:[%s3 + $0x70] sm:$0xf]
    %v2808 = vld [vmem:[%s3 + $0x74] sm:$0xf]
    %v2809 = vld [vmem:[%s3 + $0x78] sm:$0xf]
    %v2810 = vld [vmem:[%s3 + $0x7c] sm:$0xf]
    %v2811 = vld [vmem:[%s3 + $0x80] sm:$0xf]
    %v2812 = vld [vmem:[%s3 + $0x84] sm:$0xf]
    %v2813 = vld [vmem:[%s3 + $0x88] sm:$0xf]
    %v2814 = vld [vmem:[%s3 + $0x8c] sm:$0xf]
    %v2815 = vld [vmem:[%s3 + $0x90] sm:$0xf]
    %v2816 = vld [vmem:[%s3 + $0x94] sm:$0xf]
    %v2817 = vld [vmem:[%s3 + $0x98] sm:$0xf]
    %v2818 = vld [vmem:[%s3 + $0x9c] sm:$0xf]
    %v2819 = vld [vmem:[%s3 + $0xa0] sm:$0xf]
    %v2820 = vld [vmem:[%s3 + $0xa4] sm:$0xf]
    %v2821 = vld [vmem:[%s3 + $0xa8] sm:$0xf]
    %v2822 = vld [vmem:[%s3 + $0xac] sm:$0xf]
    %v2823 = vld [vmem:[%s3 + $0xb0] sm:$0xf]
    %v2824 = vld [vmem:[%s3 + $0xb4] sm:$0xf]
    %v2825 = vld [vmem:[%s3 + $0xb8] sm:$0xf]
    %v2826 = vld [vmem:[%s3 + $0xbc] sm:$0xf]
    %v2827 = vld [vmem:[%s3 + $0xc0] sm:$0xf]
    %v2828 = vld [vmem:[%s3 + $0xc4] sm:$0xf]
    %v2829 = vld [vmem:[%s3 + $0xc8] sm:$0xf]
    %v2830 = vld [vmem:[%s3 + $0xcc] sm:$0xf]
    %v2831 = vld [vmem:[%s3 + $0xd0] sm:$0xf]
    %v2832 = vld [vmem:[%s3 + $0xd4] sm:$0xf]
    %v2833 = vld [vmem:[%s3 + $0xd8] sm:$0xf]
    %v2834 = vld [vmem:[%s3 + $0xdc] sm:$0xf]
    %v2835 = vld [vmem:[%s3 + $0xe0] sm:$0xf]
    %v2836 = vld [vmem:[%s3 + $0xe4] sm:$0xf]
    %v2837 = vld [vmem:[%s3 + $0xe8] sm:$0xf]
    %v2838 = vld [vmem:[%s3 + $0xec] sm:$0xf]
    %v2839 = vld [vmem:[%s3 + $0xf0] sm:$0xf]
    %v2840 = vld [vmem:[%s3 + $0xf4] sm:$0xf]
    %v2841 = vld [vmem:[%s3 + $0xf8] sm:$0xf]
    %v2842 = vld [vmem:[%s3 + $0xfc] sm:$0xf]
    %v2843 = vld [vmem:[%s3 + $0x100] sm:$0xf]
    %v2844 = vld [vmem:[%s3 + $0x104] sm:$0xf]
    %v2845 = vld [vmem:[%s3 + $0x108] sm:$0xf]
    %v2846 = vld [vmem:[%s3 + $0x10c] sm:$0xf]
    %v2847 = vld [vmem:[%s3 + $0x110] sm:$0xf]
    %v2848 = vld [vmem:[%s3 + $0x114] sm:$0xf]
    %v2849 = vld [vmem:[%s3 + $0x118] sm:$0xf]
    %v2850 = vld [vmem:[%s3 + $0x11c] sm:$0xf]
    %v2851 = vld [vmem:[%s3 + $0x120] sm:$0xf]
    %v2852 = vld [vmem:[%s3 + $0x124] sm:$0xf]
    %v2853 = vld [vmem:[%s3 + $0x128] sm:$0xf]
    %v2854 = vld [vmem:[%s3 + $0x12c] sm:$0xf]
    %v2855 = vld [vmem:[%s3 + $0x130] sm:$0xf]
    %v2856 = vld [vmem:[%s3 + $0x134] sm:$0xf]
    %v2857 = vld [vmem:[%s3 + $0x138] sm:$0xf]
    %v2858 = vld [vmem:[%s3 + $0x13c] sm:$0xf]
    %v2859 = vld [vmem:[%s3 + $0x140] sm:$0xf]
    %v2860 = vld [vmem:[%s3 + $0x144] sm:$0xf]
    %v2861 = vld [vmem:[%s3 + $0x148] sm:$0xf]
    %v2862 = vld [vmem:[%s3 + $0x14c] sm:$0xf]
    %v2863 = vld [vmem:[%s3 + $0x150] sm:$0xf]
    %v2864 = vld [vmem:[%s3 + $0x154] sm:$0xf]
    %v2865 = vld [vmem:[%s3 + $0x158] sm:$0xf]
    %v2866 = vld [vmem:[%s3 + $0x15c] sm:$0xf]
    %v2867 = vld [vmem:[%s3 + $0x160] sm:$0xf]
    %v2868 = vld [vmem:[%s3 + $0x164] sm:$0xf]
    %v2869 = vld [vmem:[%s3 + $0x168] sm:$0xf]
    %v2870 = vld [vmem:[%s3 + $0x16c] sm:$0xf]
    %v2871 = vld [vmem:[%s3 + $0x170] sm:$0xf]
    %v2872 = vld [vmem:[%s3 + $0x174] sm:$0xf]
    %v2873 = vld [vmem:[%s3 + $0x178] sm:$0xf]
    %v2874 = vld [vmem:[%s3 + $0x17c] sm:$0xf]
    %v2875 = vld [vmem:[%s3 + $0x180] sm:$0xf]
    %v2876 = vld [vmem:[%s3 + $0x184] sm:$0xf]
    %v2877 = vld [vmem:[%s3 + $0x188] sm:$0xf]
    %v2878 = vld [vmem:[%s3 + $0x18c] sm:$0xf]
    %v2879 = vld [vmem:[%s3 + $0x190] sm:$0xf]
    %v2880 = vld [vmem:[%s3 + $0x194] sm:$0xf]
    %v2881 = vld [vmem:[%s3 + $0x198] sm:$0xf]
    %v2882 = vld [vmem:[%s3 + $0x19c] sm:$0xf]
    %v2883 = vld [vmem:[%s3 + $0x1a0] sm:$0xf]
    %v2884 = vld [vmem:[%s3 + $0x1a4] sm:$0xf]
    %v2885 = vld [vmem:[%s3 + $0x1a8] sm:$0xf]
    %v2886 = vld [vmem:[%s3 + $0x1ac] sm:$0xf]
    %v2887 = vld [vmem:[%s3 + $0x1b0] sm:$0xf]
    %v2888 = vld [vmem:[%s3 + $0x1b4] sm:$0xf]
    %v2889 = vld [vmem:[%s3 + $0x1b8] sm:$0xf]
    %v2890 = vld [vmem:[%s3 + $0x1bc] sm:$0xf]
    %v2891 = vld [vmem:[%s3 + $0x1c0] sm:$0xf]
    %v2892 = vld [vmem:[%s3 + $0x1c4] sm:$0xf]
    %v2893 = vld [vmem:[%s3 + $0x1c8] sm:$0xf]
    %v2894 = vld [vmem:[%s3 + $0x1cc] sm:$0xf]
    %v2895 = vld [vmem:[%s3 + $0x1d0] sm:$0xf]
    %v2896 = vld [vmem:[%s3 + $0x1d4] sm:$0xf]
    %v2897 = vld [vmem:[%s3 + $0x1d8] sm:$0xf]
    %v2898 = vld [vmem:[%s3 + $0x1dc] sm:$0xf]
    %v2899 = vld [vmem:[%s3 + $0x1e0] sm:$0xf]
    %v2900 = vld [vmem:[%s3 + $0x1e4] sm:$0xf]
    %v2901 = vld [vmem:[%s3 + $0x1e8] sm:$0xf]
    %v2902 = vld [vmem:[%s3 + $0x1ec] sm:$0xf]
    %v2903 = vld [vmem:[%s3 + $0x1f0] sm:$0xf]
    %v2904 = vld [vmem:[%s3 + $0x1f4] sm:$0xf]
    %v2905 = vld [vmem:[%s3 + $0x1f8] sm:$0xf]
    %v2906 = vld [vmem:[%s3 + $0x1fc] sm:$0xf]
    %v2907 = vld [vmem:[%s3 + $0x200] sm:$0xf]
    %v2908 = vld [vmem:[%s3 + $0x204] sm:$0xf]
    %v2909 = vld [vmem:[%s3 + $0x208] sm:$0xf]
    %v2910 = vld [vmem:[%s3 + $0x20c] sm:$0xf]
    %v2911 = vld [vmem:[%s3 + $0x210] sm:$0xf]
    %v2912 = vld [vmem:[%s3 + $0x214] sm:$0xf]
    %v2913 = vld [vmem:[%s3 + $0x218] sm:$0xf]
    %v2914 = vld [vmem:[%s3 + $0x21c] sm:$0xf]
    %v2915 = vld [vmem:[%s3 + $0x220] sm:$0xf]
    %v2916 = vld [vmem:[%s3 + $0x224] sm:$0xf]
    %v2917 = vld [vmem:[%s3 + $0x228] sm:$0xf]
    %v2918 = vld [vmem:[%s3 + $0x22c] sm:$0xf]
    %v2919 = vld [vmem:[%s3 + $0x230] sm:$0xf]
    %v2920 = vld [vmem:[%s3 + $0x234] sm:$0xf]
    %v2921 = vld [vmem:[%s3 + $0x238] sm:$0xf]
    %v2922 = vld [vmem:[%s3 + $0x23c] sm:$0xf]
    %v2923 = vld [vmem:[%s3 + $0x240] sm:$0xf]
    %v2924 = vld [vmem:[%s3 + $0x244] sm:$0xf]
    %v2925 = vld [vmem:[%s3 + $0x248] sm:$0xf]
    %v2926 = vld [vmem:[%s3 + $0x24c] sm:$0xf]
    %v2927 = vld [vmem:[%s3 + $0x250] sm:$0xf]
    %v2928 = vld [vmem:[%s3 + $0x254] sm:$0xf]
    %v2929 = vld [vmem:[%s3 + $0x258] sm:$0xf]
    %v2930 = vld [vmem:[%s3 + $0x25c] sm:$0xf]
    %v2931 = vld [vmem:[%s3 + $0x260] sm:$0xf]
    %v2932 = vld [vmem:[%s3 + $0x264] sm:$0xf]
    %v2933 = vld [vmem:[%s3 + $0x268] sm:$0xf]
    %v2934 = vld [vmem:[%s3 + $0x26c] sm:$0xf]
    %v2935 = vld [vmem:[%s3 + $0x270] sm:$0xf]
    %v2936 = vld [vmem:[%s3 + $0x274] sm:$0xf]
    %v2937 = vld [vmem:[%s3 + $0x278] sm:$0xf]
    %v2938 = vld [vmem:[%s3 + $0x27c] sm:$0xf]
    %v2939 = vld [vmem:[%s3 + $0x280] sm:$0xf]
    %v2940 = vld [vmem:[%s3 + $0x284] sm:$0xf]
    %v2941 = vld [vmem:[%s3 + $0x288] sm:$0xf]
    %v2942 = vld [vmem:[%s3 + $0x28c] sm:$0xf]
    %v2943 = vld [vmem:[%s3 + $0x290] sm:$0xf]
    %v2944 = vld [vmem:[%s3 + $0x294] sm:$0xf]
    %v2945 = vld [vmem:[%s3 + $0x298] sm:$0xf]
    %v2946 = vld [vmem:[%s3 + $0x29c] sm:$0xf]
    %v2947 = vld [vmem:[%s3 + $0x2a0] sm:$0xf]
    %v2948 = vld [vmem:[%s3 + $0x2a4] sm:$0xf]
    %v2949 = vld [vmem:[%s3 + $0x2a8] sm:$0xf]
    %v2950 = vld [vmem:[%s3 + $0x2ac] sm:$0xf]
    %v2951 = vld [vmem:[%s3 + $0x2b0] sm:$0xf]
    %v2952 = vld [vmem:[%s3 + $0x2b4] sm:$0xf]
    %v2953 = vld [vmem:[%s3 + $0x2b8] sm:$0xf]
    %v2954 = vld [vmem:[%s3 + $0x2bc] sm:$0xf]
    %v2955 = vld [vmem:[%s3 + $0x2c0] sm:$0xf]
    %v2956 = vld [vmem:[%s3 + $0x2c4] sm:$0xf]
    %v2957 = vld [vmem:[%s3 + $0x2c8] sm:$0xf]
    %v2958 = vld [vmem:[%s3 + $0x2cc] sm:$0xf]
    %v2959 = vld [vmem:[%s3 + $0x2d0] sm:$0xf]
    %v2960 = vld [vmem:[%s3 + $0x2d4] sm:$0xf]
    %v2961 = vld [vmem:[%s3 + $0x2d8] sm:$0xf]
    %v2962 = vld [vmem:[%s3 + $0x2dc] sm:$0xf]
    %v2963 = vld [vmem:[%s3 + $0x2e0] sm:$0xf]
    %v2964 = vld [vmem:[%s3 + $0x2e4] sm:$0xf]
    %v2965 = vld [vmem:[%s3 + $0x2e8] sm:$0xf]
    %v2966 = vld [vmem:[%s3 + $0x2ec] sm:$0xf]
    %v2967 = vld [vmem:[%s3 + $0x2f0] sm:$0xf]
    %v2968 = vld [vmem:[%s3 + $0x2f4] sm:$0xf]
    %v2969 = vld [vmem:[%s3 + $0x2f8] sm:$0xf]
    %v2970 = vld [vmem:[%s3 + $0x2fc] sm:$0xf]
    %v2971 = vld [vmem:[%s3 + $0x300] sm:$0xf]
    %v2972 = vld [vmem:[%s3 + $0x304] sm:$0xf]
    %v2973 = vld [vmem:[%s3 + $0x308] sm:$0xf]
    %v2974 = vld [vmem:[%s3 + $0x30c] sm:$0xf]
    %v2975 = vld [vmem:[%s3 + $0x310] sm:$0xf]
    %v2976 = vld [vmem:[%s3 + $0x314] sm:$0xf]
    %v2977 = vld [vmem:[%s3 + $0x318] sm:$0xf]
    %v2978 = vld [vmem:[%s3 + $0x31c] sm:$0xf]
    %v2979 = vld [vmem:[%s3 + $0x320] sm:$0xf]
    %v2980 = vld [vmem:[%s3 + $0x324] sm:$0xf]
    %v2981 = vld [vmem:[%s3 + $0x328] sm:$0xf]
    %v2982 = vld [vmem:[%s3 + $0x32c] sm:$0xf]
    %v2983 = vld [vmem:[%s3 + $0x330] sm:$0xf]
    %v2984 = vld [vmem:[%s3 + $0x334] sm:$0xf]
    %v2985 = vld [vmem:[%s3 + $0x338] sm:$0xf]
    %v2986 = vld [vmem:[%s3 + $0x33c] sm:$0xf]
    %v2987 = vld [vmem:[%s3 + $0x340] sm:$0xf]
    %v2988 = vld [vmem:[%s3 + $0x344] sm:$0xf]
    %v2989 = vld [vmem:[%s3 + $0x348] sm:$0xf]
    %v2990 = vld [vmem:[%s3 + $0x34c] sm:$0xf]
    %v2991 = vld [vmem:[%s3 + $0x350] sm:$0xf]
    %v2992 = vld [vmem:[%s3 + $0x354] sm:$0xf]
    %v2993 = vld [vmem:[%s3 + $0x358] sm:$0xf]
    %v2994 = vld [vmem:[%s3 + $0x35c] sm:$0xf]
    %v2995 = vld [vmem:[%s3 + $0x360] sm:$0xf]
    %v2996 = vld [vmem:[%s3 + $0x364] sm:$0xf]
    %v2997 = vld [vmem:[%s3 + $0x368] sm:$0xf]
    %v2998 = vld [vmem:[%s3 + $0x36c] sm:$0xf]
    %v2999 = vld [vmem:[%s3 + $0x370] sm:$0xf]
    %v3000 = vld [vmem:[%s3 + $0x374] sm:$0xf]
    %v3001 = vld [vmem:[%s3 + $0x378] sm:$0xf]
    %v3002 = vld [vmem:[%s3 + $0x37c] sm:$0xf]
    %v3003 = vld [vmem:[%s3 + $0x380] sm:$0xf]
    %v3004 = vld [vmem:[%s3 + $0x384] sm:$0xf]
    %v3005 = vld [vmem:[%s3 + $0x388] sm:$0xf]
    %v3006 = vld [vmem:[%s3 + $0x38c] sm:$0xf]
    %v3007 = vld [vmem:[%s3 + $0x390] sm:$0xf]
    %v3008 = vld [vmem:[%s3 + $0x394] sm:$0xf]
    %v3009 = vld [vmem:[%s3 + $0x398] sm:$0xf]
    %v3010 = vld [vmem:[%s3 + $0x39c] sm:$0xf]
    %v3011 = vld [vmem:[%s3 + $0x3a0] sm:$0xf]
    %v3012 = vld [vmem:[%s3 + $0x3a4] sm:$0xf]
    %v3013 = vld [vmem:[%s3 + $0x3a8] sm:$0xf]
    %v3014 = vld [vmem:[%s3 + $0x3ac] sm:$0xf]
    %v3015 = vld [vmem:[%s3 + $0x3b0] sm:$0xf]
    %v3016 = vld [vmem:[%s3 + $0x3b4] sm:$0xf]
    %v3017 = vld [vmem:[%s3 + $0x3b8] sm:$0xf]
    %v3018 = vld [vmem:[%s3 + $0x3bc] sm:$0xf]
    %v3019 = vld [vmem:[%s3 + $0x3c0] sm:$0xf]
    %v3020 = vld [vmem:[%s3 + $0x3c4] sm:$0xf]
    %v3021 = vld [vmem:[%s3 + $0x3c8] sm:$0xf]
    %v3022 = vld [vmem:[%s3 + $0x3cc] sm:$0xf]
    %v3023 = vld [vmem:[%s3 + $0x3d0] sm:$0xf]
    %v3024 = vld [vmem:[%s3 + $0x3d4] sm:$0xf]
    %v3025 = vld [vmem:[%s3 + $0x3d8] sm:$0xf]
    %v3026 = vld [vmem:[%s3 + $0x3dc] sm:$0xf]
    %v3027 = vld [vmem:[%s3 + $0x3e0] sm:$0xf]
    %v3028 = vld [vmem:[%s3 + $0x3e4] sm:$0xf]
    %v3029 = vld [vmem:[%s3 + $0x3e8] sm:$0xf]
    %v3030 = vld [vmem:[%s3 + $0x3ec] sm:$0xf]
    %v3031 = vld [vmem:[%s3 + $0x3f0] sm:$0xf]
    %v3032 = vld [vmem:[%s3 + $0x3f4] sm:$0xf]
    %v3033 = vld [vmem:[%s3 + $0x3f8] sm:$0xf]
    %v3034 = vld [vmem:[%s3 + $0x3fc] sm:$0xf]
    %v3035 = vld [vmem:[#allocation8] sm:$0x1]
    %v3037 = vlaneseq
    %v3038 = vshrl.u32 %v3037, 7
    %v3039 = vsub.s32 0, %v3038
    %v3040 = vrot.slane %v3035, %v3039
    %v3298 = vunpack.c.l.b16 %v2779
    %v3299 = vunpack.c.l.b16 %v2780
    %v3300 = vunpack.c.l.b16 %v2781
    %v3301 = vunpack.c.l.b16 %v2782
    %v3302 = vunpack.c.l.b16 %v2783
    %v3303 = vunpack.c.l.b16 %v2784
    %v3304 = vunpack.c.l.b16 %v2785
    %v3305 = vunpack.c.l.b16 %v2786
    %v3306 = vunpack.c.l.b16 %v2787
    %v3307 = vunpack.c.l.b16 %v2788
    %v3308 = vunpack.c.l.b16 %v2789
    %v3309 = vunpack.c.l.b16 %v2790
    %v3310 = vunpack.c.l.b16 %v2791
    %v3311 = vunpack.c.l.b16 %v2792
    %v3312 = vunpack.c.l.b16 %v2793
    %v3313 = vunpack.c.l.b16 %v2794
    %v3314 = vunpack.c.l.b16 %v2795
    %v3315 = vunpack.c.l.b16 %v2796
    %v3316 = vunpack.c.l.b16 %v2797
    %v3317 = vunpack.c.l.b16 %v2798
    %v3318 = vunpack.c.l.b16 %v2799
    %v3319 = vunpack.c.l.b16 %v2800
    %v3320 = vunpack.c.l.b16 %v2801
    %v3321 = vunpack.c.l.b16 %v2802
    %v3322 = vunpack.c.l.b16 %v2803
    %v3323 = vunpack.c.l.b16 %v2804
    %v3324 = vunpack.c.l.b16 %v2805
    %v3325 = vunpack.c.l.b16 %v2806
    %v3326 = vunpack.c.l.b16 %v2807
    %v3327 = vunpack.c.l.b16 %v2808
    %v3328 = vunpack.c.l.b16 %v2809
    %v3329 = vunpack.c.l.b16 %v2810
    %v3330 = vunpack.c.l.b16 %v2811
    %v3331 = vunpack.c.l.b16 %v2812
    %v3332 = vunpack.c.l.b16 %v2813
    %v3333 = vunpack.c.l.b16 %v2814
    %v3334 = vunpack.c.l.b16 %v2815
    %v3335 = vunpack.c.l.b16 %v2816
    %v3336 = vunpack.c.l.b16 %v2817
    %v3337 = vunpack.c.l.b16 %v2818
    %v3338 = vunpack.c.l.b16 %v2819
    %v3339 = vunpack.c.l.b16 %v2820
    %v3340 = vunpack.c.l.b16 %v2821
    %v3341 = vunpack.c.l.b16 %v2822
    %v3342 = vunpack.c.l.b16 %v2823
    %v3343 = vunpack.c.l.b16 %v2824
    %v3344 = vunpack.c.l.b16 %v2825
    %v3345 = vunpack.c.l.b16 %v2826
    %v3346 = vunpack.c.l.b16 %v2827
    %v3347 = vunpack.c.l.b16 %v2828
    %v3348 = vunpack.c.l.b16 %v2829
    %v3349 = vunpack.c.l.b16 %v2830
    %v3350 = vunpack.c.l.b16 %v2831
    %v3351 = vunpack.c.l.b16 %v2832
    %v3352 = vunpack.c.l.b16 %v2833
    %v3353 = vunpack.c.l.b16 %v2834
    %v3354 = vunpack.c.l.b16 %v2835
    %v3355 = vunpack.c.l.b16 %v2836
    %v3356 = vunpack.c.l.b16 %v2837
    %v3357 = vunpack.c.l.b16 %v2838
    %v3358 = vunpack.c.l.b16 %v2839
    %v3359 = vunpack.c.l.b16 %v2840
    %v3360 = vunpack.c.l.b16 %v2841
    %v3361 = vunpack.c.l.b16 %v2842
    %v3362 = vunpack.c.l.b16 %v2843
    %v3363 = vunpack.c.l.b16 %v2844
    %v3364 = vunpack.c.l.b16 %v2845
    %v3365 = vunpack.c.l.b16 %v2846
    %v3366 = vunpack.c.l.b16 %v2847
    %v3367 = vunpack.c.l.b16 %v2848
    %v3368 = vunpack.c.l.b16 %v2849
    %v3369 = vunpack.c.l.b16 %v2850
    %v3370 = vunpack.c.l.b16 %v2851
    %v3371 = vunpack.c.l.b16 %v2852
    %v3372 = vunpack.c.l.b16 %v2853
    %v3373 = vunpack.c.l.b16 %v2854
    %v3374 = vunpack.c.l.b16 %v2855
    %v3375 = vunpack.c.l.b16 %v2856
    %v3376 = vunpack.c.l.b16 %v2857
    %v3377 = vunpack.c.l.b16 %v2858
    %v3378 = vunpack.c.l.b16 %v2859
    %v3379 = vunpack.c.l.b16 %v2860
    %v3380 = vunpack.c.l.b16 %v2861
    %v3381 = vunpack.c.l.b16 %v2862
    %v3382 = vunpack.c.l.b16 %v2863
    %v3383 = vunpack.c.l.b16 %v2864
    %v3384 = vunpack.c.l.b16 %v2865
    %v3385 = vunpack.c.l.b16 %v2866
    %v3386 = vunpack.c.l.b16 %v2867
    %v3387 = vunpack.c.l.b16 %v2868
    %v3388 = vunpack.c.l.b16 %v2869
    %v3389 = vunpack.c.l.b16 %v2870
    %v3390 = vunpack.c.l.b16 %v2871
    %v3391 = vunpack.c.l.b16 %v2872
    %v3392 = vunpack.c.l.b16 %v2873
    %v3393 = vunpack.c.l.b16 %v2874
    %v3394 = vunpack.c.l.b16 %v2875
    %v3395 = vunpack.c.l.b16 %v2876
    %v3396 = vunpack.c.l.b16 %v2877
    %v3397 = vunpack.c.l.b16 %v2878
    %v3398 = vunpack.c.l.b16 %v2879
    %v3399 = vunpack.c.l.b16 %v2880
    %v3400 = vunpack.c.l.b16 %v2881
    %v3401 = vunpack.c.l.b16 %v2882
    %v3402 = vunpack.c.l.b16 %v2883
    %v3403 = vunpack.c.l.b16 %v2884
    %v3404 = vunpack.c.l.b16 %v2885
    %v3405 = vunpack.c.l.b16 %v2886
    %v3406 = vunpack.c.l.b16 %v2887
    %v3407 = vunpack.c.l.b16 %v2888
    %v3408 = vunpack.c.l.b16 %v2889
    %v3409 = vunpack.c.l.b16 %v2890
    %v3410 = vunpack.c.l.b16 %v2891
    %v3411 = vunpack.c.l.b16 %v2892
    %v3412 = vunpack.c.l.b16 %v2893
    %v3413 = vunpack.c.l.b16 %v2894
    %v3414 = vunpack.c.l.b16 %v2895
    %v3415 = vunpack.c.l.b16 %v2896
    %v3416 = vunpack.c.l.b16 %v2897
    %v3417 = vunpack.c.l.b16 %v2898
    %v3418 = vunpack.c.l.b16 %v2899
    %v3419 = vunpack.c.l.b16 %v2900
    %v3420 = vunpack.c.l.b16 %v2901
    %v3421 = vunpack.c.l.b16 %v2902
    %v3422 = vunpack.c.l.b16 %v2903
    %v3423 = vunpack.c.l.b16 %v2904
    %v3424 = vunpack.c.l.b16 %v2905
    %v3425 = vunpack.c.l.b16 %v2906
    %v3426 = vunpack.c.l.b16 %v2907
    %v3427 = vunpack.c.l.b16 %v2908
    %v3428 = vunpack.c.l.b16 %v2909
    %v3429 = vunpack.c.l.b16 %v2910
    %v3430 = vunpack.c.l.b16 %v2911
    %v3431 = vunpack.c.l.b16 %v2912
    %v3432 = vunpack.c.l.b16 %v2913
    %v3433 = vunpack.c.l.b16 %v2914
    %v3434 = vunpack.c.l.b16 %v2915
    %v3435 = vunpack.c.l.b16 %v2916
    %v3436 = vunpack.c.l.b16 %v2917
    %v3437 = vunpack.c.l.b16 %v2918
    %v3438 = vunpack.c.l.b16 %v2919
    %v3439 = vunpack.c.l.b16 %v2920
    %v3440 = vunpack.c.l.b16 %v2921
    %v3441 = vunpack.c.l.b16 %v2922
    %v3442 = vunpack.c.l.b16 %v2923
    %v3443 = vunpack.c.l.b16 %v2924
    %v3444 = vunpack.c.l.b16 %v2925
    %v3445 = vunpack.c.l.b16 %v2926
    %v3446 = vunpack.c.l.b16 %v2927
    %v3447 = vunpack.c.l.b16 %v2928
    %v3448 = vunpack.c.l.b16 %v2929
    %v3449 = vunpack.c.l.b16 %v2930
    %v3450 = vunpack.c.l.b16 %v2931
    %v3451 = vunpack.c.l.b16 %v2932
    %v3452 = vunpack.c.l.b16 %v2933
    %v3453 = vunpack.c.l.b16 %v2934
    %v3454 = vunpack.c.l.b16 %v2935
    %v3455 = vunpack.c.l.b16 %v2936
    %v3456 = vunpack.c.l.b16 %v2937
    %v3457 = vunpack.c.l.b16 %v2938
    %v3458 = vunpack.c.l.b16 %v2939
    %v3459 = vunpack.c.l.b16 %v2940
    %v3460 = vunpack.c.l.b16 %v2941
    %v3461 = vunpack.c.l.b16 %v2942
    %v3462 = vunpack.c.l.b16 %v2943
    %v3463 = vunpack.c.l.b16 %v2944
    %v3464 = vunpack.c.l.b16 %v2945
    %v3465 = vunpack.c.l.b16 %v2946
    %v3466 = vunpack.c.l.b16 %v2947
    %v3467 = vunpack.c.l.b16 %v2948
    %v3468 = vunpack.c.l.b16 %v2949
    %v3469 = vunpack.c.l.b16 %v2950
    %v3470 = vunpack.c.l.b16 %v2951
    %v3471 = vunpack.c.l.b16 %v2952
    %v3472 = vunpack.c.l.b16 %v2953
    %v3473 = vunpack.c.l.b16 %v2954
    %v3474 = vunpack.c.l.b16 %v2955
    %v3475 = vunpack.c.l.b16 %v2956
    %v3476 = vunpack.c.l.b16 %v2957
    %v3477 = vunpack.c.l.b16 %v2958
    %v3478 = vunpack.c.l.b16 %v2959
    %v3479 = vunpack.c.l.b16 %v2960
    %v3480 = vunpack.c.l.b16 %v2961
    %v3481 = vunpack.c.l.b16 %v2962
    %v3482 = vunpack.c.l.b16 %v2963
    %v3483 = vunpack.c.l.b16 %v2964
    %v3484 = vunpack.c.l.b16 %v2965
    %v3485 = vunpack.c.l.b16 %v2966
    %v3486 = vunpack.c.l.b16 %v2967
    %v3487 = vunpack.c.l.b16 %v2968
    %v3488 = vunpack.c.l.b16 %v2969
    %v3489 = vunpack.c.l.b16 %v2970
    %v3490 = vunpack.c.l.b16 %v2971
    %v3491 = vunpack.c.l.b16 %v2972
    %v3492 = vunpack.c.l.b16 %v2973
    %v3493 = vunpack.c.l.b16 %v2974
    %v3494 = vunpack.c.l.b16 %v2975
    %v3495 = vunpack.c.l.b16 %v2976
    %v3496 = vunpack.c.l.b16 %v2977
    %v3497 = vunpack.c.l.b16 %v2978
    %v3498 = vunpack.c.l.b16 %v2979
    %v3499 = vunpack.c.l.b16 %v2980
    %v3500 = vunpack.c.l.b16 %v2981
    %v3501 = vunpack.c.l.b16 %v2982
    %v3502 = vunpack.c.l.b16 %v2983
    %v3503 = vunpack.c.l.b16 %v2984
    %v3504 = vunpack.c.l.b16 %v2985
    %v3505 = vunpack.c.l.b16 %v2986
    %v3506 = vunpack.c.l.b16 %v2987
    %v3507 = vunpack.c.l.b16 %v2988
    %v3508 = vunpack.c.l.b16 %v2989
    %v3509 = vunpack.c.l.b16 %v2990
    %v3510 = vunpack.c.l.b16 %v2991
    %v3511 = vunpack.c.l.b16 %v2992
    %v3512 = vunpack.c.l.b16 %v2993
    %v3513 = vunpack.c.l.b16 %v2994
    %v3514 = vunpack.c.l.b16 %v2995
    %v3515 = vunpack.c.l.b16 %v2996
    %v3516 = vunpack.c.l.b16 %v2997
    %v3517 = vunpack.c.l.b16 %v2998
    %v3518 = vunpack.c.l.b16 %v2999
    %v3519 = vunpack.c.l.b16 %v3000
    %v3520 = vunpack.c.l.b16 %v3001
    %v3521 = vunpack.c.l.b16 %v3002
    %v3522 = vunpack.c.l.b16 %v3003
    %v3523 = vunpack.c.l.b16 %v3004
    %v3524 = vunpack.c.l.b16 %v3005
    %v3525 = vunpack.c.l.b16 %v3006
    %v3526 = vunpack.c.l.b16 %v3007
    %v3527 = vunpack.c.l.b16 %v3008
    %v3528 = vunpack.c.l.b16 %v3009
    %v3529 = vunpack.c.l.b16 %v3010
    %v3530 = vunpack.c.l.b16 %v3011
    %v3531 = vunpack.c.l.b16 %v3012
    %v3532 = vunpack.c.l.b16 %v3013
    %v3533 = vunpack.c.l.b16 %v3014
    %v3534 = vunpack.c.l.b16 %v3015
    %v3535 = vunpack.c.l.b16 %v3016
    %v3536 = vunpack.c.l.b16 %v3017
    %v3537 = vunpack.c.l.b16 %v3018
    %v3538 = vunpack.c.l.b16 %v3019
    %v3539 = vunpack.c.l.b16 %v3020
    %v3540 = vunpack.c.l.b16 %v3021
    %v3541 = vunpack.c.l.b16 %v3022
    %v3542 = vunpack.c.l.b16 %v3023
    %v3543 = vunpack.c.l.b16 %v3024
    %v3544 = vunpack.c.l.b16 %v3025
    %v3545 = vunpack.c.l.b16 %v3026
    %v3546 = vunpack.c.l.b16 %v3027
    %v3547 = vunpack.c.l.b16 %v3028
    %v3548 = vunpack.c.l.b16 %v3029
    %v3549 = vunpack.c.l.b16 %v3030
    %v3550 = vunpack.c.l.b16 %v3031
    %v3551 = vunpack.c.l.b16 %v3032
    %v3552 = vunpack.c.l.b16 %v3033
    %v3553 = vunpack.c.l.b16 %v3034
    %v3554 = vpack.c.b16 %v3299, %v3298
    %v3555 = vpack.c.b16 %v3301, %v3300
    %v3556 = vpack.c.b16 %v3303, %v3302
    %v3557 = vpack.c.b16 %v3305, %v3304
    %v3558 = vpack.c.b16 %v3307, %v3306
    %v3559 = vpack.c.b16 %v3309, %v3308
    %v3560 = vpack.c.b16 %v3311, %v3310
    %v3561 = vpack.c.b16 %v3313, %v3312
    %v3562 = vpack.c.b16 %v3315, %v3314
    %v3563 = vpack.c.b16 %v3317, %v3316
    %v3564 = vpack.c.b16 %v3319, %v3318
    %v3565 = vpack.c.b16 %v3321, %v3320
    %v3566 = vpack.c.b16 %v3323, %v3322
    %v3567 = vpack.c.b16 %v3325, %v3324
    %v3568 = vpack.c.b16 %v3327, %v3326
    %v3569 = vpack.c.b16 %v3329, %v3328
    %v3570 = vpack.c.b16 %v3331, %v3330
    %v3571 = vpack.c.b16 %v3333, %v3332
    %v3572 = vpack.c.b16 %v3335, %v3334
    %v3573 = vpack.c.b16 %v3337, %v3336
    %v3574 = vpack.c.b16 %v3339, %v3338
    %v3575 = vpack.c.b16 %v3341, %v3340
    %v3576 = vpack.c.b16 %v3343, %v3342
    %v3577 = vpack.c.b16 %v3345, %v3344
    %v3578 = vpack.c.b16 %v3347, %v3346
    %v3579 = vpack.c.b16 %v3349, %v3348
    %v3580 = vpack.c.b16 %v3351, %v3350
    %v3581 = vpack.c.b16 %v3353, %v3352
    %v3582 = vpack.c.b16 %v3355, %v3354
    %v3583 = vpack.c.b16 %v3357, %v3356
    %v3584 = vpack.c.b16 %v3359, %v3358
    %v3585 = vpack.c.b16 %v3361, %v3360
    %v3586 = vpack.c.b16 %v3363, %v3362
    %v3587 = vpack.c.b16 %v3365, %v3364
    %v3588 = vpack.c.b16 %v3367, %v3366
    %v3589 = vpack.c.b16 %v3369, %v3368
    %v3590 = vpack.c.b16 %v3371, %v3370
    %v3591 = vpack.c.b16 %v3373, %v3372
    %v3592 = vpack.c.b16 %v3375, %v3374
    %v3593 = vpack.c.b16 %v3377, %v3376
    %v3594 = vpack.c.b16 %v3379, %v3378
    %v3595 = vpack.c.b16 %v3381, %v3380
    %v3596 = vpack.c.b16 %v3383, %v3382
    %v3597 = vpack.c.b16 %v3385, %v3384
    %v3598 = vpack.c.b16 %v3387, %v3386
    %v3599 = vpack.c.b16 %v3389, %v3388
    %v3600 = vpack.c.b16 %v3391, %v3390
    %v3601 = vpack.c.b16 %v3393, %v3392
    %v3602 = vpack.c.b16 %v3395, %v3394
    %v3603 = vpack.c.b16 %v3397, %v3396
    %v3604 = vpack.c.b16 %v3399, %v3398
    %v3605 = vpack.c.b16 %v3401, %v3400
    %v3606 = vpack.c.b16 %v3403, %v3402
    %v3607 = vpack.c.b16 %v3405, %v3404
    %v3608 = vpack.c.b16 %v3407, %v3406
    %v3609 = vpack.c.b16 %v3409, %v3408
    %v3610 = vpack.c.b16 %v3411, %v3410
    %v3611 = vpack.c.b16 %v3413, %v3412
    %v3612 = vpack.c.b16 %v3415, %v3414
    %v3613 = vpack.c.b16 %v3417, %v3416
    %v3614 = vpack.c.b16 %v3419, %v3418
    %v3615 = vpack.c.b16 %v3421, %v3420
    %v3616 = vpack.c.b16 %v3423, %v3422
    %v3617 = vpack.c.b16 %v3425, %v3424
    %v3618 = vpack.c.b16 %v3427, %v3426
    %v3619 = vpack.c.b16 %v3429, %v3428
    %v3620 = vpack.c.b16 %v3431, %v3430
    %v3621 = vpack.c.b16 %v3433, %v3432
    %v3622 = vpack.c.b16 %v3435, %v3434
    %v3623 = vpack.c.b16 %v3437, %v3436
    %v3624 = vpack.c.b16 %v3439, %v3438
    %v3625 = vpack.c.b16 %v3441, %v3440
    %v3626 = vpack.c.b16 %v3443, %v3442
    %v3627 = vpack.c.b16 %v3445, %v3444
    %v3628 = vpack.c.b16 %v3447, %v3446
    %v3629 = vpack.c.b16 %v3449, %v3448
    %v3630 = vpack.c.b16 %v3451, %v3450
    %v3631 = vpack.c.b16 %v3453, %v3452
    %v3632 = vpack.c.b16 %v3455, %v3454
    %v3633 = vpack.c.b16 %v3457, %v3456
    %v3634 = vpack.c.b16 %v3459, %v3458
    %v3635 = vpack.c.b16 %v3461, %v3460
    %v3636 = vpack.c.b16 %v3463, %v3462
    %v3637 = vpack.c.b16 %v3465, %v3464
    %v3638 = vpack.c.b16 %v3467, %v3466
    %v3639 = vpack.c.b16 %v3469, %v3468
    %v3640 = vpack.c.b16 %v3471, %v3470
    %v3641 = vpack.c.b16 %v3473, %v3472
    %v3642 = vpack.c.b16 %v3475, %v3474
    %v3643 = vpack.c.b16 %v3477, %v3476
    %v3644 = vpack.c.b16 %v3479, %v3478
    %v3645 = vpack.c.b16 %v3481, %v3480
    %v3646 = vpack.c.b16 %v3483, %v3482
    %v3647 = vpack.c.b16 %v3485, %v3484
    %v3648 = vpack.c.b16 %v3487, %v3486
    %v3649 = vpack.c.b16 %v3489, %v3488
    %v3650 = vpack.c.b16 %v3491, %v3490
    %v3651 = vpack.c.b16 %v3493, %v3492
    %v3652 = vpack.c.b16 %v3495, %v3494
    %v3653 = vpack.c.b16 %v3497, %v3496
    %v3654 = vpack.c.b16 %v3499, %v3498
    %v3655 = vpack.c.b16 %v3501, %v3500
    %v3656 = vpack.c.b16 %v3503, %v3502
    %v3657 = vpack.c.b16 %v3505, %v3504
    %v3658 = vpack.c.b16 %v3507, %v3506
    %v3659 = vpack.c.b16 %v3509, %v3508
    %v3660 = vpack.c.b16 %v3511, %v3510
    %v3661 = vpack.c.b16 %v3513, %v3512
    %v3662 = vpack.c.b16 %v3515, %v3514
    %v3663 = vpack.c.b16 %v3517, %v3516
    %v3664 = vpack.c.b16 %v3519, %v3518
    %v3665 = vpack.c.b16 %v3521, %v3520
    %v3666 = vpack.c.b16 %v3523, %v3522
    %v3667 = vpack.c.b16 %v3525, %v3524
    %v3668 = vpack.c.b16 %v3527, %v3526
    %v3669 = vpack.c.b16 %v3529, %v3528
    %v3670 = vpack.c.b16 %v3531, %v3530
    %v3671 = vpack.c.b16 %v3533, %v3532
    %v3672 = vpack.c.b16 %v3535, %v3534
    %v3673 = vpack.c.b16 %v3537, %v3536
    %v3674 = vpack.c.b16 %v3539, %v3538
    %v3675 = vpack.c.b16 %v3541, %v3540
    %v3676 = vpack.c.b16 %v3543, %v3542
    %v3677 = vpack.c.b16 %v3545, %v3544
    %v3678 = vpack.c.b16 %v3547, %v3546
    %v3679 = vpack.c.b16 %v3549, %v3548
    %v3680 = vpack.c.b16 %v3551, %v3550
    %v3681 = vpack.c.b16 %v3553, %v3552
    %3810 = vmatprep.subr.bf16.mxu0 0
    %3811 = vmatpush1.bf16.msra.mxu0 %v3554
    %3812 = vmatprep.subr.bf16.mxu0 0
    %3813 = vmatpush1.bf16.msra.mxu0 %v3555
    %3814 = vmatprep.subr.bf16.mxu0 0
    %3815 = vmatpush1.bf16.msra.mxu0 %v3556
    %3816 = vmatprep.subr.bf16.mxu0 0
    %3817 = vmatpush1.bf16.msra.mxu0 %v3557
    %3818 = vmatprep.subr.bf16.mxu0 0
    %3819 = vmatpush1.bf16.msra.mxu0 %v3558
    %3820 = vmatprep.subr.bf16.mxu0 0
    %3821 = vmatpush1.bf16.msra.mxu0 %v3559
    %3822 = vmatprep.subr.bf16.mxu0 0
    %3823 = vmatpush1.bf16.msra.mxu0 %v3560
    %3824 = vmatprep.subr.bf16.mxu0 0
    %3825 = vmatpush1.bf16.msra.mxu0 %v3561
    %3826 = vmatprep.subr.bf16.mxu0 0
    %3827 = vmatpush1.bf16.msra.mxu0 %v3562
    %3828 = vmatprep.subr.bf16.mxu0 0
    %3829 = vmatpush1.bf16.msra.mxu0 %v3563
    %3830 = vmatprep.subr.bf16.mxu0 0
    %3831 = vmatpush1.bf16.msra.mxu0 %v3564
    %3832 = vmatprep.subr.bf16.mxu0 0
    %3833 = vmatpush1.bf16.msra.mxu0 %v3565
    %3834 = vmatprep.subr.bf16.mxu0 0
    %3835 = vmatpush1.bf16.msra.mxu0 %v3566
    %3836 = vmatprep.subr.bf16.mxu0 0
    %3837 = vmatpush1.bf16.msra.mxu0 %v3567
    %3838 = vmatprep.subr.bf16.mxu0 0
    %3839 = vmatpush1.bf16.msra.mxu0 %v3568
    %3840 = vmatprep.subr.bf16.mxu0 0
    %3841 = vmatpush1.bf16.msra.mxu0 %v3569
    %3842 = vmatprep.mubr.bf16.mxu0 %v2764
    %3843 = vmatmul.mubr.bf16.gmra.mrb[0].mxu0 %v2763
    %v3844 = vpop.f32.mrb[0].mxu0
    %v3845 = vadd.f32 %v3040, %v3844
    %v3846 = vpop.f32.mrb[0].mxu0
    %v3847 = vpop.f32.mrb[0].mxu0
    %v3848 = vadd.f32 %v3040, %v3847
    %v3849 = vpop.f32.mrb[0].mxu0
    %3850 = vdwg.mxu0
    %3851 = vmatprep.subr.bf16.mxu0 0
    %3852 = vmatpush1.bf16.msra.mxu0 %v3570
    %3853 = vmatprep.subr.bf16.mxu0 0
    %3854 = vmatpush1.bf16.msra.mxu0 %v3571
    %3855 = vmatprep.subr.bf16.mxu0 0
    %3856 = vmatpush1.bf16.msra.mxu0 %v3572
    %3857 = vmatprep.subr.bf16.mxu0 0
    %3858 = vmatpush1.bf16.msra.mxu0 %v3573
    %3859 = vmatprep.subr.bf16.mxu0 0
    %3860 = vmatpush1.bf16.msra.mxu0 %v3574
    %3861 = vmatprep.subr.bf16.mxu0 0
    %3862 = vmatpush1.bf16.msra.mxu0 %v3575
    %3863 = vmatprep.subr.bf16.mxu0 0
    %3864 = vmatpush1.bf16.msra.mxu0 %v3576
    %3865 = vmatprep.subr.bf16.mxu0 0
    %3866 = vmatpush1.bf16.msra.mxu0 %v3577
    %3867 = vmatprep.subr.bf16.mxu0 0
    %3868 = vmatpush1.bf16.msra.mxu0 %v3578
    %3869 = vmatprep.subr.bf16.mxu0 0
    %3870 = vmatpush1.bf16.msra.mxu0 %v3579
    %3871 = vmatprep.subr.bf16.mxu0 0
    %3872 = vmatpush1.bf16.msra.mxu0 %v3580
    %3873 = vmatprep.subr.bf16.mxu0 0
    %3874 = vmatpush1.bf16.msra.mxu0 %v3581
    %3875 = vmatprep.subr.bf16.mxu0 0
    %3876 = vmatpush1.bf16.msra.mxu0 %v3582
    %3877 = vmatprep.subr.bf16.mxu0 0
    %3878 = vmatpush1.bf16.msra.mxu0 %v3583
    %3879 = vmatprep.subr.bf16.mxu0 0
    %3880 = vmatpush1.bf16.msra.mxu0 %v3584
    %3881 = vmatprep.subr.bf16.mxu0 0
    %3882 = vmatpush1.bf16.msra.mxu0 %v3585
    %3883 = vmatprep.mubr.bf16.mxu0 %v2766
    %3884 = vmatmul.mubr.bf16.gmra.mrb[0].mxu0 %v2765
    %v3885 = vpop.f32.mrb[0].mxu0
    %v3886 = vadd.f32 %v3845, %v3885
    %v3887 = vpop.f32.mrb[0].mxu0
    %v3888 = vpop.f32.mrb[0].mxu0
    %v3889 = vadd.f32 %v3848, %v3888
    %v3890 = vpop.f32.mrb[0].mxu0
    %3891 = vdwg.mxu0
    %3892 = vmatprep.subr.bf16.mxu0 0
    %3893 = vmatpush1.bf16.msra.mxu0 %v3586
    %3894 = vmatprep.subr.bf16.mxu0 0
    %3895 = vmatpush1.bf16.msra.mxu0 %v3587
    %3896 = vmatprep.subr.bf16.mxu0 0
    %3897 = vmatpush1.bf16.msra.mxu0 %v3588
    %3898 = vmatprep.subr.bf16.mxu0 0
    %3899 = vmatpush1.bf16.msra.mxu0 %v3589
    %3900 = vmatprep.subr.bf16.mxu0 0
    %3901 = vmatpush1.bf16.msra.mxu0 %v3590
    %3902 = vmatprep.subr.bf16.mxu0 0
    %3903 = vmatpush1.bf16.msra.mxu0 %v3591
    %3904 = vmatprep.subr.bf16.mxu0 0
    %3905 = vmatpush1.bf16.msra.mxu0 %v3592
    %3906 = vmatprep.subr.bf16.mxu0 0
    %3907 = vmatpush1.bf16.msra.mxu0 %v3593
    %3908 = vmatprep.subr.bf16.mxu0 0
    %3909 = vmatpush1.bf16.msra.mxu0 %v3594
    %3910 = vmatprep.subr.bf16.mxu0 0
    %3911 = vmatpush1.bf16.msra.mxu0 %v3595
    %3912 = vmatprep.subr.bf16.mxu0 0
    %3913 = vmatpush1.bf16.msra.mxu0 %v3596
    %3914 = vmatprep.subr.bf16.mxu0 0
    %3915 = vmatpush1.bf16.msra.mxu0 %v3597
    %3916 = vmatprep.subr.bf16.mxu0 0
    %3917 = vmatpush1.bf16.msra.mxu0 %v3598
    %3918 = vmatprep.subr.bf16.mxu0 0
    %3919 = vmatpush1.bf16.msra.mxu0 %v3599
    %3920 = vmatprep.subr.bf16.mxu0 0
    %3921 = vmatpush1.bf16.msra.mxu0 %v3600
    %3922 = vmatprep.subr.bf16.mxu0 0
    %3923 = vmatpush1.bf16.msra.mxu0 %v3601
    %3924 = vmatprep.mubr.bf16.mxu0 %v2768
    %3925 = vmatmul.mubr.bf16.gmra.mrb[0].mxu0 %v2767
    %v3926 = vpop.f32.mrb[0].mxu0
    %v3927 = vadd.f32 %v3886, %v3926
    %v3928 = vpop.f32.mrb[0].mxu0
    %v3929 = vpop.f32.mrb[0].mxu0
    %v3930 = vadd.f32 %v3889, %v3929
    %v3931 = vpop.f32.mrb[0].mxu0
    %3932 = vdwg.mxu0
    %3933 = vmatprep.subr.bf16.mxu0 0
    %3934 = vmatpush1.bf16.msra.mxu0 %v3602
    %3935 = vmatprep.subr.bf16.mxu0 0
    %3936 = vmatpush1.bf16.msra.mxu0 %v3603
    %3937 = vmatprep.subr.bf16.mxu0 0
    %3938 = vmatpush1.bf16.msra.mxu0 %v3604
    %3939 = vmatprep.subr.bf16.mxu0 0
    %3940 = vmatpush1.bf16.msra.mxu0 %v3605
    %3941 = vmatprep.subr.bf16.mxu0 0
    %3942 = vmatpush1.bf16.msra.mxu0 %v3606
    %3943 = vmatprep.subr.bf16.mxu0 0
    %3944 = vmatpush1.bf16.msra.mxu0 %v3607
    %3945 = vmatprep.subr.bf16.mxu0 0
    %3946 = vmatpush1.bf16.msra.mxu0 %v3608
    %3947 = vmatprep.subr.bf16.mxu0 0
    %3948 = vmatpush1.bf16.msra.mxu0 %v3609
    %3949 = vmatprep.subr.bf16.mxu0 0
    %3950 = vmatpush1.bf16.msra.mxu0 %v3610
    %3951 = vmatprep.subr.bf16.mxu0 0
    %3952 = vmatpush1.bf16.msra.mxu0 %v3611
    %3953 = vmatprep.subr.bf16.mxu0 0
    %3954 = vmatpush1.bf16.msra.mxu0 %v3612
    %3955 = vmatprep.subr.bf16.mxu0 0
    %3956 = vmatpush1.bf16.msra.mxu0 %v3613
    %3957 = vmatprep.subr.bf16.mxu0 0
    %3958 = vmatpush1.bf16.msra.mxu0 %v3614
    %3959 = vmatprep.subr.bf16.mxu0 0
    %3960 = vmatpush1.bf16.msra.mxu0 %v3615
    %3961 = vmatprep.subr.bf16.mxu0 0
    %3962 = vmatpush1.bf16.msra.mxu0 %v3616
    %3963 = vmatprep.subr.bf16.mxu0 0
    %3964 = vmatpush1.bf16.msra.mxu0 %v3617
    %3965 = vmatprep.mubr.bf16.mxu0 %v2770
    %3966 = vmatmul.mubr.bf16.gmra.mrb[0].mxu0 %v2769
    %v3967 = vpop.f32.mrb[0].mxu0
    %v3968 = vadd.f32 %v3927, %v3967
    %v3969 = vpop.f32.mrb[0].mxu0
    %v3970 = vpop.f32.mrb[0].mxu0
    %v3971 = vadd.f32 %v3930, %v3970
    %v3972 = vpop.f32.mrb[0].mxu0
    %3973 = vdwg.mxu0
    %3974 = vmatprep.subr.bf16.mxu0 0
    %3975 = vmatpush1.bf16.msra.mxu0 %v3618
    %3976 = vmatprep.subr.bf16.mxu0 0
    %3977 = vmatpush1.bf16.msra.mxu0 %v3619
    %3978 = vmatprep.subr.bf16.mxu0 0
    %3979 = vmatpush1.bf16.msra.mxu0 %v3620
    %3980 = vmatprep.subr.bf16.mxu0 0
    %3981 = vmatpush1.bf16.msra.mxu0 %v3621
    %3982 = vmatprep.subr.bf16.mxu0 0
    %3983 = vmatpush1.bf16.msra.mxu0 %v3622
    %3984 = vmatprep.subr.bf16.mxu0 0
    %3985 = vmatpush1.bf16.msra.mxu0 %v3623
    %3986 = vmatprep.subr.bf16.mxu0 0
    %3987 = vmatpush1.bf16.msra.mxu0 %v3624
    %3988 = vmatprep.subr.bf16.mxu0 0
    %3989 = vmatpush1.bf16.msra.mxu0 %v3625
    %3990 = vmatprep.subr.bf16.mxu0 0
    %3991 = vmatpush1.bf16.msra.mxu0 %v3626
    %3992 = vmatprep.subr.bf16.mxu0 0
    %3993 = vmatpush1.bf16.msra.mxu0 %v3627
    %3994 = vmatprep.subr.bf16.mxu0 0
    %3995 = vmatpush1.bf16.msra.mxu0 %v3628
    %3996 = vmatprep.subr.bf16.mxu0 0
    %3997 = vmatpush1.bf16.msra.mxu0 %v3629
    %3998 = vmatprep.subr.bf16.mxu0 0
    %3999 = vmatpush1.bf16.msra.mxu0 %v3630
    %4000 = vmatprep.subr.bf16.mxu0 0
    %4001 = vmatpush1.bf16.msra.mxu0 %v3631
    %4002 = vmatprep.subr.bf16.mxu0 0
    %4003 = vmatpush1.bf16.msra.mxu0 %v3632
    %4004 = vmatprep.subr.bf16.mxu0 0
    %4005 = vmatpush1.bf16.msra.mxu0 %v3633
    %4006 = vmatprep.mubr.bf16.mxu0 %v2772
    %4007 = vmatmul.mubr.bf16.gmra.mrb[0].mxu0 %v2771
    %v4008 = vpop.f32.mrb[0].mxu0
    %v4009 = vadd.f32 %v3968, %v4008
    %v4010 = vpop.f32.mrb[0].mxu0
    %v4011 = vpop.f32.mrb[0].mxu0
    %v4012 = vadd.f32 %v3971, %v4011
    %v4013 = vpop.f32.mrb[0].mxu0
    %4014 = vdwg.mxu0
    %4015 = vmatprep.subr.bf16.mxu0 0
    %4016 = vmatpush1.bf16.msra.mxu0 %v3634
    %4017 = vmatprep.subr.bf16.mxu0 0
    %4018 = vmatpush1.bf16.msra.mxu0 %v3635
    %4019 = vmatprep.subr.bf16.mxu0 0
    %4020 = vmatpush1.bf16.msra.mxu0 %v3636
    %4021 = vmatprep.subr.bf16.mxu0 0
    %4022 = vmatpush1.bf16.msra.mxu0 %v3637
    %4023 = vmatprep.subr.bf16.mxu0 0
    %4024 = vmatpush1.bf16.msra.mxu0 %v3638
    %4025 = vmatprep.subr.bf16.mxu0 0
    %4026 = vmatpush1.bf16.msra.mxu0 %v3639
    %4027 = vmatprep.subr.bf16.mxu0 0
    %4028 = vmatpush1.bf16.msra.mxu0 %v3640
    %4029 = vmatprep.subr.bf16.mxu0 0
    %4030 = vmatpush1.bf16.msra.mxu0 %v3641
    %4031 = vmatprep.subr.bf16.mxu0 0
    %4032 = vmatpush1.bf16.msra.mxu0 %v3642
    %4033 = vmatprep.subr.bf16.mxu0 0
    %4034 = vmatpush1.bf16.msra.mxu0 %v3643
    %4035 = vmatprep.subr.bf16.mxu0 0
    %4036 = vmatpush1.bf16.msra.mxu0 %v3644
    %4037 = vmatprep.subr.bf16.mxu0 0
    %4038 = vmatpush1.bf16.msra.mxu0 %v3645
    %4039 = vmatprep.subr.bf16.mxu0 0
    %4040 = vmatpush1.bf16.msra.mxu0 %v3646
    %4041 = vmatprep.subr.bf16.mxu0 0
    %4042 = vmatpush1.bf16.msra.mxu0 %v3647
    %4043 = vmatprep.subr.bf16.mxu0 0
    %4044 = vmatpush1.bf16.msra.mxu0 %v3648
    %4045 = vmatprep.subr.bf16.mxu0 0
    %4046 = vmatpush1.bf16.msra.mxu0 %v3649
    %4047 = vmatprep.mubr.bf16.mxu0 %v2774
    %4048 = vmatmul.mubr.bf16.gmra.mrb[0].mxu0 %v2773
    %v4049 = vpop.f32.mrb[0].mxu0
    %v4050 = vadd.f32 %v4009, %v4049
    %v4051 = vpop.f32.mrb[0].mxu0
    %v4052 = vpop.f32.mrb[0].mxu0
    %v4053 = vadd.f32 %v4012, %v4052
    %v4054 = vpop.f32.mrb[0].mxu0
    %4055 = vdwg.mxu0
    %4056 = vmatprep.subr.bf16.mxu0 0
    %4057 = vmatpush1.bf16.msra.mxu0 %v3650
    %4058 = vmatprep.subr.bf16.mxu0 0
    %4059 = vmatpush1.bf16.msra.mxu0 %v3651
    %4060 = vmatprep.subr.bf16.mxu0 0
    %4061 = vmatpush1.bf16.msra.mxu0 %v3652
    %4062 = vmatprep.subr.bf16.mxu0 0
    %4063 = vmatpush1.bf16.msra.mxu0 %v3653
    %4064 = vmatprep.subr.bf16.mxu0 0
    %4065 = vmatpush1.bf16.msra.mxu0 %v3654
    %4066 = vmatprep.subr.bf16.mxu0 0
    %4067 = vmatpush1.bf16.msra.mxu0 %v3655
    %4068 = vmatprep.subr.bf16.mxu0 0
    %4069 = vmatpush1.bf16.msra.mxu0 %v3656
    %4070 = vmatprep.subr.bf16.mxu0 0
    %4071 = vmatpush1.bf16.msra.mxu0 %v3657
    %4072 = vmatprep.subr.bf16.mxu0 0
    %4073 = vmatpush1.bf16.msra.mxu0 %v3658
    %4074 = vmatprep.subr.bf16.mxu0 0
    %4075 = vmatpush1.bf16.msra.mxu0 %v3659
    %4076 = vmatprep.subr.bf16.mxu0 0
    %4077 = vmatpush1.bf16.msra.mxu0 %v3660
    %4078 = vmatprep.subr.bf16.mxu0 0
    %4079 = vmatpush1.bf16.msra.mxu0 %v3661
    %4080 = vmatprep.subr.bf16.mxu0 0
    %4081 = vmatpush1.bf16.msra.mxu0 %v3662
    %4082 = vmatprep.subr.bf16.mxu0 0
    %4083 = vmatpush1.bf16.msra.mxu0 %v3663
    %4084 = vmatprep.subr.bf16.mxu0 0
    %4085 = vmatpush1.bf16.msra.mxu0 %v3664
    %4086 = vmatprep.subr.bf16.mxu0 0
    %4087 = vmatpush1.bf16.msra.mxu0 %v3665
    %4088 = vmatprep.mubr.bf16.mxu0 %v2776
    %4089 = vmatmul.mubr.bf16.gmra.mrb[0].mxu0 %v2775
    %v4090 = vpop.f32.mrb[0].mxu0
    %v4091 = vadd.f32 %v4050, %v4090
    %v4092 = vpop.f32.mrb[0].mxu0
    %v4093 = vpop.f32.mrb[0].mxu0
    %v4094 = vadd.f32 %v4053, %v4093
    %v4095 = vpop.f32.mrb[0].mxu0
    %4096 = vdwg.mxu0
    %4097 = vmatprep.subr.bf16.mxu0 0
    %4098 = vmatpush1.bf16.msra.mxu0 %v3666
    %4099 = vmatprep.subr.bf16.mxu0 0
    %4100 = vmatpush1.bf16.msra.mxu0 %v3667
    %4101 = vmatprep.subr.bf16.mxu0 0
    %4102 = vmatpush1.bf16.msra.mxu0 %v3668
    %4103 = vmatprep.subr.bf16.mxu0 0
    %4104 = vmatpush1.bf16.msra.mxu0 %v3669
    %4105 = vmatprep.subr.bf16.mxu0 0
    %4106 = vmatpush1.bf16.msra.mxu0 %v3670
    %4107 = vmatprep.subr.bf16.mxu0 0
    %4108 = vmatpush1.bf16.msra.mxu0 %v3671
    %4109 = vmatprep.subr.bf16.mxu0 0
    %4110 = vmatpush1.bf16.msra.mxu0 %v3672
    %4111 = vmatprep.subr.bf16.mxu0 0
    %4112 = vmatpush1.bf16.msra.mxu0 %v3673
    %4113 = vmatprep.subr.bf16.mxu0 0
    %4114 = vmatpush1.bf16.msra.mxu0 %v3674
    %4115 = vmatprep.subr.bf16.mxu0 0
    %4116 = vmatpush1.bf16.msra.mxu0 %v3675
    %4117 = vmatprep.subr.bf16.mxu0 0
    %4118 = vmatpush1.bf16.msra.mxu0 %v3676
    %4119 = vmatprep.subr.bf16.mxu0 0
    %4120 = vmatpush1.bf16.msra.mxu0 %v3677
    %4121 = vmatprep.subr.bf16.mxu0 0
    %4122 = vmatpush1.bf16.msra.mxu0 %v3678
    %4123 = vmatprep.subr.bf16.mxu0 0
    %4124 = vmatpush1.bf16.msra.mxu0 %v3679
    %4125 = vmatprep.subr.bf16.mxu0 0
    %4126 = vmatpush1.bf16.msra.mxu0 %v3680
    %4127 = vmatprep.subr.bf16.mxu0 0
    %4128 = vmatpush1.bf16.msra.mxu0 %v3681
    %4129 = vmatprep.mubr.bf16.mxu0 %v2778
    %4130 = vmatmul.mubr.bf16.gmra.mrb[0].mxu0 %v2777
    %v4131 = vpop.f32.mrb[0].mxu0
    %v4132 = vadd.f32 %v4091, %v4131
    %v4133 = vpop.f32.mrb[0].mxu0
    %v4134 = vpop.f32.mrb[0].mxu0
    %v4135 = vadd.f32 %v4094, %v4134
    %v4136 = vpop.f32.mrb[0].mxu0
    %4137 = vdwg.mxu0
    %v4138 = vld [vmem:[#allocation10] sm:$0xff]
    %v4139 = vld [vmem:[#allocation10 + $0x8] sm:$0xff]
    %v4140 = vadd.f32 %v4132, %v4138
    %v4141 = vadd.f32 %v4135, %v4139
    %vm4142 = vcmask 261120
    %4143 = vst.msk [vmem:[#allocation11] sm:$0xff] %vm4142, %v4140
    %4144 = vst.msk [vmem:[#allocation11 + $0x8] sm:$0xff] %vm4142, %v4141
    // Predicated region
    $region46: #{tpu_custom_call.1} parent=1 // pred_check
      _
    $region47: #{tpu_custom_call.1} parent=1 // pred_check_branch
      %4146 = sbr.rel (0) target = $region49
    $region48: #{tpu_custom_call.1} parent=1 // pred_region
      %s4148 = ssub.s32 256, 256
      %4149 = vsyncadd [#allocation4], %s4148
      %s4150 = sshll.u32 [#allocation11], 4
      %s4151 = int_to_ptr.vmem [resolvable:$true] %s4150
      %4156 = dma.vmem_to_hbm [thread:$0]  %s4151, 256, %s6, [#allocation4], 128, 128, 8
    $region49: #{tpu_custom_call.1} parent=1 // pred_fallthru
      _
    // Predicated region
    $region50: #{tpu_custom_call.1} parent=1 // pred_check
      _
    $region51: #{tpu_custom_call.1} parent=1 // pred_check_branch
      %4158 = sbr.rel (0) target = $region53
    $region52: #{tpu_custom_call.1} parent=1 // pred_region
      %4159 = dma.done [#allocation4], 256
    $region53: #{tpu_custom_call.1} parent=1 // pred_fallthru
      _
    %4160 = vsyncpa [#allocation3], 1
    %4161 = vsyncpa [#allocation6], 1
    %4162 = vsyncpa [#allocation9], 1
    %4163 = vsyncpa [#allocation4], 1

</llo_original>
